<compile_context>
chip_gen: v5e
topology: v5e:2x2
jax: 0.10.0
libtpu: 0.0.40
codegen_flags: <defaults>
</compile_context>

<pallas_src>
import functools

import numpy as np
import jax
import jax.numpy as jnp
from jax.experimental import pallas as pl
from jax.experimental.pallas import tpu as pltpu

KSIZE = 7
PAD = (KSIZE - 1) // 2


def _round_up(x, m):
    return ((x + m - 1) // m) * m


def _sigmoid(z):
    # exp -> EUP; approx reciprocal -> EUP slot as well (no VPU divide sequence).
    return pl.reciprocal(1.0 + jnp.exp(-z), approx=True)


# ----------------------------------------------------------------------------
# Geometry of the padded lane frame used by the 7x7x7 spatial conv
# ----------------------------------------------------------------------------
def _geometry(D, H, W):
    """Padded (hh, ww) plane lives on lanes as q = hh*WQ + ww with WQ % 128 == 0, so the
    kh part of every tap offset (kh*WQ + kw) is lane-tile aligned and only the 7 kw
    offsets need a true lane rotation."""
    HW = H * W
    WQ = max(128, _round_up(W + 2 * PAD, 128))
    Q_out = _round_up((H - 1) * WQ + W, 128)                     # output lane frame
    max_off = (KSIZE - 1) * WQ + (KSIZE - 1)
    Q_src = _round_up(max((H + 2 * PAD - 1) * WQ + W + 2 * PAD, max_off + Q_out), 128)
    L = (KSIZE - 1) * WQ + Q_out                                 # width of one kw-shifted view
    return HW, WQ, Q_out, Q_src, L


def _build_spatial_constants(wconv, bn_scale, D, H, W):
    """Build the spatial-gate constants:
      dsel2   (2D, S)      f32 : 0/1 row selector, row r = c*D + d keeps only depth-d lanes
      pad_mat (S, Q_src)  bf16 : 0/1 scatter, packed lane s=(d,h,w) -> lane (h+3)*WQ+(w+3)
      gat     (Q_out, S)  bf16 : 0/1 gather, padded out lane h*WQ+w -> packed lane s
      wcat    (7, D, 7*2D) f32 : conv taps (pre-scaled by the BN eval scale) folded into
                                 banded matrices, column = kh*2D + c*D + d_in, so one MXU
                                 dot per kw contracts (channel, kd, kh) at once.
    """
    HW, WQ, Q_out, Q_src, _ = _geometry(D, H, W)
    S = D * HW
    s = np.arange(S)
    d_s, h_s, w_s = s // HW, (s % HW) // W, s % W

    r = np.arange(2 * D)
    dsel2 = (d_s[None, :] == (r % D)[:, None]).astype(np.float32)              # (2D, S)

    q = np.arange(Q_src)
    pad_mat = (q[None, :] == ((h_s + PAD) * WQ + (w_s + PAD))[:, None]).astype(np.float32)

    qo = np.arange(Q_out)
    gat = (qo[:, None] == (h_s * WQ + w_s)[None, :]).astype(np.float32)        # (Q_out, S)

    wscaled = np.asarray(wconv, np.float32) * float(bn_scale)                  # (c, kd, kh, kw)
    wcat = np.zeros((KSIZE, D, KSIZE, 2, D), np.float32)                       # (kw, d_out, kh, c, d_in)
    for d_out in range(D):
        for d_in in range(D):
            kd = d_in - d_out + PAD
            if 0 <= kd < KSIZE:
                # (c, kh, kw) -> (kw, kh, c)
                wcat[:, d_out, :, :, d_in] = np.transpose(wscaled[:, kd, :, :], (2, 1, 0))
    wcat = wcat.reshape(KSIZE, D, KSIZE * 2 * D)

    return (jnp.asarray(dsel2),
            jnp.asarray(pad_mat, jnp.bfloat16),
            jnp.asarray(gat, jnp.bfloat16),
            jnp.asarray(wcat, jnp.float32))


# ----------------------------------------------------------------------------
# Fused CBAM kernel: ChannelGate + ChannelPool + SpatialGate in one grid step
# ----------------------------------------------------------------------------
def _cbam_kernel(x_ref, w1_ref, b1_ref, w2_ref, b2_ref, dsel_ref, pad_ref,
                 gat_ref, wcat_ref, o_ref, *, D, HW, WQ, Q_out, L, bn_shift, bt):
    S = D * HW
    # Constants, loaded once and hoisted out of the per-sample loop.
    w1 = w1_ref[...]                   # (hid, C)
    b1 = b1_ref[...]                   # (hid, 1)
    w2 = w2_ref[...]                   # (C, hid)
    b2 = b2_ref[...]                   # (C, 1)
    dsel2 = dsel_ref[...]              # (2D, S)   f32 0/1
    dmask = dsel2[:D, :]               # (D, S)    reused for the final depth select
    pad_m = pad_ref[...]               # (S, Q_src) bf16
    gat_m = gat_ref[...]               # (Q_out, S) bf16
    row_is_max = jax.lax.broadcasted_iota(jnp.int32, (2 * D, S), 0) < D

    for b in range(bt):                # unrolled over the per-step batch block
        x = x_ref[b].astype(jnp.float32)                                   # (C, S)

        # ---------------- ChannelGate: avg + max pools, shared 2-layer MLP -------------
        pools = jnp.concatenate([jnp.mean(x, axis=1, keepdims=True),
                                 jnp.max(x, axis=1, keepdims=True)], axis=1)      # (C, 2)
        h = jnp.maximum(jnp.dot(w1, pools, preferred_element_type=jnp.float32) + b1, 0.0)
        a2 = jnp.dot(w2, h, preferred_element_type=jnp.float32) + b2              # (C, 2)
        y = x * _sigmoid(a2[:, 0:1] + a2[:, 1:2])                                 # (C, S)

        # ---------------- ChannelPool (stays in registers, never hits HBM) -------------
        cmax = jnp.max(y, axis=0, keepdims=True)                  # (1, S)  conv in-ch 0
        cmean = jnp.mean(y, axis=0, keepdims=True)                # (1, S)  conv in-ch 1
        pooled_bc = jnp.where(row_is_max,
                              jnp.broadcast_to(cmax, (2 * D, S)),
                              jnp.broadcast_to(cmean, (2 * D, S)))                # (2D, S)

        # ---------------- SpatialGate ---------------------------------------------------
        # 1) zero-pad (H, W) into the padded lane frame with a single scatter matmul:
        #    row r = c*D + d holds the depth-d slice of pooled channel c at lanes
        #    (h+PAD)*WQ + (w+PAD); every other lane is exactly zero.
        ps = jnp.dot((pooled_bc * dsel2).astype(jnp.bfloat16), pad_m,
                     preferred_element_type=jnp.float32)                          # (2D, Q_src)

        # 2) 7x7x7 conv: one misaligned lane shift per kw (7 total); the kh*WQ offsets are
        #    lane-tile aligned, so the 7 kh views are cheap slices stacked along K and the
        #    whole (channel, kd, kh) contraction is a single banded dot per kw.
        acc = jnp.zeros((D, Q_out), jnp.float32)
        for kw in range(KSIZE):
            shifted = ps[:, kw:kw + L]                             # the only rotation per kw
            stacked = jnp.concatenate(
                [shifted[:, kh * WQ: kh * WQ + Q_out] for kh in range(KSIZE)], axis=0)
            acc = acc + jnp.dot(wcat_ref[kw], stacked,
                                preferred_element_type=jnp.float32)               # (D, Q_out)

        # 3) gather back to packed s-lanes (D->S flattening folded into the gather matmul
        #    + depth-mask row sum), add folded BN shift, sigmoid, apply the gate.
        tiled = jnp.dot(acc.astype(jnp.bfloat16), gat_m,
                        preferred_element_type=jnp.float32)                        # (D, S)
        att = jnp.sum(tiled * dmask, axis=0, keepdims=True)                        # (1, S)
        gate = _sigmoid(att + bn_shift)                                            # (1, S)
        o_ref[b] = (y * gate).astype(o_ref.dtype)


def cbam_forward(x, params, bn_shift, *, batch_block=None):
    B, C, D, H, W = x.shape
    HW, WQ, Q_out, _, L = _geometry(D, H, W)
    S = D * HW
    x_r = x.reshape(B, C, S)

    # >=2 grid steps keeps both v7x TensorCores busy; larger blocks amortize the per-step
    # pipeline overhead on all generations.
    bt = batch_block if batch_block is not None else max(1, B // 2)
    bt = max(1, bt)
    while B % bt:
        bt -= 1

    kern = functools.partial(_cbam_kernel, D=D, HW=HW, WQ=WQ, Q_out=Q_out, L=L,
                             bn_shift=float(bn_shift), bt=bt)

    def const2d(arr):
        return pl.BlockSpec(arr.shape, lambda i: (0, 0))

    out = pl.pallas_call(
        kern,
        out_shape=jax.ShapeDtypeStruct((B, C, S), x.dtype),
        grid=(B // bt,),
        in_specs=[
            pl.BlockSpec((bt, C, S), lambda i: (i, 0, 0)),
            const2d(params["w1"]),
            const2d(params["b1c"]),
            const2d(params["w2"]),
            const2d(params["b2c"]),
            const2d(params["dsel2"]),
            const2d(params["pad_mat"]),
            const2d(params["gat"]),
            pl.BlockSpec(params["wcat"].shape, lambda i: (0, 0, 0)),
        ],
        out_specs=pl.BlockSpec((bt, C, S), lambda i: (i, 0, 0)),
        compiler_params=pltpu.CompilerParams(dimension_semantics=("parallel",)),
    )(x_r, params["w1"], params["b1c"], params["w2"], params["b2c"],
      params["dsel2"], params["pad_mat"], params["gat"], params["wcat"])
    return out.reshape(B, C, D, H, W)


if __name__ == "__main__":
    # gate_channels=32, reduction_ratio=16 -> hidden=2; 5-D NCDHW input
    B, C, D, H, W = 2, 32, 4, 8, 8
    reduction = 16
    hid = C // reduction

    key = jax.random.PRNGKey(0)
    kx, k1, k2, k3, k4, k5 = jax.random.split(key, 6)

    x = jax.random.normal(kx, (B, C, D, H, W), jnp.float32)

    # torch Linear(C, hid).weight is (hid, C), bias (hid,)
    w1 = jax.random.normal(k1, (hid, C), jnp.float32) * 0.2
    b1 = jax.random.normal(k2, (hid,), jnp.float32) * 0.1
    # torch Linear(hid, C).weight is (C, hid), bias (C,)
    w2 = jax.random.normal(k3, (C, hid), jnp.float32) * 0.2
    b2 = jax.random.normal(k4, (C,), jnp.float32) * 0.1
    # torch Conv3d(2, 1, 7, padding=3, bias=False).weight -> (2, 7, 7, 7)
    wconv = jax.random.normal(k5, (2, KSIZE, KSIZE, KSIZE), jnp.float32) * 0.05

    # BatchNorm3d(1) eval-mode folded to (conv * scale) + shift
    gamma, beta, rmean, rvar, eps = 1.0, 0.0, 0.0, 1.0, 1e-5
    bn_scale = gamma / (rvar + eps) ** 0.5
    bn_shift = beta - rmean * bn_scale

    dsel2, pad_mat, gat, wcat = _build_spatial_constants(np.asarray(wconv), bn_scale, D, H, W)
    params = {
        "w1": w1, "b1c": b1.reshape(hid, 1),
        "w2": w2, "b2c": b2.reshape(C, 1),
        "dsel2": dsel2, "pad_mat": pad_mat, "gat": gat, "wcat": wcat,
    }

    fwd = jax.jit(lambda xin, p: cbam_forward(xin, p, bn_shift))
    out = fwd(x, params)
    jax.block_until_ready(out)
    assert out.shape == (B, C, D, H, W) and out.dtype == jnp.float32

    # Pure-JAX reference (same eval-mode BN folding) for a numerical sanity check.
    def reference(xin):
        xf = xin.reshape(B, C, -1)
        avg, mx = xf.mean(-1), xf.max(-1)

        def mlp(v):
            return jnp.maximum(v @ w1.T + b1, 0.0) @ w2.T + b2

        scale = jax.nn.sigmoid(mlp(avg) + mlp(mx))[:, :, None, None, None]
        y_ref = xin * scale
        pool = jnp.concatenate([y_ref.max(axis=1, keepdims=True),
                                y_ref.mean(axis=1, keepdims=True)], axis=1)
        conv = jax.lax.conv_general_dilated(
            pool, wconv[None], window_strides=(1, 1, 1),
            padding=((PAD, PAD),) * 3,
            dimension_numbers=("NCDHW", "OIDHW", "NCDHW"),
            precision=jax.lax.Precision.HIGHEST)
        gate = jax.nn.sigmoid(conv * bn_scale + bn_shift)
        return y_ref * gate

    ref = reference(x)
    err = float(jnp.max(jnp.abs(out - ref)))
    assert err < 5e-2, f"max abs error vs reference: {err}"
    print("KERNEL_OK")
</pallas_src>

<mosaic_0001>
module attributes {stable_mosaic.version = 11 : i64} {
  func.func @_cbam_kernel(%arg0: i32, %arg1: memref<1x32x256xf32, #tpu.memory_space<vmem>>, %arg2: memref<2x32xf32, #tpu.memory_space<vmem>>, %arg3: memref<2x1xf32, #tpu.memory_space<vmem>>, %arg4: memref<32x2xf32, #tpu.memory_space<vmem>>, %arg5: memref<32x1xf32, #tpu.memory_space<vmem>>, %arg6: memref<8x256xf32, #tpu.memory_space<vmem>>, %arg7: memref<256x1920xbf16, #tpu.memory_space<vmem>>, %arg8: memref<1024x256xbf16, #tpu.memory_space<vmem>>, %arg9: memref<7x4x56xf32, #tpu.memory_space<vmem>>, %arg10: memref<1x32x256xf32, #tpu.memory_space<vmem>>) attributes {dimension_semantics = [#tpu.dimension_semantics<parallel>], iteration_bounds = array<i64: 2>, scalar_prefetch = 0 : i64, scratch_operands = 0 : i64, tpu.core_type = #tpu.core_type<tc>, window_params = [{transform_indices = @transform_0, window_bounds = array<i64: 1, 32, 256>}, {pipeline_mode = #tpu.pipeline_mode<synchronous>, transform_indices = @transform_1, window_bounds = array<i64: 2, 32>}, {pipeline_mode = #tpu.pipeline_mode<synchronous>, transform_indices = @transform_2, window_bounds = array<i64: 2, 1>}, {pipeline_mode = #tpu.pipeline_mode<synchronous>, transform_indices = @transform_3, window_bounds = array<i64: 32, 2>}, {pipeline_mode = #tpu.pipeline_mode<synchronous>, transform_indices = @transform_4, window_bounds = array<i64: 32, 1>}, {pipeline_mode = #tpu.pipeline_mode<synchronous>, transform_indices = @transform_5, window_bounds = array<i64: 8, 256>}, {pipeline_mode = #tpu.pipeline_mode<synchronous>, transform_indices = @transform_6, window_bounds = array<i64: 256, 1920>}, {pipeline_mode = #tpu.pipeline_mode<synchronous>, transform_indices = @transform_7, window_bounds = array<i64: 1024, 256>}, {pipeline_mode = #tpu.pipeline_mode<synchronous>, transform_indices = @transform_8, window_bounds = array<i64: 7, 4, 56>}, {transform_indices = @transform_9, window_bounds = array<i64: 1, 32, 256>}]} {
    %c0 = arith.constant 0 : index
    %c0_0 = arith.constant 0 : index
    %0 = vector.load %arg2[%c0, %c0_0] : memref<2x32xf32, #tpu.memory_space<vmem>>, vector<2x32xf32>
    %c0_1 = arith.constant 0 : index
    %c0_2 = arith.constant 0 : index
    %1 = vector.load %arg3[%c0_1, %c0_2] : memref<2x1xf32, #tpu.memory_space<vmem>>, vector<2x1xf32>
    %c0_3 = arith.constant 0 : index
    %c0_4 = arith.constant 0 : index
    %2 = vector.load %arg4[%c0_3, %c0_4] : memref<32x2xf32, #tpu.memory_space<vmem>>, vector<32x2xf32>
    %c0_5 = arith.constant 0 : index
    %c0_6 = arith.constant 0 : index
    %3 = vector.load %arg5[%c0_5, %c0_6] : memref<32x1xf32, #tpu.memory_space<vmem>>, vector<32x1xf32>
    %c0_7 = arith.constant 0 : index
    %c0_8 = arith.constant 0 : index
    %4 = vector.load %arg6[%c0_7, %c0_8] : memref<8x256xf32, #tpu.memory_space<vmem>>, vector<8x256xf32>
    %5 = vector.extract_strided_slice %4 {offsets = [0, 0], sizes = [4, 256], strides = [1, 1]} : vector<8x256xf32> to vector<4x256xf32>
    %c0_9 = arith.constant 0 : index
    %c0_10 = arith.constant 0 : index
    %6 = vector.load %arg7[%c0_9, %c0_10] : memref<256x1920xbf16, #tpu.memory_space<vmem>>, vector<256x1920xbf16>
    %c0_11 = arith.constant 0 : index
    %c0_12 = arith.constant 0 : index
    %7 = vector.load %arg8[%c0_11, %c0_12] : memref<1024x256xbf16, #tpu.memory_space<vmem>>, vector<1024x256xbf16>
    %8 = tpu.iota {dimensions = array<i32: 0>} : vector<8x256xi32>
    %c4_i32 = arith.constant 4 : i32
    %9 = vector.broadcast %c4_i32 : i32 to vector<8x256xi32>
    %10 = arith.cmpi slt, %8, %9 : vector<8x256xi32>
    %c0_13 = arith.constant 0 : index
    %c0_14 = arith.constant 0 : index
    %c0_15 = arith.constant 0 : index
    %11 = vector.load %arg1[%c0_13, %c0_14, %c0_15] : memref<1x32x256xf32, #tpu.memory_space<vmem>>, vector<1x32x256xf32>
    %12 = vector.shape_cast %11 : vector<1x32x256xf32> to vector<32x256xf32>
    %cst = arith.constant dense<0.000000e+00> : vector<32xf32>
    %13 = vector.multi_reduction <add>, %12, %cst [1] : vector<32x256xf32> to vector<32xf32>
    %14 = vector.shape_cast %13 : vector<32xf32> to vector<32x1xf32>
    %cst_16 = arith.constant 2.560000e+02 : f32
    %15 = vector.broadcast %cst_16 : f32 to vector<32x1xf32>
    %16 = arith.divf %14, %15 : vector<32x1xf32>
    %cst_17 = arith.constant dense<0xFF800000> : vector<32xf32>
    %17 = vector.multi_reduction <maximumf>, %12, %cst_17 [1] : vector<32x256xf32> to vector<32xf32>
    %18 = vector.shape_cast %17 : vector<32xf32> to vector<32x1xf32>
    %19 = tpu.concatenate %16, %18 in 1 : vector<32x1xf32>, vector<32x1xf32> -> vector<32x2xf32>
    %cst_18 = arith.constant dense<0.000000e+00> : vector<2x2xf32>
    %20 = tpu.matmul %0, %19, %cst_18 {dimension_numbers = #tpu.dot_dimension_numbers<[1], [0], [0], [1], [0, 0, 1, 1], [], []>} : vector<2x32xf32>, vector<32x2xf32>, vector<2x2xf32> -> vector<2x2xf32>
    %21 = vector.broadcast %1 : vector<2x1xf32> to vector<2x2xf32>
    %22 = arith.addf %20, %21 : vector<2x2xf32>
    %cst_19 = arith.constant 0.000000e+00 : f32
    %23 = vector.broadcast %cst_19 : f32 to vector<2x2xf32>
    %24 = arith.maximumf %22, %23 : vector<2x2xf32>
    %cst_20 = arith.constant dense<0.000000e+00> : vector<32x2xf32>
    %25 = tpu.matmul %2, %24, %cst_20 {dimension_numbers = #tpu.dot_dimension_numbers<[1], [0], [0], [1], [0, 0, 1, 1], [], []>} : vector<32x2xf32>, vector<2x2xf32>, vector<32x2xf32> -> vector<32x2xf32>
    %26 = vector.broadcast %3 : vector<32x1xf32> to vector<32x2xf32>
    %27 = arith.addf %25, %26 : vector<32x2xf32>
    %28 = vector.extract_strided_slice %27 {offsets = [0, 0], sizes = [32, 1], strides = [1, 1]} : vector<32x2xf32> to vector<32x1xf32>
    %29 = vector.extract_strided_slice %27 {offsets = [0, 1], sizes = [32, 1], strides = [1, 1]} : vector<32x2xf32> to vector<32x1xf32>
    %30 = arith.addf %28, %29 : vector<32x1xf32>
    %cst_21 = arith.constant 0.000000e+00 : f32
    %31 = vector.broadcast %cst_21 : f32 to vector<32x1xf32>
    %32 = arith.subf %31, %30 : vector<32x1xf32>
    %33 = math.exp %32 : vector<32x1xf32>
    %cst_22 = arith.constant 1.000000e+00 : f32
    %34 = vector.broadcast %cst_22 : f32 to vector<32x1xf32>
    %35 = arith.addf %34, %33 : vector<32x1xf32>
    %36 = tpu.reciprocal %35 {approx = true} : vector<32x1xf32> -> vector<32x1xf32>
    %37 = vector.broadcast %36 : vector<32x1xf32> to vector<32x256xf32>
    %38 = arith.mulf %12, %37 : vector<32x256xf32>
    %cst_23 = arith.constant dense<0xFF800000> : vector<256xf32>
    %39 = vector.multi_reduction <maximumf>, %38, %cst_23 [0] : vector<32x256xf32> to vector<256xf32>
    %40 = vector.shape_cast %39 : vector<256xf32> to vector<1x256xf32>
    %cst_24 = arith.constant dense<0.000000e+00> : vector<256xf32>
    %41 = vector.multi_reduction <add>, %38, %cst_24 [0] : vector<32x256xf32> to vector<256xf32>
    %42 = vector.shape_cast %41 : vector<256xf32> to vector<1x256xf32>
    %cst_25 = arith.constant 3.200000e+01 : f32
    %43 = vector.broadcast %cst_25 : f32 to vector<1x256xf32>
    %44 = arith.divf %42, %43 : vector<1x256xf32>
    %45 = vector.shape_cast %40 : vector<1x256xf32> to vector<1x256xf32>
    %46 = vector.broadcast %45 : vector<1x256xf32> to vector<8x256xf32>
    %47 = vector.shape_cast %44 : vector<1x256xf32> to vector<1x256xf32>
    %48 = vector.broadcast %47 : vector<1x256xf32> to vector<8x256xf32>
    %49 = arith.select %10, %46, %48 : vector<8x256xi1>, vector<8x256xf32>
    %50 = arith.mulf %49, %4 : vector<8x256xf32>
    %51 = arith.truncf %50 : vector<8x256xf32> to vector<8x256xbf16>
    %cst_26 = arith.constant dense<0.000000e+00> : vector<8x1920xf32>
    %52 = tpu.matmul %51, %6, %cst_26 {dimension_numbers = #tpu.dot_dimension_numbers<[1], [0], [0], [1], [0, 0, 1, 1], [], []>} : vector<8x256xbf16>, vector<256x1920xbf16>, vector<8x1920xf32> -> vector<8x1920xf32>
    %cst_27 = arith.constant 0.000000e+00 : f32
    %53 = vector.broadcast %cst_27 : f32 to vector<4x1024xf32>
    %54 = vector.extract_strided_slice %52 {offsets = [0, 0], sizes = [8, 1792], strides = [1, 1]} : vector<8x1920xf32> to vector<8x1792xf32>
    %55 = vector.extract_strided_slice %54 {offsets = [0, 0], sizes = [8, 1024], strides = [1, 1]} : vector<8x1792xf32> to vector<8x1024xf32>
    %56 = vector.extract_strided_slice %54 {offsets = [0, 128], sizes = [8, 1024], strides = [1, 1]} : vector<8x1792xf32> to vector<8x1024xf32>
    %57 = vector.extract_strided_slice %54 {offsets = [0, 256], sizes = [8, 1024], strides = [1, 1]} : vector<8x1792xf32> to vector<8x1024xf32>
    %58 = vector.extract_strided_slice %54 {offsets = [0, 384], sizes = [8, 1024], strides = [1, 1]} : vector<8x1792xf32> to vector<8x1024xf32>
    %59 = vector.extract_strided_slice %54 {offsets = [0, 512], sizes = [8, 1024], strides = [1, 1]} : vector<8x1792xf32> to vector<8x1024xf32>
    %60 = vector.extract_strided_slice %54 {offsets = [0, 640], sizes = [8, 1024], strides = [1, 1]} : vector<8x1792xf32> to vector<8x1024xf32>
    %61 = vector.extract_strided_slice %54 {offsets = [0, 768], sizes = [8, 1024], strides = [1, 1]} : vector<8x1792xf32> to vector<8x1024xf32>
    %62 = tpu.concatenate %55, %56, %57, %58, %59, %60, %61 in 0 : vector<8x1024xf32>, vector<8x1024xf32>, vector<8x1024xf32>, vector<8x1024xf32>, vector<8x1024xf32>, vector<8x1024xf32>, vector<8x1024xf32> -> vector<56x1024xf32>
    %c0_28 = arith.constant 0 : index
    %c0_29 = arith.constant 0 : index
    %c0_30 = arith.constant 0 : index
    %63 = vector.load %arg9[%c0_28, %c0_29, %c0_30] : memref<7x4x56xf32, #tpu.memory_space<vmem>>, vector<1x4x56xf32>
    %64 = vector.shape_cast %63 : vector<1x4x56xf32> to vector<4x56xf32>
    %cst_31 = arith.constant dense<0.000000e+00> : vector<4x1024xf32>
    %65 = tpu.matmul %64, %62, %cst_31 {dimension_numbers = #tpu.dot_dimension_numbers<[1], [0], [0], [1], [0, 0, 1, 1], [], []>} : vector<4x56xf32>, vector<56x1024xf32>, vector<4x1024xf32> -> vector<4x1024xf32>
    %66 = arith.addf %53, %65 : vector<4x1024xf32>
    %67 = vector.extract_strided_slice %52 {offsets = [0, 1], sizes = [8, 1792], strides = [1, 1]} : vector<8x1920xf32> to vector<8x1792xf32>
    %68 = vector.extract_strided_slice %67 {offsets = [0, 0], sizes = [8, 1024], strides = [1, 1]} : vector<8x1792xf32> to vector<8x1024xf32>
    %69 = vector.extract_strided_slice %67 {offsets = [0, 128], sizes = [8, 1024], strides = [1, 1]} : vector<8x1792xf32> to vector<8x1024xf32>
    %70 = vector.extract_strided_slice %67 {offsets = [0, 256], sizes = [8, 1024], strides = [1, 1]} : vector<8x1792xf32> to vector<8x1024xf32>
    %71 = vector.extract_strided_slice %67 {offsets = [0, 384], sizes = [8, 1024], strides = [1, 1]} : vector<8x1792xf32> to vector<8x1024xf32>
    %72 = vector.extract_strided_slice %67 {offsets = [0, 512], sizes = [8, 1024], strides = [1, 1]} : vector<8x1792xf32> to vector<8x1024xf32>
    %73 = vector.extract_strided_slice %67 {offsets = [0, 640], sizes = [8, 1024], strides = [1, 1]} : vector<8x1792xf32> to vector<8x1024xf32>
    %74 = vector.extract_strided_slice %67 {offsets = [0, 768], sizes = [8, 1024], strides = [1, 1]} : vector<8x1792xf32> to vector<8x1024xf32>
    %75 = tpu.concatenate %68, %69, %70, %71, %72, %73, %74 in 0 : vector<8x1024xf32>, vector<8x1024xf32>, vector<8x1024xf32>, vector<8x1024xf32>, vector<8x1024xf32>, vector<8x1024xf32>, vector<8x1024xf32> -> vector<56x1024xf32>
    %c1 = arith.constant 1 : index
    %c0_32 = arith.constant 0 : index
    %c0_33 = arith.constant 0 : index
    %76 = vector.load %arg9[%c1, %c0_32, %c0_33] : memref<7x4x56xf32, #tpu.memory_space<vmem>>, vector<1x4x56xf32>
    %77 = vector.shape_cast %76 : vector<1x4x56xf32> to vector<4x56xf32>
    %cst_34 = arith.constant dense<0.000000e+00> : vector<4x1024xf32>
    %78 = tpu.matmul %77, %75, %cst_34 {dimension_numbers = #tpu.dot_dimension_numbers<[1], [0], [0], [1], [0, 0, 1, 1], [], []>} : vector<4x56xf32>, vector<56x1024xf32>, vector<4x1024xf32> -> vector<4x1024xf32>
    %79 = arith.addf %66, %78 : vector<4x1024xf32>
    %80 = vector.extract_strided_slice %52 {offsets = [0, 2], sizes = [8, 1792], strides = [1, 1]} : vector<8x1920xf32> to vector<8x1792xf32>
    %81 = vector.extract_strided_slice %80 {offsets = [0, 0], sizes = [8, 1024], strides = [1, 1]} : vector<8x1792xf32> to vector<8x1024xf32>
    %82 = vector.extract_strided_slice %80 {offsets = [0, 128], sizes = [8, 1024], strides = [1, 1]} : vector<8x1792xf32> to vector<8x1024xf32>
    %83 = vector.extract_strided_slice %80 {offsets = [0, 256], sizes = [8, 1024], strides = [1, 1]} : vector<8x1792xf32> to vector<8x1024xf32>
    %84 = vector.extract_strided_slice %80 {offsets = [0, 384], sizes = [8, 1024], strides = [1, 1]} : vector<8x1792xf32> to vector<8x1024xf32>
    %85 = vector.extract_strided_slice %80 {offsets = [0, 512], sizes = [8, 1024], strides = [1, 1]} : vector<8x1792xf32> to vector<8x1024xf32>
    %86 = vector.extract_strided_slice %80 {offsets = [0, 640], sizes = [8, 1024], strides = [1, 1]} : vector<8x1792xf32> to vector<8x1024xf32>
    %87 = vector.extract_strided_slice %80 {offsets = [0, 768], sizes = [8, 1024], strides = [1, 1]} : vector<8x1792xf32> to vector<8x1024xf32>
    %88 = tpu.concatenate %81, %82, %83, %84, %85, %86, %87 in 0 : vector<8x1024xf32>, vector<8x1024xf32>, vector<8x1024xf32>, vector<8x1024xf32>, vector<8x1024xf32>, vector<8x1024xf32>, vector<8x1024xf32> -> vector<56x1024xf32>
    %c2 = arith.constant 2 : index
    %c0_35 = arith.constant 0 : index
    %c0_36 = arith.constant 0 : index
    %89 = vector.load %arg9[%c2, %c0_35, %c0_36] : memref<7x4x56xf32, #tpu.memory_space<vmem>>, vector<1x4x56xf32>
    %90 = vector.shape_cast %89 : vector<1x4x56xf32> to vector<4x56xf32>
    %cst_37 = arith.constant dense<0.000000e+00> : vector<4x1024xf32>
    %91 = tpu.matmul %90, %88, %cst_37 {dimension_numbers = #tpu.dot_dimension_numbers<[1], [0], [0], [1], [0, 0, 1, 1], [], []>} : vector<4x56xf32>, vector<56x1024xf32>, vector<4x1024xf32> -> vector<4x1024xf32>
    %92 = arith.addf %79, %91 : vector<4x1024xf32>
    %93 = vector.extract_strided_slice %52 {offsets = [0, 3], sizes = [8, 1792], strides = [1, 1]} : vector<8x1920xf32> to vector<8x1792xf32>
    %94 = vector.extract_strided_slice %93 {offsets = [0, 0], sizes = [8, 1024], strides = [1, 1]} : vector<8x1792xf32> to vector<8x1024xf32>
    %95 = vector.extract_strided_slice %93 {offsets = [0, 128], sizes = [8, 1024], strides = [1, 1]} : vector<8x1792xf32> to vector<8x1024xf32>
    %96 = vector.extract_strided_slice %93 {offsets = [0, 256], sizes = [8, 1024], strides = [1, 1]} : vector<8x1792xf32> to vector<8x1024xf32>
    %97 = vector.extract_strided_slice %93 {offsets = [0, 384], sizes = [8, 1024], strides = [1, 1]} : vector<8x1792xf32> to vector<8x1024xf32>
    %98 = vector.extract_strided_slice %93 {offsets = [0, 512], sizes = [8, 1024], strides = [1, 1]} : vector<8x1792xf32> to vector<8x1024xf32>
    %99 = vector.extract_strided_slice %93 {offsets = [0, 640], sizes = [8, 1024], strides = [1, 1]} : vector<8x1792xf32> to vector<8x1024xf32>
    %100 = vector.extract_strided_slice %93 {offsets = [0, 768], sizes = [8, 1024], strides = [1, 1]} : vector<8x1792xf32> to vector<8x1024xf32>
    %101 = tpu.concatenate %94, %95, %96, %97, %98, %99, %100 in 0 : vector<8x1024xf32>, vector<8x1024xf32>, vector<8x1024xf32>, vector<8x1024xf32>, vector<8x1024xf32>, vector<8x1024xf32>, vector<8x1024xf32> -> vector<56x1024xf32>
    %c3 = arith.constant 3 : index
    %c0_38 = arith.constant 0 : index
    %c0_39 = arith.constant 0 : index
    %102 = vector.load %arg9[%c3, %c0_38, %c0_39] : memref<7x4x56xf32, #tpu.memory_space<vmem>>, vector<1x4x56xf32>
    %103 = vector.shape_cast %102 : vector<1x4x56xf32> to vector<4x56xf32>
    %cst_40 = arith.constant dense<0.000000e+00> : vector<4x1024xf32>
    %104 = tpu.matmul %103, %101, %cst_40 {dimension_numbers = #tpu.dot_dimension_numbers<[1], [0], [0], [1], [0, 0, 1, 1], [], []>} : vector<4x56xf32>, vector<56x1024xf32>, vector<4x1024xf32> -> vector<4x1024xf32>
    %105 = arith.addf %92, %104 : vector<4x1024xf32>
    %106 = vector.extract_strided_slice %52 {offsets = [0, 4], sizes = [8, 1792], strides = [1, 1]} : vector<8x1920xf32> to vector<8x1792xf32>
    %107 = vector.extract_strided_slice %106 {offsets = [0, 0], sizes = [8, 1024], strides = [1, 1]} : vector<8x1792xf32> to vector<8x1024xf32>
    %108 = vector.extract_strided_slice %106 {offsets = [0, 128], sizes = [8, 1024], strides = [1, 1]} : vector<8x1792xf32> to vector<8x1024xf32>
    %109 = vector.extract_strided_slice %106 {offsets = [0, 256], sizes = [8, 1024], strides = [1, 1]} : vector<8x1792xf32> to vector<8x1024xf32>
    %110 = vector.extract_strided_slice %106 {offsets = [0, 384], sizes = [8, 1024], strides = [1, 1]} : vector<8x1792xf32> to vector<8x1024xf32>
    %111 = vector.extract_strided_slice %106 {offsets = [0, 512], sizes = [8, 1024], strides = [1, 1]} : vector<8x1792xf32> to vector<8x1024xf32>
    %112 = vector.extract_strided_slice %106 {offsets = [0, 640], sizes = [8, 1024], strides = [1, 1]} : vector<8x1792xf32> to vector<8x1024xf32>
    %113 = vector.extract_strided_slice %106 {offsets = [0, 768], sizes = [8, 1024], strides = [1, 1]} : vector<8x1792xf32> to vector<8x1024xf32>
    %114 = tpu.concatenate %107, %108, %109, %110, %111, %112, %113 in 0 : vector<8x1024xf32>, vector<8x1024xf32>, vector<8x1024xf32>, vector<8x1024xf32>, vector<8x1024xf32>, vector<8x1024xf32>, vector<8x1024xf32> -> vector<56x1024xf32>
    %c4 = arith.constant 4 : index
    %c0_41 = arith.constant 0 : index
    %c0_42 = arith.constant 0 : index
    %115 = vector.load %arg9[%c4, %c0_41, %c0_42] : memref<7x4x56xf32, #tpu.memory_space<vmem>>, vector<1x4x56xf32>
    %116 = vector.shape_cast %115 : vector<1x4x56xf32> to vector<4x56xf32>
    %cst_43 = arith.constant dense<0.000000e+00> : vector<4x1024xf32>
    %117 = tpu.matmul %116, %114, %cst_43 {dimension_numbers = #tpu.dot_dimension_numbers<[1], [0], [0], [1], [0, 0, 1, 1], [], []>} : vector<4x56xf32>, vector<56x1024xf32>, vector<4x1024xf32> -> vector<4x1024xf32>
    %118 = arith.addf %105, %117 : vector<4x1024xf32>
    %119 = vector.extract_strided_slice %52 {offsets = [0, 5], sizes = [8, 1792], strides = [1, 1]} : vector<8x1920xf32> to vector<8x1792xf32>
    %120 = vector.extract_strided_slice %119 {offsets = [0, 0], sizes = [8, 1024], strides = [1, 1]} : vector<8x1792xf32> to vector<8x1024xf32>
    %121 = vector.extract_strided_slice %119 {offsets = [0, 128], sizes = [8, 1024], strides = [1, 1]} : vector<8x1792xf32> to vector<8x1024xf32>
    %122 = vector.extract_strided_slice %119 {offsets = [0, 256], sizes = [8, 1024], strides = [1, 1]} : vector<8x1792xf32> to vector<8x1024xf32>
    %123 = vector.extract_strided_slice %119 {offsets = [0, 384], sizes = [8, 1024], strides = [1, 1]} : vector<8x1792xf32> to vector<8x1024xf32>
    %124 = vector.extract_strided_slice %119 {offsets = [0, 512], sizes = [8, 1024], strides = [1, 1]} : vector<8x1792xf32> to vector<8x1024xf32>
    %125 = vector.extract_strided_slice %119 {offsets = [0, 640], sizes = [8, 1024], strides = [1, 1]} : vector<8x1792xf32> to vector<8x1024xf32>
    %126 = vector.extract_strided_slice %119 {offsets = [0, 768], sizes = [8, 1024], strides = [1, 1]} : vector<8x1792xf32> to vector<8x1024xf32>
    %127 = tpu.concatenate %120, %121, %122, %123, %124, %125, %126 in 0 : vector<8x1024xf32>, vector<8x1024xf32>, vector<8x1024xf32>, vector<8x1024xf32>, vector<8x1024xf32>, vector<8x1024xf32>, vector<8x1024xf32> -> vector<56x1024xf32>
    %c5 = arith.constant 5 : index
    %c0_44 = arith.constant 0 : index
    %c0_45 = arith.constant 0 : index
    %128 = vector.load %arg9[%c5, %c0_44, %c0_45] : memref<7x4x56xf32, #tpu.memory_space<vmem>>, vector<1x4x56xf32>
    %129 = vector.shape_cast %128 : vector<1x4x56xf32> to vector<4x56xf32>
    %cst_46 = arith.constant dense<0.000000e+00> : vector<4x1024xf32>
    %130 = tpu.matmul %129, %127, %cst_46 {dimension_numbers = #tpu.dot_dimension_numbers<[1], [0], [0], [1], [0, 0, 1, 1], [], []>} : vector<4x56xf32>, vector<56x1024xf32>, vector<4x1024xf32> -> vector<4x1024xf32>
    %131 = arith.addf %118, %130 : vector<4x1024xf32>
    %132 = vector.extract_strided_slice %52 {offsets = [0, 6], sizes = [8, 1792], strides = [1, 1]} : vector<8x1920xf32> to vector<8x1792xf32>
    %133 = vector.extract_strided_slice %132 {offsets = [0, 0], sizes = [8, 1024], strides = [1, 1]} : vector<8x1792xf32> to vector<8x1024xf32>
    %134 = vector.extract_strided_slice %132 {offsets = [0, 128], sizes = [8, 1024], strides = [1, 1]} : vector<8x1792xf32> to vector<8x1024xf32>
    %135 = vector.extract_strided_slice %132 {offsets = [0, 256], sizes = [8, 1024], strides = [1, 1]} : vector<8x1792xf32> to vector<8x1024xf32>
    %136 = vector.extract_strided_slice %132 {offsets = [0, 384], sizes = [8, 1024], strides = [1, 1]} : vector<8x1792xf32> to vector<8x1024xf32>
    %137 = vector.extract_strided_slice %132 {offsets = [0, 512], sizes = [8, 1024], strides = [1, 1]} : vector<8x1792xf32> to vector<8x1024xf32>
    %138 = vector.extract_strided_slice %132 {offsets = [0, 640], sizes = [8, 1024], strides = [1, 1]} : vector<8x1792xf32> to vector<8x1024xf32>
    %139 = vector.extract_strided_slice %132 {offsets = [0, 768], sizes = [8, 1024], strides = [1, 1]} : vector<8x1792xf32> to vector<8x1024xf32>
    %140 = tpu.concatenate %133, %134, %135, %136, %137, %138, %139 in 0 : vector<8x1024xf32>, vector<8x1024xf32>, vector<8x1024xf32>, vector<8x1024xf32>, vector<8x1024xf32>, vector<8x1024xf32>, vector<8x1024xf32> -> vector<56x1024xf32>
    %c6 = arith.constant 6 : index
    %c0_47 = arith.constant 0 : index
    %c0_48 = arith.constant 0 : index
    %141 = vector.load %arg9[%c6, %c0_47, %c0_48] : memref<7x4x56xf32, #tpu.memory_space<vmem>>, vector<1x4x56xf32>
    %142 = vector.shape_cast %141 : vector<1x4x56xf32> to vector<4x56xf32>
    %cst_49 = arith.constant dense<0.000000e+00> : vector<4x1024xf32>
    %143 = tpu.matmul %142, %140, %cst_49 {dimension_numbers = #tpu.dot_dimension_numbers<[1], [0], [0], [1], [0, 0, 1, 1], [], []>} : vector<4x56xf32>, vector<56x1024xf32>, vector<4x1024xf32> -> vector<4x1024xf32>
    %144 = arith.addf %131, %143 : vector<4x1024xf32>
    %145 = arith.truncf %144 : vector<4x1024xf32> to vector<4x1024xbf16>
    %cst_50 = arith.constant dense<0.000000e+00> : vector<4x256xf32>
    %146 = tpu.matmul %145, %7, %cst_50 {dimension_numbers = #tpu.dot_dimension_numbers<[1], [0], [0], [1], [0, 0, 1, 1], [], []>} : vector<4x1024xbf16>, vector<1024x256xbf16>, vector<4x256xf32> -> vector<4x256xf32>
    %147 = arith.mulf %146, %5 : vector<4x256xf32>
    %cst_51 = arith.constant dense<0.000000e+00> : vector<256xf32>
    %148 = vector.multi_reduction <add>, %147, %cst_51 [0] : vector<4x256xf32> to vector<256xf32>
    %149 = vector.shape_cast %148 : vector<256xf32> to vector<1x256xf32>
    %cst_52 = arith.constant 0.000000e+00 : f32
    %150 = vector.broadcast %cst_52 : f32 to vector<1x256xf32>
    %151 = arith.addf %149, %150 : vector<1x256xf32>
    %cst_53 = arith.constant 0.000000e+00 : f32
    %152 = vector.broadcast %cst_53 : f32 to vector<1x256xf32>
    %153 = arith.subf %152, %151 : vector<1x256xf32>
    %154 = math.exp %153 : vector<1x256xf32>
    %cst_54 = arith.constant 1.000000e+00 : f32
    %155 = vector.broadcast %cst_54 : f32 to vector<1x256xf32>
    %156 = arith.addf %155, %154 : vector<1x256xf32>
    %157 = tpu.reciprocal %156 {approx = true} : vector<1x256xf32> -> vector<1x256xf32>
    %158 = vector.broadcast %157 : vector<1x256xf32> to vector<32x256xf32>
    %159 = arith.mulf %38, %158 : vector<32x256xf32>
    %c0_55 = arith.constant 0 : index
    %c0_56 = arith.constant 0 : index
    %c0_57 = arith.constant 0 : index
    %160 = vector.load %arg10[%c0_55, %c0_56, %c0_57] : memref<1x32x256xf32, #tpu.memory_space<vmem>>, vector<1x32x256xf32>
    %161 = vector.shape_cast %160 : vector<1x32x256xf32> to vector<32x256xf32>
    %162 = vector.shape_cast %159 : vector<32x256xf32> to vector<1x32x256xf32>
    tpu.vector_store %arg10[%c0_55, %c0_56, %c0_57], %162 {strides = array<i32>} : memref<1x32x256xf32, #tpu.memory_space<vmem>>, vector<1x32x256xf32>,
    return
  }
  func.func @transform_0(%arg0: i32) -> (i32, i32, i32) {
    %c0_i32 = arith.constant 0 : i32
    %c0_i32_0 = arith.constant 0 : i32
    %c0_i32_1 = arith.constant 0 : i32
    return %arg0, %c0_i32, %c0_i32_0 : i32, i32, i32
  }
  func.func @transform_1(%arg0: i32) -> (i32, i32) {
    %c0_i32 = arith.constant 0 : i32
    %c0_i32_0 = arith.constant 0 : i32
    %c0_i32_1 = arith.constant 0 : i32
    return %c0_i32, %c0_i32_0 : i32, i32
  }
  func.func @transform_2(%arg0: i32) -> (i32, i32) {
    %c0_i32 = arith.constant 0 : i32
    %c0_i32_0 = arith.constant 0 : i32
    %c0_i32_1 = arith.constant 0 : i32
    return %c0_i32, %c0_i32_0 : i32, i32
  }
  func.func @transform_3(%arg0: i32) -> (i32, i32) {
    %c0_i32 = arith.constant 0 : i32
    %c0_i32_0 = arith.constant 0 : i32
    %c0_i32_1 = arith.constant 0 : i32
    return %c0_i32, %c0_i32_0 : i32, i32
  }
  func.func @transform_4(%arg0: i32) -> (i32, i32) {
    %c0_i32 = arith.constant 0 : i32
    %c0_i32_0 = arith.constant 0 : i32
    %c0_i32_1 = arith.constant 0 : i32
    return %c0_i32, %c0_i32_0 : i32, i32
  }
  func.func @transform_5(%arg0: i32) -> (i32, i32) {
    %c0_i32 = arith.constant 0 : i32
    %c0_i32_0 = arith.constant 0 : i32
    %c0_i32_1 = arith.constant 0 : i32
    return %c0_i32, %c0_i32_0 : i32, i32
  }
  func.func @transform_6(%arg0: i32) -> (i32, i32) {
    %c0_i32 = arith.constant 0 : i32
    %c0_i32_0 = arith.constant 0 : i32
    %c0_i32_1 = arith.constant 0 : i32
    return %c0_i32, %c0_i32_0 : i32, i32
  }
  func.func @transform_7(%arg0: i32) -> (i32, i32) {
    %c0_i32 = arith.constant 0 : i32
    %c0_i32_0 = arith.constant 0 : i32
    %c0_i32_1 = arith.constant 0 : i32
    return %c0_i32, %c0_i32_0 : i32, i32
  }
  func.func @transform_8(%arg0: i32) -> (i32, i32, i32) {
    %c0_i32 = arith.constant 0 : i32
    %c0_i32_0 = arith.constant 0 : i32
    %c0_i32_1 = arith.constant 0 : i32
    %c0_i32_2 = arith.constant 0 : i32
    return %c0_i32, %c0_i32_0, %c0_i32_1 : i32, i32, i32
  }
  func.func @transform_9(%arg0: i32) -> (i32, i32, i32) {
    %c0_i32 = arith.constant 0 : i32
    %c0_i32_0 = arith.constant 0 : i32
    %c0_i32_1 = arith.constant 0 : i32
    return %arg0, %c0_i32, %c0_i32_0 : i32, i32, i32
  }
}

</mosaic_0001>

<llo_original>
// kernel: _lambda_.1
$region0: #{_lambda_.1}
  #allocation0 [shape = 'u32[]', space=smem, size = 0x4, offset = 0x4, fixed_abs, tag = 'smem constant byte address 0x4 - core index']
  #allocation1 [shape = 'u32[72,128]{1,0:T(1,128)}', space=vmem, size = 0x9000, scoped, tag = 'internal scratch']
  %s0 = inlined_call_operand.vmem [shape: f32[2,32,256], index: 0, kind: input, shape index: {}]
  %s1 = inlined_call_operand.vmem [shape: f32[2,32], index: 1, kind: input, shape index: {}]
  %s2 = inlined_call_operand.vmem [shape: f32[2,1], index: 2, kind: input, shape index: {}]
  %s3 = inlined_call_operand.vmem [shape: f32[32,2], index: 3, kind: input, shape index: {}]
  %s4 = inlined_call_operand.vmem [shape: f32[32,1], index: 4, kind: input, shape index: {}]
  %s5 = inlined_call_operand.vmem [shape: f32[8,256], index: 5, kind: input, shape index: {}]
  %s6 = inlined_call_operand.hbm [shape: bf16[256,1920], index: 6, kind: input, shape index: {}]
  %s7 = inlined_call_operand.hbm [shape: bf16[1024,256], index: 7, kind: input, shape index: {}]
  %s8 = inlined_call_operand.vmem [shape: f32[7,4,56], index: 8, kind: input, shape index: {}]
  %s9 = inlined_call_operand.vmem [shape: f32[2,32,256], index: 9, kind: output, shape index: {}]
  %s10 = sld [smem:[#allocation0]]
  $region77: #{_lambda_.1} parent=0
    _
  %s12 = ssub.s32 1, %s10
  %s13 = scalar_select 0, %s12, %s10
  $region1: #{_lambda_.1} parent=0
    #allocation2 [shape = 'u8[983040]{0}', space=vmem, size = 0xf0000, scoped, tag = 'input window, operand 6, single buffered']
    #allocation3 [shape = 's32[2]{0}', space=sflag, size = 0x8, scoped, tag = 'scoped memory for _lambda_.1']
    #allocation4 [shape = 'u8[524288]{0}', space=vmem, size = 0x80000, scoped, tag = 'input window, operand 7, single buffered']
    #allocation5 [shape = 's32[1]{0}', space=sflag, size = 0x4, scoped, tag = 'scoped memory for _lambda_.1']
    %14 = vsyncpa [#allocation3], 0
    %15 = vsyncpa [#allocation5], 0
    loop: start=0, step=1, limit=4
    $region2: #{_lambda_.1} parent=1 // loop_pre_header
      _
    $region3: #{_lambda_.1} parent=1 // loop_header
      %s17 = sphi 0, %s21
      %p18 = scmp.ge.s32.totalorder %s17, 4
      %s27 = sphi 0, %s29
      %s30 = sphi 0, %s27
      %s31 = sphi 0, %s30
      %s47 = sphi 0, %s31
      %s51 = sphi 0, %s51
      %s53 = sphi 0, %s51
      %s54 = sphi 0, %s53
      %s68 = sphi 0, %s54
      %s72 = sphi 0, %s72
      %s74 = sphi 0, %s72
      %s75 = sphi 0, %s74
      %s89 = sphi 0, %s75
      %s93 = sphi 0, %s93
      %s95 = sphi 0, %s93
      %s96 = sphi 0, %s95
      %s110 = sphi 0, %s96
      %s114 = sphi 0, %s114
      %s116 = sphi 0, %s114
      %s117 = sphi 0, %s116
      %s131 = sphi 0, %s117
      %s135 = sphi 0, %s135
      %s137 = sphi 0, %s135
      %s138 = sphi 0, %s137
      %s152 = sphi 0, %s138
      %s156 = sphi 0, %s156
      %s158 = sphi 0, %s156
      %s159 = sphi 0, %s158
      %s173 = sphi 0, %s159
      %s177 = sphi 0, %s177
      %s179 = sphi 0, %s177
      %s180 = sphi 0, %s179
      %s194 = sphi 0, %s180
      %s198 = sphi 0, %s198
      %s200 = sphi 0, %s198
      %s201 = sphi 0, %s200
      %s215 = sphi 0, %s201
      %s221 = sphi 0, %s223
      %s224 = sphi 0, %s221
      %s225 = sphi 0, %s224
      %s241 = sphi 0, %s225
    $region4: #{_lambda_.1} parent=1 // loop_header_branch
      %20 = sbr.rel (%p18) target = $region8
    $region5: #{_lambda_.1} parent=1 // loop_body
      %s22 = ssub.s32 %s17, 1
      %s23 = ssub.s32 %s17, 2
      %s24 = sadd.s32 %s17, 1
      %s25 = ssub.s32 %s17, %s24
      %p26 = scmp.eq.s32.totalorder %s25, 0
      %s28 = sadd.s32 %s27, 1
      %s29 = scalar_select %p26, %s27, %s28
      %p32 = pneg %p26
      %p33 = scmp.eq.s32.totalorder %s17, 1
      %p34 = por %p32, %p33
      %p35 = scmp.ne.s32.totalorder %s27, %s30
      %p36 = scmp.eq.s32.totalorder %s17, 0
      %p37 = por %p35, %p36
      %p38 = scmp.ne.s32.totalorder %s27, %s30
      %p39 = scmp.eq.s32.totalorder %s22, 1
      %p40 = por %p38, %p39
      %p41 = scmp.ne.s32.totalorder %s30, %s31
      %p42 = scmp.eq.s32.totalorder %s22, 0
      %p43 = por %p41, %p42
      %p44 = scmp.ne.s32.totalorder %s30, %s31
      %p45 = scmp.eq.s32.totalorder %s23, 1
      %p46 = por %p44, %p45
      %p48 = scmp.ne.s32.totalorder %s31, %s47
      %p49 = scmp.eq.s32.totalorder %s23, 0
      %p50 = por %p48, %p49
      %s52 = sadd.s32 %s51, 1
      %p55 = scmp.eq.s32.totalorder %s17, 1
      %p56 = scmp.ne.s32.totalorder %s51, %s53
      %p57 = scmp.eq.s32.totalorder %s17, 0
      %p58 = por %p56, %p57
      %p59 = scmp.ne.s32.totalorder %s51, %s53
      %p60 = scmp.eq.s32.totalorder %s22, 1
      %p61 = por %p59, %p60
      %p62 = scmp.ne.s32.totalorder %s53, %s54
      %p63 = scmp.eq.s32.totalorder %s22, 0
      %p64 = por %p62, %p63
      %p65 = scmp.ne.s32.totalorder %s53, %s54
      %p66 = scmp.eq.s32.totalorder %s23, 1
      %p67 = por %p65, %p66
      %p69 = scmp.ne.s32.totalorder %s54, %s68
      %p70 = scmp.eq.s32.totalorder %s23, 0
      %p71 = por %p69, %p70
      %s73 = sadd.s32 %s72, 1
      %p76 = scmp.eq.s32.totalorder %s17, 1
      %p77 = scmp.ne.s32.totalorder %s72, %s74
      %p78 = scmp.eq.s32.totalorder %s17, 0
      %p79 = por %p77, %p78
      %p80 = scmp.ne.s32.totalorder %s72, %s74
      %p81 = scmp.eq.s32.totalorder %s22, 1
      %p82 = por %p80, %p81
      %p83 = scmp.ne.s32.totalorder %s74, %s75
      %p84 = scmp.eq.s32.totalorder %s22, 0
      %p85 = por %p83, %p84
      %p86 = scmp.ne.s32.totalorder %s74, %s75
      %p87 = scmp.eq.s32.totalorder %s23, 1
      %p88 = por %p86, %p87
      %p90 = scmp.ne.s32.totalorder %s75, %s89
      %p91 = scmp.eq.s32.totalorder %s23, 0
      %p92 = por %p90, %p91
      %s94 = sadd.s32 %s93, 1
      %p97 = scmp.eq.s32.totalorder %s17, 1
      %p98 = scmp.ne.s32.totalorder %s93, %s95
      %p99 = scmp.eq.s32.totalorder %s17, 0
      %p100 = por %p98, %p99
      %p101 = scmp.ne.s32.totalorder %s93, %s95
      %p102 = scmp.eq.s32.totalorder %s22, 1
      %p103 = por %p101, %p102
      %p104 = scmp.ne.s32.totalorder %s95, %s96
      %p105 = scmp.eq.s32.totalorder %s22, 0
      %p106 = por %p104, %p105
      %p107 = scmp.ne.s32.totalorder %s95, %s96
      %p108 = scmp.eq.s32.totalorder %s23, 1
      %p109 = por %p107, %p108
      %p111 = scmp.ne.s32.totalorder %s96, %s110
      %p112 = scmp.eq.s32.totalorder %s23, 0
      %p113 = por %p111, %p112
      %s115 = sadd.s32 %s114, 1
      %p118 = scmp.eq.s32.totalorder %s17, 1
      %p119 = scmp.ne.s32.totalorder %s114, %s116
      %p120 = scmp.eq.s32.totalorder %s17, 0
      %p121 = por %p119, %p120
      %p122 = scmp.ne.s32.totalorder %s114, %s116
      %p123 = scmp.eq.s32.totalorder %s22, 1
      %p124 = por %p122, %p123
      %p125 = scmp.ne.s32.totalorder %s116, %s117
      %p126 = scmp.eq.s32.totalorder %s22, 0
      %p127 = por %p125, %p126
      %p128 = scmp.ne.s32.totalorder %s116, %s117
      %p129 = scmp.eq.s32.totalorder %s23, 1
      %p130 = por %p128, %p129
      %p132 = scmp.ne.s32.totalorder %s117, %s131
      %p133 = scmp.eq.s32.totalorder %s23, 0
      %p134 = por %p132, %p133
      %s136 = sadd.s32 %s135, 1
      %p139 = scmp.eq.s32.totalorder %s17, 1
      %p140 = scmp.ne.s32.totalorder %s135, %s137
      %p141 = scmp.eq.s32.totalorder %s17, 0
      %p142 = por %p140, %p141
      %p143 = scmp.ne.s32.totalorder %s135, %s137
      %p144 = scmp.eq.s32.totalorder %s22, 1
      %p145 = por %p143, %p144
      %p146 = scmp.ne.s32.totalorder %s137, %s138
      %p147 = scmp.eq.s32.totalorder %s22, 0
      %p148 = por %p146, %p147
      %p149 = scmp.ne.s32.totalorder %s137, %s138
      %p150 = scmp.eq.s32.totalorder %s23, 1
      %p151 = por %p149, %p150
      %p153 = scmp.ne.s32.totalorder %s138, %s152
      %p154 = scmp.eq.s32.totalorder %s23, 0
      %p155 = por %p153, %p154
      %s157 = sadd.s32 %s156, 1
      %p160 = scmp.eq.s32.totalorder %s17, 1
      %p161 = scmp.ne.s32.totalorder %s156, %s158
      %p162 = scmp.eq.s32.totalorder %s17, 0
      %p163 = por %p161, %p162
      %p164 = scmp.ne.s32.totalorder %s156, %s158
      %p165 = scmp.eq.s32.totalorder %s22, 1
      %p166 = por %p164, %p165
      %p167 = scmp.ne.s32.totalorder %s158, %s159
      %p168 = scmp.eq.s32.totalorder %s22, 0
      %p169 = por %p167, %p168
      %p170 = scmp.ne.s32.totalorder %s158, %s159
      %p171 = scmp.eq.s32.totalorder %s23, 1
      %p172 = por %p170, %p171
      %p174 = scmp.ne.s32.totalorder %s159, %s173
      %p175 = scmp.eq.s32.totalorder %s23, 0
      %p176 = por %p174, %p175
      %s178 = sadd.s32 %s177, 1
      %p181 = scmp.eq.s32.totalorder %s17, 1
      %p182 = scmp.ne.s32.totalorder %s177, %s179
      %p183 = scmp.eq.s32.totalorder %s17, 0
      %p184 = por %p182, %p183
      %p185 = scmp.ne.s32.totalorder %s177, %s179
      %p186 = scmp.eq.s32.totalorder %s22, 1
      %p187 = por %p185, %p186
      %p188 = scmp.ne.s32.totalorder %s179, %s180
      %p189 = scmp.eq.s32.totalorder %s22, 0
      %p190 = por %p188, %p189
      %p191 = scmp.ne.s32.totalorder %s179, %s180
      %p192 = scmp.eq.s32.totalorder %s23, 1
      %p193 = por %p191, %p192
      %p195 = scmp.ne.s32.totalorder %s180, %s194
      %p196 = scmp.eq.s32.totalorder %s23, 0
      %p197 = por %p195, %p196
      %s199 = sadd.s32 %s198, 1
      %p202 = scmp.eq.s32.totalorder %s17, 1
      %p203 = scmp.ne.s32.totalorder %s198, %s200
      %p204 = scmp.eq.s32.totalorder %s17, 0
      %p205 = por %p203, %p204
      %p206 = scmp.ne.s32.totalorder %s198, %s200
      %p207 = scmp.eq.s32.totalorder %s22, 1
      %p208 = por %p206, %p207
      %p209 = scmp.ne.s32.totalorder %s200, %s201
      %p210 = scmp.eq.s32.totalorder %s22, 0
      %p211 = por %p209, %p210
      %p212 = scmp.ne.s32.totalorder %s200, %s201
      %p213 = scmp.eq.s32.totalorder %s23, 1
      %p214 = por %p212, %p213
      %p216 = scmp.ne.s32.totalorder %s201, %s215
      %p217 = scmp.eq.s32.totalorder %s23, 0
      %p218 = por %p216, %p217
      %s219 = ssub.s32 %s17, %s24
      %p220 = scmp.eq.s32.totalorder %s219, 0
      %s222 = sadd.s32 %s221, 1
      %s223 = scalar_select %p220, %s221, %s222
      %p226 = pneg %p220
      %p227 = scmp.eq.s32.totalorder %s17, 1
      %p228 = por %p226, %p227
      %p229 = scmp.ne.s32.totalorder %s221, %s224
      %p230 = scmp.eq.s32.totalorder %s17, 0
      %p231 = por %p229, %p230
      %p232 = scmp.ne.s32.totalorder %s221, %s224
      %p233 = scmp.eq.s32.totalorder %s22, 1
      %p234 = por %p232, %p233
      %p235 = scmp.ne.s32.totalorder %s224, %s225
      %p236 = scmp.eq.s32.totalorder %s22, 0
      %p237 = por %p235, %p236
      %p238 = scmp.ne.s32.totalorder %s224, %s225
      %p239 = scmp.eq.s32.totalorder %s23, 1
      %p240 = por %p238, %p239
      %p242 = scmp.ne.s32.totalorder %s225, %s241
      %p243 = scmp.eq.s32.totalorder %s23, 0
      %p244 = por %p242, %p243
      %p245 = scmp.le.s32.totalorder 1, %s17
      %p246 = scmp.lt.s32.totalorder %s17, 3
      %p247 = pnand %p245, %p246
      %p248 = pneg %p247
      // Predicated region
      $region9: #{_lambda_.1} parent=5 // pred_check
        _
      $region10: #{_lambda_.1} parent=5 // pred_check_branch
        %250 = sbr.rel (%p247) target = $region12
      $region11: #{_lambda_.1} parent=5 // pred_region
        %s251 = ssub.s32 %s17, 1
        // Predicated region
        $region13: #{_lambda_.1} parent=11 // pred_check
          %p252 = pneg %p64
        $region14: #{_lambda_.1} parent=11 // pred_check_branch
          %254 = sbr.rel (%p252) target = $region16
        $region15: #{_lambda_.1} parent=11 // pred_region
          _
        $region16: #{_lambda_.1} parent=11 // pred_fallthru
          _
        // Predicated region
        $region17: #{_lambda_.1} parent=11 // pred_check
          %p255 = pneg %p85
        $region18: #{_lambda_.1} parent=11 // pred_check_branch
          %257 = sbr.rel (%p255) target = $region20
        $region19: #{_lambda_.1} parent=11 // pred_region
          _
        $region20: #{_lambda_.1} parent=11 // pred_fallthru
          _
        // Predicated region
        $region21: #{_lambda_.1} parent=11 // pred_check
          %p258 = pneg %p106
        $region22: #{_lambda_.1} parent=11 // pred_check_branch
          %260 = sbr.rel (%p258) target = $region24
        $region23: #{_lambda_.1} parent=11 // pred_region
          _
        $region24: #{_lambda_.1} parent=11 // pred_fallthru
          _
        // Predicated region
        $region25: #{_lambda_.1} parent=11 // pred_check
          %p261 = pneg %p127
        $region26: #{_lambda_.1} parent=11 // pred_check_branch
          %263 = sbr.rel (%p261) target = $region28
        $region27: #{_lambda_.1} parent=11 // pred_region
          _
        $region28: #{_lambda_.1} parent=11 // pred_fallthru
          _
        // Predicated region
        $region29: #{_lambda_.1} parent=11 // pred_check
          %p264 = pneg %p148
        $region30: #{_lambda_.1} parent=11 // pred_check_branch
          %266 = sbr.rel (%p264) target = $region32
        $region31: #{_lambda_.1} parent=11 // pred_region
          _
        $region32: #{_lambda_.1} parent=11 // pred_fallthru
          _
        // Predicated region
        $region33: #{_lambda_.1} parent=11 // pred_check
          %p267 = pneg %p169
        $region34: #{_lambda_.1} parent=11 // pred_check_branch
          %269 = sbr.rel (%p267) target = $region36
        $region35: #{_lambda_.1} parent=11 // pred_region
          %271 = vsyncadd [#allocation3], 0
          %s272 = sshll.u32 %s6, 4
          %s273 = int_to_ptr.hbm [resolvable:$true] %s272
          %s274 = sshll.u32 [#allocation2], 4
          %s275 = int_to_ptr.vmem [resolvable:$true] %s274
          %280 = dma.hbm_to_vmem [thread:$0]  %s273, 30720, %s275, [#allocation3], 960, 960, 60
        $region36: #{_lambda_.1} parent=11 // pred_fallthru
          _
        // Predicated region
        $region37: #{_lambda_.1} parent=11 // pred_check
          %p281 = pneg %p190
        $region38: #{_lambda_.1} parent=11 // pred_check_branch
          %283 = sbr.rel (%p281) target = $region40
        $region39: #{_lambda_.1} parent=11 // pred_region
          %285 = vsyncadd [#allocation5], 0
          %s286 = sshll.u32 %s7, 4
          %s287 = int_to_ptr.hbm [resolvable:$true] %s286
          %s288 = sshll.u32 [#allocation4], 4
          %s289 = int_to_ptr.vmem [resolvable:$true] %s288
          %294 = dma.hbm_to_vmem [thread:$0]  %s287, 16384, %s289, [#allocation5], 128, 128, 8
        $region40: #{_lambda_.1} parent=11 // pred_fallthru
          _
        // Predicated region
        $region41: #{_lambda_.1} parent=11 // pred_check
          %p295 = pneg %p211
        $region42: #{_lambda_.1} parent=11 // pred_check_branch
          %297 = sbr.rel (%p295) target = $region44
        $region43: #{_lambda_.1} parent=11 // pred_region
          _
        $region44: #{_lambda_.1} parent=11 // pred_fallthru
          _
      $region12: #{_lambda_.1} parent=5 // pred_fallthru
        _
      %p298 = scmp.lt.s32.totalorder %s17, 2
      // Predicated region
      $region45: #{_lambda_.1} parent=5 // pred_check
        %p299 = pneg %p298
      $region46: #{_lambda_.1} parent=5 // pred_check_branch
        %301 = sbr.rel (%p299) target = $region48
      $region47: #{_lambda_.1} parent=5 // pred_region
        // Predicated region
        $region49: #{_lambda_.1} parent=47 // pred_check
          %p302 = pneg %p37
        $region50: #{_lambda_.1} parent=47 // pred_check_branch
          %304 = sbr.rel (%p302) target = $region52
        $region51: #{_lambda_.1} parent=47 // pred_region
          %p305 = scmp.lt.s32.totalorder %s17, 1
          %s306 = scalar_select %p305, %s17, 1
          %s307 = smul.addr %s306, 8
          %s308 = smul.addr %s307, 8
          %s309 = scalar_lea.vmem %s0, %s308
        $region52: #{_lambda_.1} parent=47 // pred_fallthru
          _
      $region48: #{_lambda_.1} parent=5 // pred_fallthru
        _
      %p310 = scmp.le.s32.totalorder 1, %s17
      %p311 = scmp.lt.s32.totalorder %s17, 3
      %p312 = pnand %p310, %p311
      %p313 = pneg %p312
      // Predicated region
      $region53: #{_lambda_.1} parent=5 // pred_check
        _
      $region54: #{_lambda_.1} parent=5 // pred_check_branch
        %315 = sbr.rel (%p312) target = $region56
      $region55: #{_lambda_.1} parent=5 // pred_region
        %s316 = ssub.s32 %s17, 1
        // Predicated region
        $region57: #{_lambda_.1} parent=55 // pred_check
          %p317 = pneg %p169
        $region58: #{_lambda_.1} parent=55 // pred_check_branch
          %319 = sbr.rel (%p317) target = $region60
        $region59: #{_lambda_.1} parent=55 // pred_region
          %321 = dma.done [#allocation3], 30720
        $region60: #{_lambda_.1} parent=55 // pred_fallthru
          _
        // Predicated region
        $region61: #{_lambda_.1} parent=55 // pred_check
          %p322 = pneg %p190
        $region62: #{_lambda_.1} parent=55 // pred_check_branch
          %324 = sbr.rel (%p322) target = $region64
        $region63: #{_lambda_.1} parent=55 // pred_region
          %326 = dma.done [#allocation5], 16384
        $region64: #{_lambda_.1} parent=55 // pred_fallthru
          _
        %p327 = scmp.lt.s32.totalorder %s22, 1
        %s328 = scalar_select %p327, %s22, 1
        %s329 = smul.addr %s328, 8
        %s330 = smul.addr %s329, 8
        %s331 = scalar_lea.vmem %s0, %s330
        %p332 = pneg %p43
        %p333 = pneg %p40
        %p334 = pneg %p64
        %p335 = pneg %p61
        %p336 = pneg %p85
        %p337 = pneg %p82
        %p338 = pneg %p106
        %p339 = pneg %p103
        %p340 = pneg %p127
        %p341 = pneg %p124
        %p342 = pneg %p148
        %p343 = pneg %p145
        %p344 = pneg %p169
        %p345 = pneg %p166
        %p346 = pneg %p190
        %p347 = pneg %p187
        %p348 = pneg %p211
        %p349 = pneg %p208
        %p350 = pneg %p237
        %p351 = pneg %p234
        %p352 = scmp.lt.s32.totalorder %s22, 1
        %s353 = scalar_select %p352, %s22, 1
        %s354 = smul.addr %s353, 8
        %s355 = smul.addr %s354, 8
        %s356 = scalar_lea.vmem %s9, %s355
        %p357 = scmp.lt.s32.totalorder %s22, 1
        %s358 = scalar_select %p357, %s22, 1
        %s359 = smul.addr %s358, 8
        %s360 = smul.addr %s359, 8
        %s361 = scalar_lea.vmem %s0, %s360
        %p362 = scmp.lt.s32.totalorder %s22, 1
        %s363 = scalar_select %p362, %s22, 1
        %s364 = smul.addr %s363, 8
        %s365 = smul.addr %s364, 8
        %s366 = scalar_lea.vmem %s9, %s365
        %v367 = vld [vmem:[%s1] sm:$0x3]
        %v368 = vld [vmem:[%s2] sm:$0x3]
        %v369 = vld [vmem:[%s3] sm:$0xff]
        %v370 = vld [vmem:[%s3 + $0x8] sm:$0xff]
        %v371 = vld [vmem:[%s3 + $0x10] sm:$0xff]
        %v372 = vld [vmem:[%s3 + $0x18] sm:$0xff]
        %v373 = vld [vmem:[%s4] sm:$0xff]
        %v374 = vld [vmem:[%s4 + $0x8] sm:$0xff]
        %v375 = vld [vmem:[%s4 + $0x10] sm:$0xff]
        %v376 = vld [vmem:[%s4 + $0x18] sm:$0xff]
        %v377 = vld [vmem:[%s5] sm:$0xff]
        %v378 = vld [vmem:[%s5 + $0x8] sm:$0xff]
        %v379 = vld [vmem:[#allocation2] sm:$0xff]
        %v380 = vld [vmem:[#allocation2 + $0x8] sm:$0xff]
        %v381 = vld [vmem:[#allocation2 + $0x10] sm:$0xff]
        %v382 = vld [vmem:[#allocation2 + $0x18] sm:$0xff]
        %v383 = vld [vmem:[#allocation2 + $0x20] sm:$0xff]
        %v384 = vld [vmem:[#allocation2 + $0x28] sm:$0xff]
        %v385 = vld [vmem:[#allocation2 + $0x30] sm:$0xff]
        %v386 = vld [vmem:[#allocation2 + $0x38] sm:$0xf]
        %v387 = vld [vmem:[#allocation2 + $0x3c] sm:$0xff]
        %v388 = vld [vmem:[#allocation2 + $0x44] sm:$0xff]
        %v389 = vld [vmem:[#allocation2 + $0x4c] sm:$0xff]
        %v390 = vld [vmem:[#allocation2 + $0x54] sm:$0xff]
        %v391 = vld [vmem:[#allocation2 + $0x5c] sm:$0xff]
        %v392 = vld [vmem:[#allocation2 + $0x64] sm:$0xff]
        %v393 = vld [vmem:[#allocation2 + $0x6c] sm:$0xff]
        %v394 = vld [vmem:[#allocation2 + $0x74] sm:$0xf]
        %v395 = vld [vmem:[#allocation2 + $0x78] sm:$0xff]
        %v396 = vld [vmem:[#allocation2 + $0x80] sm:$0xff]
        %v397 = vld [vmem:[#allocation2 + $0x88] sm:$0xff]
        %v398 = vld [vmem:[#allocation2 + $0x90] sm:$0xff]
        %v399 = vld [vmem:[#allocation2 + $0x98] sm:$0xff]
        %v400 = vld [vmem:[#allocation2 + $0xa0] sm:$0xff]
        %v401 = vld [vmem:[#allocation2 + $0xa8] sm:$0xff]
        %v402 = vld [vmem:[#allocation2 + $0xb0] sm:$0xf]
        %v403 = vld [vmem:[#allocation2 + $0xb4] sm:$0xff]
        %v404 = vld [vmem:[#allocation2 + $0xbc] sm:$0xff]
        %v405 = vld [vmem:[#allocation2 + $0xc4] sm:$0xff]
        %v406 = vld [vmem:[#allocation2 + $0xcc] sm:$0xff]
        %v407 = vld [vmem:[#allocation2 + $0xd4] sm:$0xff]
        %v408 = vld [vmem:[#allocation2 + $0xdc] sm:$0xff]
        %v409 = vld [vmem:[#allocation2 + $0xe4] sm:$0xff]
        %v410 = vld [vmem:[#allocation2 + $0xec] sm:$0xf]
        %v411 = vld [vmem:[#allocation2 + $0xf0] sm:$0xff]
        %v412 = vld [vmem:[#allocation2 + $0xf8] sm:$0xff]
        %v413 = vld [vmem:[#allocation2 + $0x100] sm:$0xff]
        %v414 = vld [vmem:[#allocation2 + $0x108] sm:$0xff]
        %v415 = vld [vmem:[#allocation2 + $0x110] sm:$0xff]
        %v416 = vld [vmem:[#allocation2 + $0x118] sm:$0xff]
        %v417 = vld [vmem:[#allocation2 + $0x120] sm:$0xff]
        %v418 = vld [vmem:[#allocation2 + $0x128] sm:$0xf]
        %v419 = vld [vmem:[#allocation2 + $0x12c] sm:$0xff]
        %v420 = vld [vmem:[#allocation2 + $0x134] sm:$0xff]
        %v421 = vld [vmem:[#allocation2 + $0x13c] sm:$0xff]
        %v422 = vld [vmem:[#allocation2 + $0x144] sm:$0xff]
        %v423 = vld [vmem:[#allocation2 + $0x14c] sm:$0xff]
        %v424 = vld [vmem:[#allocation2 + $0x154] sm:$0xff]
        %v425 = vld [vmem:[#allocation2 + $0x15c] sm:$0xff]
        %v426 = vld [vmem:[#allocation2 + $0x164] sm:$0xf]
        %v427 = vld [vmem:[#allocation2 + $0x168] sm:$0xff]
        %v428 = vld [vmem:[#allocation2 + $0x170] sm:$0xff]
        %v429 = vld [vmem:[#allocation2 + $0x178] sm:$0xff]
        %v430 = vld [vmem:[#allocation2 + $0x180] sm:$0xff]
        %v431 = vld [vmem:[#allocation2 + $0x188] sm:$0xff]
        %v432 = vld [vmem:[#allocation2 + $0x190] sm:$0xff]
        %v433 = vld [vmem:[#allocation2 + $0x198] sm:$0xff]
        %v434 = vld [vmem:[#allocation2 + $0x1a0] sm:$0xf]
        %v435 = vld [vmem:[#allocation2 + $0x1a4] sm:$0xff]
        %v436 = vld [vmem:[#allocation2 + $0x1ac] sm:$0xff]
        %v437 = vld [vmem:[#allocation2 + $0x1b4] sm:$0xff]
        %v438 = vld [vmem:[#allocation2 + $0x1bc] sm:$0xff]
        %v439 = vld [vmem:[#allocation2 + $0x1c4] sm:$0xff]
        %v440 = vld [vmem:[#allocation2 + $0x1cc] sm:$0xff]
        %v441 = vld [vmem:[#allocation2 + $0x1d4] sm:$0xff]
        %v442 = vld [vmem:[#allocation2 + $0x1dc] sm:$0xf]
        %v443 = vld [vmem:[#allocation2 + $0x1e0] sm:$0xff]
        %v444 = vld [vmem:[#allocation2 + $0x1e8] sm:$0xff]
        %v445 = vld [vmem:[#allocation2 + $0x1f0] sm:$0xff]
        %v446 = vld [vmem:[#allocation2 + $0x1f8] sm:$0xff]
        %v447 = vld [vmem:[#allocation2 + $0x200] sm:$0xff]
        %v448 = vld [vmem:[#allocation2 + $0x208] sm:$0xff]
        %v449 = vld [vmem:[#allocation2 + $0x210] sm:$0xff]
        %v450 = vld [vmem:[#allocation2 + $0x218] sm:$0xf]
        %v451 = vld [vmem:[#allocation2 + $0x21c] sm:$0xff]
        %v452 = vld [vmem:[#allocation2 + $0x224] sm:$0xff]
        %v453 = vld [vmem:[#allocation2 + $0x22c] sm:$0xff]
        %v454 = vld [vmem:[#allocation2 + $0x234] sm:$0xff]
        %v455 = vld [vmem:[#allocation2 + $0x23c] sm:$0xff]
        %v456 = vld [vmem:[#allocation2 + $0x244] sm:$0xff]
        %v457 = vld [vmem:[#allocation2 + $0x24c] sm:$0xff]
        %v458 = vld [vmem:[#allocation2 + $0x254] sm:$0xf]
        %v459 = vld [vmem:[#allocation2 + $0x258] sm:$0xff]
        %v460 = vld [vmem:[#allocation2 + $0x260] sm:$0xff]
        %v461 = vld [vmem:[#allocation2 + $0x268] sm:$0xff]
        %v462 = vld [vmem:[#allocation2 + $0x270] sm:$0xff]
        %v463 = vld [vmem:[#allocation2 + $0x278] sm:$0xff]
        %v464 = vld [vmem:[#allocation2 + $0x280] sm:$0xff]
        %v465 = vld [vmem:[#allocation2 + $0x288] sm:$0xff]
        %v466 = vld [vmem:[#allocation2 + $0x290] sm:$0xf]
        %v467 = vld [vmem:[#allocation2 + $0x294] sm:$0xff]
        %v468 = vld [vmem:[#allocation2 + $0x29c] sm:$0xff]
        %v469 = vld [vmem:[#allocation2 + $0x2a4] sm:$0xff]
        %v470 = vld [vmem:[#allocation2 + $0x2ac] sm:$0xff]
        %v471 = vld [vmem:[#allocation2 + $0x2b4] sm:$0xff]
        %v472 = vld [vmem:[#allocation2 + $0x2bc] sm:$0xff]
        %v473 = vld [vmem:[#allocation2 + $0x2c4] sm:$0xff]
        %v474 = vld [vmem:[#allocation2 + $0x2cc] sm:$0xf]
        %v475 = vld [vmem:[#allocation2 + $0x2d0] sm:$0xff]
        %v476 = vld [vmem:[#allocation2 + $0x2d8] sm:$0xff]
        %v477 = vld [vmem:[#allocation2 + $0x2e0] sm:$0xff]
        %v478 = vld [vmem:[#allocation2 + $0x2e8] sm:$0xff]
        %v479 = vld [vmem:[#allocation2 + $0x2f0] sm:$0xff]
        %v480 = vld [vmem:[#allocation2 + $0x2f8] sm:$0xff]
        %v481 = vld [vmem:[#allocation2 + $0x300] sm:$0xff]
        %v482 = vld [vmem:[#allocation2 + $0x308] sm:$0xf]
        %v483 = vld [vmem:[#allocation2 + $0x30c] sm:$0xff]
        %v484 = vld [vmem:[#allocation2 + $0x314] sm:$0xff]
        %v485 = vld [vmem:[#allocation2 + $0x31c] sm:$0xff]
        %v486 = vld [vmem:[#allocation2 + $0x324] sm:$0xff]
        %v487 = vld [vmem:[#allocation2 + $0x32c] sm:$0xff]
        %v488 = vld [vmem:[#allocation2 + $0x334] sm:$0xff]
        %v489 = vld [vmem:[#allocation2 + $0x33c] sm:$0xff]
        %v490 = vld [vmem:[#allocation2 + $0x344] sm:$0xf]
        %v491 = vld [vmem:[#allocation2 + $0x348] sm:$0xff]
        %v492 = vld [vmem:[#allocation2 + $0x350] sm:$0xff]
        %v493 = vld [vmem:[#allocation2 + $0x358] sm:$0xff]
        %v494 = vld [vmem:[#allocation2 + $0x360] sm:$0xff]
        %v495 = vld [vmem:[#allocation2 + $0x368] sm:$0xff]
        %v496 = vld [vmem:[#allocation2 + $0x370] sm:$0xff]
        %v497 = vld [vmem:[#allocation2 + $0x378] sm:$0xff]
        %v498 = vld [vmem:[#allocation2 + $0x380] sm:$0xf]
        %v499 = vld [vmem:[#allocation2 + $0x384] sm:$0xff]
        %v500 = vld [vmem:[#allocation2 + $0x38c] sm:$0xff]
        %v501 = vld [vmem:[#allocation2 + $0x394] sm:$0xff]
        %v502 = vld [vmem:[#allocation2 + $0x39c] sm:$0xff]
        %v503 = vld [vmem:[#allocation2 + $0x3a4] sm:$0xff]
        %v504 = vld [vmem:[#allocation2 + $0x3ac] sm:$0xff]
        %v505 = vld [vmem:[#allocation2 + $0x3b4] sm:$0xff]
        %v506 = vld [vmem:[#allocation2 + $0x3bc] sm:$0xf]
        %v507 = vld [vmem:[#allocation2 + $0x3c0] sm:$0xff]
        %v508 = vld [vmem:[#allocation2 + $0x3c8] sm:$0xff]
        %v509 = vld [vmem:[#allocation2 + $0x3d0] sm:$0xff]
        %v510 = vld [vmem:[#allocation2 + $0x3d8] sm:$0xff]
        %v511 = vld [vmem:[#allocation2 + $0x3e0] sm:$0xff]
        %v512 = vld [vmem:[#allocation2 + $0x3e8] sm:$0xff]
        %v513 = vld [vmem:[#allocation2 + $0x3f0] sm:$0xff]
        %v514 = vld [vmem:[#allocation2 + $0x3f8] sm:$0xf]
        %v515 = vld [vmem:[#allocation2 + $0x3fc] sm:$0xff]
        %v516 = vld [vmem:[#allocation2 + $0x404] sm:$0xff]
        %v517 = vld [vmem:[#allocation2 + $0x40c] sm:$0xff]
        %v518 = vld [vmem:[#allocation2 + $0x414] sm:$0xff]
        %v519 = vld [vmem:[#allocation2 + $0x41c] sm:$0xff]
        %v520 = vld [vmem:[#allocation2 + $0x424] sm:$0xff]
        %v521 = vld [vmem:[#allocation2 + $0x42c] sm:$0xff]
        %v522 = vld [vmem:[#allocation2 + $0x434] sm:$0xf]
        %v523 = vld [vmem:[#allocation2 + $0x438] sm:$0xff]
        %v524 = vld [vmem:[#allocation2 + $0x440] sm:$0xff]
        %v525 = vld [vmem:[#allocation2 + $0x448] sm:$0xff]
        %v526 = vld [vmem:[#allocation2 + $0x450] sm:$0xff]
        %v527 = vld [vmem:[#allocation2 + $0x458] sm:$0xff]
        %v528 = vld [vmem:[#allocation2 + $0x460] sm:$0xff]
        %v529 = vld [vmem:[#allocation2 + $0x468] sm:$0xff]
        %v530 = vld [vmem:[#allocation2 + $0x470] sm:$0xf]
        %v531 = vld [vmem:[#allocation2 + $0x474] sm:$0xff]
        %v532 = vld [vmem:[#allocation2 + $0x47c] sm:$0xff]
        %v533 = vld [vmem:[#allocation2 + $0x484] sm:$0xff]
        %v534 = vld [vmem:[#allocation2 + $0x48c] sm:$0xff]
        %v535 = vld [vmem:[#allocation2 + $0x494] sm:$0xff]
        %v536 = vld [vmem:[#allocation2 + $0x49c] sm:$0xff]
        %v537 = vld [vmem:[#allocation2 + $0x4a4] sm:$0xff]
        %v538 = vld [vmem:[#allocation2 + $0x4ac] sm:$0xf]
        %v539 = vld [vmem:[#allocation2 + $0x4b0] sm:$0xff]
        %v540 = vld [vmem:[#allocation2 + $0x4b8] sm:$0xff]
        %v541 = vld [vmem:[#allocation2 + $0x4c0] sm:$0xff]
        %v542 = vld [vmem:[#allocation2 + $0x4c8] sm:$0xff]
        %v543 = vld [vmem:[#allocation2 + $0x4d0] sm:$0xff]
        %v544 = vld [vmem:[#allocation2 + $0x4d8] sm:$0xff]
        %v545 = vld [vmem:[#allocation2 + $0x4e0] sm:$0xff]
        %v546 = vld [vmem:[#allocation2 + $0x4e8] sm:$0xf]
        %v547 = vld [vmem:[#allocation2 + $0x4ec] sm:$0xff]
        %v548 = vld [vmem:[#allocation2 + $0x4f4] sm:$0xff]
        %v549 = vld [vmem:[#allocation2 + $0x4fc] sm:$0xff]
        %v550 = vld [vmem:[#allocation2 + $0x504] sm:$0xff]
        %v551 = vld [vmem:[#allocation2 + $0x50c] sm:$0xff]
        %v552 = vld [vmem:[#allocation2 + $0x514] sm:$0xff]
        %v553 = vld [vmem:[#allocation2 + $0x51c] sm:$0xff]
        %v554 = vld [vmem:[#allocation2 + $0x524] sm:$0xf]
        %v555 = vld [vmem:[#allocation2 + $0x528] sm:$0xff]
        %v556 = vld [vmem:[#allocation2 + $0x530] sm:$0xff]
        %v557 = vld [vmem:[#allocation2 + $0x538] sm:$0xff]
        %v558 = vld [vmem:[#allocation2 + $0x540] sm:$0xff]
        %v559 = vld [vmem:[#allocation2 + $0x548] sm:$0xff]
        %v560 = vld [vmem:[#allocation2 + $0x550] sm:$0xff]
        %v561 = vld [vmem:[#allocation2 + $0x558] sm:$0xff]
        %v562 = vld [vmem:[#allocation2 + $0x560] sm:$0xf]
        %v563 = vld [vmem:[#allocation2 + $0x564] sm:$0xff]
        %v564 = vld [vmem:[#allocation2 + $0x56c] sm:$0xff]
        %v565 = vld [vmem:[#allocation2 + $0x574] sm:$0xff]
        %v566 = vld [vmem:[#allocation2 + $0x57c] sm:$0xff]
        %v567 = vld [vmem:[#allocation2 + $0x584] sm:$0xff]
        %v568 = vld [vmem:[#allocation2 + $0x58c] sm:$0xff]
        %v569 = vld [vmem:[#allocation2 + $0x594] sm:$0xff]
        %v570 = vld [vmem:[#allocation2 + $0x59c] sm:$0xf]
        %v571 = vld [vmem:[#allocation2 + $0x5a0] sm:$0xff]
        %v572 = vld [vmem:[#allocation2 + $0x5a8] sm:$0xff]
        %v573 = vld [vmem:[#allocation2 + $0x5b0] sm:$0xff]
        %v574 = vld [vmem:[#allocation2 + $0x5b8] sm:$0xff]
        %v575 = vld [vmem:[#allocation2 + $0x5c0] sm:$0xff]
        %v576 = vld [vmem:[#allocation2 + $0x5c8] sm:$0xff]
        %v577 = vld [vmem:[#allocation2 + $0x5d0] sm:$0xff]
        %v578 = vld [vmem:[#allocation2 + $0x5d8] sm:$0xf]
        %v579 = vld [vmem:[#allocation2 + $0x5dc] sm:$0xff]
        %v580 = vld [vmem:[#allocation2 + $0x5e4] sm:$0xff]
        %v581 = vld [vmem:[#allocation2 + $0x5ec] sm:$0xff]
        %v582 = vld [vmem:[#allocation2 + $0x5f4] sm:$0xff]
        %v583 = vld [vmem:[#allocation2 + $0x5fc] sm:$0xff]
        %v584 = vld [vmem:[#allocation2 + $0x604] sm:$0xff]
        %v585 = vld [vmem:[#allocation2 + $0x60c] sm:$0xff]
        %v586 = vld [vmem:[#allocation2 + $0x614] sm:$0xf]
        %v587 = vld [vmem:[#allocation2 + $0x618] sm:$0xff]
        %v588 = vld [vmem:[#allocation2 + $0x620] sm:$0xff]
        %v589 = vld [vmem:[#allocation2 + $0x628] sm:$0xff]
        %v590 = vld [vmem:[#allocation2 + $0x630] sm:$0xff]
        %v591 = vld [vmem:[#allocation2 + $0x638] sm:$0xff]
        %v592 = vld [vmem:[#allocation2 + $0x640] sm:$0xff]
        %v593 = vld [vmem:[#allocation2 + $0x648] sm:$0xff]
        %v594 = vld [vmem:[#allocation2 + $0x650] sm:$0xf]
        %v595 = vld [vmem:[#allocation2 + $0x654] sm:$0xff]
        %v596 = vld [vmem:[#allocation2 + $0x65c] sm:$0xff]
        %v597 = vld [vmem:[#allocation2 + $0x664] sm:$0xff]
        %v598 = vld [vmem:[#allocation2 + $0x66c] sm:$0xff]
        %v599 = vld [vmem:[#allocation2 + $0x674] sm:$0xff]
        %v600 = vld [vmem:[#allocation2 + $0x67c] sm:$0xff]
        %v601 = vld [vmem:[#allocation2 + $0x684] sm:$0xff]
        %v602 = vld [vmem:[#allocation2 + $0x68c] sm:$0xf]
        %v603 = vld [vmem:[#allocation2 + $0x690] sm:$0xff]
        %v604 = vld [vmem:[#allocation2 + $0x698] sm:$0xff]
        %v605 = vld [vmem:[#allocation2 + $0x6a0] sm:$0xff]
        %v606 = vld [vmem:[#allocation2 + $0x6a8] sm:$0xff]
        %v607 = vld [vmem:[#allocation2 + $0x6b0] sm:$0xff]
        %v608 = vld [vmem:[#allocation2 + $0x6b8] sm:$0xff]
        %v609 = vld [vmem:[#allocation2 + $0x6c0] sm:$0xff]
        %v610 = vld [vmem:[#allocation2 + $0x6c8] sm:$0xf]
        %v611 = vld [vmem:[#allocation2 + $0x6cc] sm:$0xff]
        %v612 = vld [vmem:[#allocation2 + $0x6d4] sm:$0xff]
        %v613 = vld [vmem:[#allocation2 + $0x6dc] sm:$0xff]
        %v614 = vld [vmem:[#allocation2 + $0x6e4] sm:$0xff]
        %v615 = vld [vmem:[#allocation2 + $0x6ec] sm:$0xff]
        %v616 = vld [vmem:[#allocation2 + $0x6f4] sm:$0xff]
        %v617 = vld [vmem:[#allocation2 + $0x6fc] sm:$0xff]
        %v618 = vld [vmem:[#allocation2 + $0x704] sm:$0xf]
        %v619 = vld [vmem:[#allocation2 + $0x708] sm:$0xff]
        %v620 = vld [vmem:[#allocation2 + $0x710] sm:$0xff]
        %v621 = vld [vmem:[#allocation2 + $0x718] sm:$0xff]
        %v622 = vld [vmem:[#allocation2 + $0x720] sm:$0xff]
        %v623 = vld [vmem:[#allocation2 + $0x728] sm:$0xff]
        %v624 = vld [vmem:[#allocation2 + $0x730] sm:$0xff]
        %v625 = vld [vmem:[#allocation2 + $0x738] sm:$0xff]
        %v626 = vld [vmem:[#allocation2 + $0x740] sm:$0xf]
        %v627 = vld [vmem:[#allocation2 + $0x744] sm:$0xff]
        %v628 = vld [vmem:[#allocation2 + $0x74c] sm:$0xff]
        %v629 = vld [vmem:[#allocation2 + $0x754] sm:$0xff]
        %v630 = vld [vmem:[#allocation2 + $0x75c] sm:$0xff]
        %v631 = vld [vmem:[#allocation2 + $0x764] sm:$0xff]
        %v632 = vld [vmem:[#allocation2 + $0x76c] sm:$0xff]
        %v633 = vld [vmem:[#allocation2 + $0x774] sm:$0xff]
        %v634 = vld [vmem:[#allocation2 + $0x77c] sm:$0xf]
        %v635 = vld [vmem:[#allocation4] sm:$0xff]
        %v636 = vld [vmem:[#allocation4 + $0x8] sm:$0xff]
        %v637 = vld [vmem:[#allocation4 + $0x10] sm:$0xff]
        %v638 = vld [vmem:[#allocation4 + $0x18] sm:$0xff]
        %v639 = vld [vmem:[#allocation4 + $0x20] sm:$0xff]
        %v640 = vld [vmem:[#allocation4 + $0x28] sm:$0xff]
        %v641 = vld [vmem:[#allocation4 + $0x30] sm:$0xff]
        %v642 = vld [vmem:[#allocation4 + $0x38] sm:$0xff]
        %v643 = vld [vmem:[#allocation4 + $0x40] sm:$0xff]
        %v644 = vld [vmem:[#allocation4 + $0x48] sm:$0xff]
        %v645 = vld [vmem:[#allocation4 + $0x50] sm:$0xff]
        %v646 = vld [vmem:[#allocation4 + $0x58] sm:$0xff]
        %v647 = vld [vmem:[#allocation4 + $0x60] sm:$0xff]
        %v648 = vld [vmem:[#allocation4 + $0x68] sm:$0xff]
        %v649 = vld [vmem:[#allocation4 + $0x70] sm:$0xff]
        %v650 = vld [vmem:[#allocation4 + $0x78] sm:$0xff]
        %v651 = vld [vmem:[#allocation4 + $0x80] sm:$0xff]
        %v652 = vld [vmem:[#allocation4 + $0x88] sm:$0xff]
        %v653 = vld [vmem:[#allocation4 + $0x90] sm:$0xff]
        %v654 = vld [vmem:[#allocation4 + $0x98] sm:$0xff]
        %v655 = vld [vmem:[#allocation4 + $0xa0] sm:$0xff]
        %v656 = vld [vmem:[#allocation4 + $0xa8] sm:$0xff]
        %v657 = vld [vmem:[#allocation4 + $0xb0] sm:$0xff]
        %v658 = vld [vmem:[#allocation4 + $0xb8] sm:$0xff]
        %v659 = vld [vmem:[#allocation4 + $0xc0] sm:$0xff]
        %v660 = vld [vmem:[#allocation4 + $0xc8] sm:$0xff]
        %v661 = vld [vmem:[#allocation4 + $0xd0] sm:$0xff]
        %v662 = vld [vmem:[#allocation4 + $0xd8] sm:$0xff]
        %v663 = vld [vmem:[#allocation4 + $0xe0] sm:$0xff]
        %v664 = vld [vmem:[#allocation4 + $0xe8] sm:$0xff]
        %v665 = vld [vmem:[#allocation4 + $0xf0] sm:$0xff]
        %v666 = vld [vmem:[#allocation4 + $0xf8] sm:$0xff]
        %v667 = vld [vmem:[#allocation4 + $0x100] sm:$0xff]
        %v668 = vld [vmem:[#allocation4 + $0x108] sm:$0xff]
        %v669 = vld [vmem:[#allocation4 + $0x110] sm:$0xff]
        %v670 = vld [vmem:[#allocation4 + $0x118] sm:$0xff]
        %v671 = vld [vmem:[#allocation4 + $0x120] sm:$0xff]
        %v672 = vld [vmem:[#allocation4 + $0x128] sm:$0xff]
        %v673 = vld [vmem:[#allocation4 + $0x130] sm:$0xff]
        %v674 = vld [vmem:[#allocation4 + $0x138] sm:$0xff]
        %v675 = vld [vmem:[#allocation4 + $0x140] sm:$0xff]
        %v676 = vld [vmem:[#allocation4 + $0x148] sm:$0xff]
        %v677 = vld [vmem:[#allocation4 + $0x150] sm:$0xff]
        %v678 = vld [vmem:[#allocation4 + $0x158] sm:$0xff]
        %v679 = vld [vmem:[#allocation4 + $0x160] sm:$0xff]
        %v680 = vld [vmem:[#allocation4 + $0x168] sm:$0xff]
        %v681 = vld [vmem:[#allocation4 + $0x170] sm:$0xff]
        %v682 = vld [vmem:[#allocation4 + $0x178] sm:$0xff]
        %v683 = vld [vmem:[#allocation4 + $0x180] sm:$0xff]
        %v684 = vld [vmem:[#allocation4 + $0x188] sm:$0xff]
        %v685 = vld [vmem:[#allocation4 + $0x190] sm:$0xff]
        %v686 = vld [vmem:[#allocation4 + $0x198] sm:$0xff]
        %v687 = vld [vmem:[#allocation4 + $0x1a0] sm:$0xff]
        %v688 = vld [vmem:[#allocation4 + $0x1a8] sm:$0xff]
        %v689 = vld [vmem:[#allocation4 + $0x1b0] sm:$0xff]
        %v690 = vld [vmem:[#allocation4 + $0x1b8] sm:$0xff]
        %v691 = vld [vmem:[#allocation4 + $0x1c0] sm:$0xff]
        %v692 = vld [vmem:[#allocation4 + $0x1c8] sm:$0xff]
        %v693 = vld [vmem:[#allocation4 + $0x1d0] sm:$0xff]
        %v694 = vld [vmem:[#allocation4 + $0x1d8] sm:$0xff]
        %v695 = vld [vmem:[#allocation4 + $0x1e0] sm:$0xff]
        %v696 = vld [vmem:[#allocation4 + $0x1e8] sm:$0xff]
        %v697 = vld [vmem:[#allocation4 + $0x1f0] sm:$0xff]
        %v698 = vld [vmem:[#allocation4 + $0x1f8] sm:$0xff]
        %v699 = vld [vmem:[#allocation4 + $0x200] sm:$0xff]
        %v700 = vld [vmem:[#allocation4 + $0x208] sm:$0xff]
        %v701 = vld [vmem:[#allocation4 + $0x210] sm:$0xff]
        %v702 = vld [vmem:[#allocation4 + $0x218] sm:$0xff]
        %v703 = vld [vmem:[#allocation4 + $0x220] sm:$0xff]
        %v704 = vld [vmem:[#allocation4 + $0x228] sm:$0xff]
        %v705 = vld [vmem:[#allocation4 + $0x230] sm:$0xff]
        %v706 = vld [vmem:[#allocation4 + $0x238] sm:$0xff]
        %v707 = vld [vmem:[#allocation4 + $0x240] sm:$0xff]
        %v708 = vld [vmem:[#allocation4 + $0x248] sm:$0xff]
        %v709 = vld [vmem:[#allocation4 + $0x250] sm:$0xff]
        %v710 = vld [vmem:[#allocation4 + $0x258] sm:$0xff]
        %v711 = vld [vmem:[#allocation4 + $0x260] sm:$0xff]
        %v712 = vld [vmem:[#allocation4 + $0x268] sm:$0xff]
        %v713 = vld [vmem:[#allocation4 + $0x270] sm:$0xff]
        %v714 = vld [vmem:[#allocation4 + $0x278] sm:$0xff]
        %v715 = vld [vmem:[#allocation4 + $0x280] sm:$0xff]
        %v716 = vld [vmem:[#allocation4 + $0x288] sm:$0xff]
        %v717 = vld [vmem:[#allocation4 + $0x290] sm:$0xff]
        %v718 = vld [vmem:[#allocation4 + $0x298] sm:$0xff]
        %v719 = vld [vmem:[#allocation4 + $0x2a0] sm:$0xff]
        %v720 = vld [vmem:[#allocation4 + $0x2a8] sm:$0xff]
        %v721 = vld [vmem:[#allocation4 + $0x2b0] sm:$0xff]
        %v722 = vld [vmem:[#allocation4 + $0x2b8] sm:$0xff]
        %v723 = vld [vmem:[#allocation4 + $0x2c0] sm:$0xff]
        %v724 = vld [vmem:[#allocation4 + $0x2c8] sm:$0xff]
        %v725 = vld [vmem:[#allocation4 + $0x2d0] sm:$0xff]
        %v726 = vld [vmem:[#allocation4 + $0x2d8] sm:$0xff]
        %v727 = vld [vmem:[#allocation4 + $0x2e0] sm:$0xff]
        %v728 = vld [vmem:[#allocation4 + $0x2e8] sm:$0xff]
        %v729 = vld [vmem:[#allocation4 + $0x2f0] sm:$0xff]
        %v730 = vld [vmem:[#allocation4 + $0x2f8] sm:$0xff]
        %v731 = vld [vmem:[#allocation4 + $0x300] sm:$0xff]
        %v732 = vld [vmem:[#allocation4 + $0x308] sm:$0xff]
        %v733 = vld [vmem:[#allocation4 + $0x310] sm:$0xff]
        %v734 = vld [vmem:[#allocation4 + $0x318] sm:$0xff]
        %v735 = vld [vmem:[#allocation4 + $0x320] sm:$0xff]
        %v736 = vld [vmem:[#allocation4 + $0x328] sm:$0xff]
        %v737 = vld [vmem:[#allocation4 + $0x330] sm:$0xff]
        %v738 = vld [vmem:[#allocation4 + $0x338] sm:$0xff]
        %v739 = vld [vmem:[#allocation4 + $0x340] sm:$0xff]
        %v740 = vld [vmem:[#allocation4 + $0x348] sm:$0xff]
        %v741 = vld [vmem:[#allocation4 + $0x350] sm:$0xff]
        %v742 = vld [vmem:[#allocation4 + $0x358] sm:$0xff]
        %v743 = vld [vmem:[#allocation4 + $0x360] sm:$0xff]
        %v744 = vld [vmem:[#allocation4 + $0x368] sm:$0xff]
        %v745 = vld [vmem:[#allocation4 + $0x370] sm:$0xff]
        %v746 = vld [vmem:[#allocation4 + $0x378] sm:$0xff]
        %v747 = vld [vmem:[#allocation4 + $0x380] sm:$0xff]
        %v748 = vld [vmem:[#allocation4 + $0x388] sm:$0xff]
        %v749 = vld [vmem:[#allocation4 + $0x390] sm:$0xff]
        %v750 = vld [vmem:[#allocation4 + $0x398] sm:$0xff]
        %v751 = vld [vmem:[#allocation4 + $0x3a0] sm:$0xff]
        %v752 = vld [vmem:[#allocation4 + $0x3a8] sm:$0xff]
        %v753 = vld [vmem:[#allocation4 + $0x3b0] sm:$0xff]
        %v754 = vld [vmem:[#allocation4 + $0x3b8] sm:$0xff]
        %v755 = vld [vmem:[#allocation4 + $0x3c0] sm:$0xff]
        %v756 = vld [vmem:[#allocation4 + $0x3c8] sm:$0xff]
        %v757 = vld [vmem:[#allocation4 + $0x3d0] sm:$0xff]
        %v758 = vld [vmem:[#allocation4 + $0x3d8] sm:$0xff]
        %v759 = vld [vmem:[#allocation4 + $0x3e0] sm:$0xff]
        %v760 = vld [vmem:[#allocation4 + $0x3e8] sm:$0xff]
        %v761 = vld [vmem:[#allocation4 + $0x3f0] sm:$0xff]
        %v762 = vld [vmem:[#allocation4 + $0x3f8] sm:$0xff]
        %v763 = vlaneseq
        %v764 = vshrl.u32 %v763, 7
        %vm765 = vcmp.lt.s32.totalorder %v764, 4
        %v766 = vld [vmem:[%s361] sm:$0xff]
        %v767 = vld [vmem:[%s361 + $0x8] sm:$0xff]
        %v768 = vld [vmem:[%s361 + $0x10] sm:$0xff]
        %v769 = vld [vmem:[%s361 + $0x18] sm:$0xff]
        %v770 = vld [vmem:[%s361 + $0x20] sm:$0xff]
        %v771 = vld [vmem:[%s361 + $0x28] sm:$0xff]
        %v772 = vld [vmem:[%s361 + $0x30] sm:$0xff]
        %v773 = vld [vmem:[%s361 + $0x38] sm:$0xff]
        %v774 = vadd.f32 %v766, %v767
        %775 = vadd.xlane.f32.xlu0 %v774
        %v776 = vpop.xlane.xlu0 %775
        %v777 = vadd.f32 %v768, %v769
        %778 = vadd.xlane.f32.xlu0 %v777
        %v779 = vpop.xlane.xlu0 %778
        %v780 = vadd.f32 %v770, %v771
        %781 = vadd.xlane.f32.xlu0 %v780
        %v782 = vpop.xlane.xlu0 %781
        %v783 = vadd.f32 %v772, %v773
        %784 = vadd.xlane.f32.xlu0 %v783
        %v785 = vpop.xlane.xlu0 %784
        %v786 = vrcp.pop 256.0
        %v787 = vmul.f32 256.0, %v786
        %v788 = vsub.f32 1.0, %v787
        %v789 = vmul.f32 %v786, %v788
        %v790 = vadd.f32 %v786, %v789
        %vm791 = vweird.f32 %v786
        %v792 = vsel %vm791, %v786, %v790
        %v793 = vmul.f32 %v776, %v792
        %v794 = vmul.f32 %v779, %v792
        %v795 = vmul.f32 %v782, %v792
        %v796 = vmul.f32 %v785, %v792
        %v797 = vmax.f32 %v766, %v767
        %798 = vmax.xlane.f32.xlu0 %v797
        %v799 = vpop.xlane.xlu0 %798
        %v800 = vmax.f32 %v768, %v769
        %801 = vmax.xlane.f32.xlu0 %v800
        %v802 = vpop.xlane.xlu0 %801
        %v803 = vmax.f32 %v770, %v771
        %804 = vmax.xlane.f32.xlu0 %v803
        %v805 = vpop.xlane.xlu0 %804
        %v806 = vmax.f32 %v772, %v773
        %807 = vmax.xlane.f32.xlu0 %v806
        %v808 = vpop.xlane.xlu0 %807
        %vm809 = vcmask 7168
        %v810 = vsel %vm809, %v793, %v799
        %v811 = vsel %vm809, %v794, %v802
        %v812 = vsel %vm809, %v795, %v805
        %v813 = vsel %vm809, %v796, %v808
        %815 = vset.pattern.permute.xlu0 0
        %816 = vperm.xlu0 %815, %v368
        %v817 = vpop.permute.xlu0 %816
        %vm819 = vcmask 261120
        %v821 = vsel %vm819, %v367, 0
        %823 = vmatpush.msra.mxu0 0.0
        %824 = vmatpush.msra.mxu0 0.0
        %825 = vmatpush.msra.mxu0 0.0
        %826 = vmatpush.msra.mxu0 0.0
        %827 = vmatpush.msra.mxu0 0.0
        %828 = vmatpush.msra.mxu0 0.0
        %829 = vmatpush.msra.mxu0 0.0
        %830 = vmatpush.msra.mxu0 0.0
        %831 = vmatpush.msra.mxu0 0.0
        %832 = vmatpush.msra.mxu0 0.0
        %833 = vmatpush.msra.mxu0 0.0
        %834 = vmatpush.msra.mxu0 0.0
        %835 = vmatpush.msra.mxu0 %v813
        %836 = vmatpush.msra.mxu0 %v812
        %837 = vmatpush.msra.mxu0 %v811
        %838 = vmatpush.msra.mxu0 %v810
        %839 = vmatmul.f32.gmra.mxu0 %v821
        %v840 = vpop.f32.mrf.mxu0
        %v841 = vadd.f32 %v817, %v840
        %842 = vdwg.mxu0
        %v843 = vmax.f32 %v841, 0.0
        %845 = vset.pattern.permute.xlu0 0
        %846 = vperm.xlu0 %845, %v373
        %v847 = vpop.permute.xlu0 %846
        %850 = vset.pattern.permute.xlu0 0
        %851 = vperm.xlu0 %850, %v374
        %v852 = vpop.permute.xlu0 %851
        %855 = vset.pattern.permute.xlu0 0
        %856 = vperm.xlu0 %855, %v375
        %v857 = vpop.permute.xlu0 %856
        %860 = vset.pattern.permute.xlu0 0
        %861 = vperm.xlu0 %860, %v376
        %v862 = vpop.permute.xlu0 %861
        %vm864 = vcmask 15360
        %v866 = vsel %vm864, %v369, 0
        %v869 = vsel %vm864, %v370, 0
        %v872 = vsel %vm864, %v371, 0
        %v875 = vsel %vm864, %v372, 0
        %vm877 = vcmask 1041408
        %v879 = vsel %vm877, %v843, 0
        %881 = vmatpush.msra.mxu0 0.0
        %882 = vmatpush.msra.mxu0 0.0
        %883 = vmatpush.msra.mxu0 0.0
        %884 = vmatpush.msra.mxu0 0.0
        %885 = vmatpush.msra.mxu0 0.0
        %886 = vmatpush.msra.mxu0 0.0
        %887 = vmatpush.msra.mxu0 0.0
        %888 = vmatpush.msra.mxu0 0.0
        %889 = vmatpush.msra.mxu0 0.0
        %890 = vmatpush.msra.mxu0 0.0
        %891 = vmatpush.msra.mxu0 0.0
        %892 = vmatpush.msra.mxu0 0.0
        %893 = vmatpush.msra.mxu0 0.0
        %894 = vmatpush.msra.mxu0 0.0
        %895 = vmatpush.msra.mxu0 0.0
        %896 = vmatpush.msra.mxu0 %v879
        %897 = vmatmul.f32.gmra.mxu0 %v866
        %v898 = vpop.f32.mrf.mxu0
        %v899 = vadd.f32 %v847, %v898
        %900 = vmatmul.f32.gmra.mxu0 %v869
        %v901 = vpop.f32.mrf.mxu0
        %v902 = vadd.f32 %v852, %v901
        %903 = vmatmul.f32.gmra.mxu0 %v872
        %v904 = vpop.f32.mrf.mxu0
        %v905 = vadd.f32 %v857, %v904
        %906 = vmatmul.f32.gmra.mxu0 %v875
        %v907 = vpop.f32.mrf.mxu0
        %v908 = vadd.f32 %v862, %v907
        %909 = vdwg.mxu0
        %914 = vrot.lane.b32.xlu0 %v899, 127
        %v915 = vpop.permute.xlu0 %914
        %916 = vrot.lane.b32.xlu0 %v902, 127
        %v917 = vpop.permute.xlu0 %916
        %918 = vrot.lane.b32.xlu0 %v905, 127
        %v919 = vpop.permute.xlu0 %918
        %920 = vrot.lane.b32.xlu0 %v908, 127
        %v921 = vpop.permute.xlu0 %920
        %v926 = vadd.f32 %v899, %v915
        %v927 = vadd.f32 %v902, %v917
        %v928 = vadd.f32 %v905, %v919
        %v929 = vadd.f32 %v908, %v921
        %v930 = vsub.f32 0.0, %v926
        %v931 = vsub.f32 0.0, %v927
        %v932 = vsub.f32 0.0, %v928
        %v933 = vsub.f32 0.0, %v929
        %v934 = vmul.f32 %v930, 1.442695
        %v935 = vpow.pop %v934
        %v936 = vmul.f32 %v931, 1.442695
        %v937 = vpow.pop %v936
        %v938 = vmul.f32 %v932, 1.442695
        %v939 = vpow.pop %v938
        %v940 = vmul.f32 %v933, 1.442695
        %v941 = vpow.pop %v940
        %v942 = vadd.f32 %v935, 1.0
        %v943 = vadd.f32 %v937, 1.0
        %v944 = vadd.f32 %v939, 1.0
        %v945 = vadd.f32 %v941, 1.0
        %v946 = vrcp.pop %v942
        %v947 = vrcp.pop %v943
        %v948 = vrcp.pop %v944
        %v949 = vrcp.pop %v945
        %951 = vset.pattern.permute.xlu0 0
        %952 = vperm.xlu0 %951, %v946
        %v953 = vpop.permute.xlu0 %952
        %956 = vset.pattern.permute.xlu0 0
        %957 = vperm.xlu0 %956, %v947
        %v958 = vpop.permute.xlu0 %957
        %961 = vset.pattern.permute.xlu0 0
        %962 = vperm.xlu0 %961, %v948
        %v963 = vpop.permute.xlu0 %962
        %966 = vset.pattern.permute.xlu0 0
        %967 = vperm.xlu0 %966, %v949
        %v968 = vpop.permute.xlu0 %967
        %v970 = vmul.f32 %v766, %v953
        %v971 = vmul.f32 %v767, %v953
        %v972 = vmul.f32 %v768, %v958
        %v973 = vmul.f32 %v769, %v958
        %v974 = vmul.f32 %v770, %v963
        %v975 = vmul.f32 %v771, %v963
        %v976 = vmul.f32 %v772, %v968
        %v977 = vmul.f32 %v773, %v968
        %v978 = vmax.f32 %v970, %v974
        %v979 = vmax.f32 %v972, %v976
        %v980 = vmax.f32 %v978, %v979
        %v981 = vrot.slane %v980, 4
        %v982 = vmax.f32 %v980, %v981
        %v983 = vrot.slane %v982, 2
        %v984 = vmax.f32 %v982, %v983
        %v985 = vrot.slane %v984, 1
        %v986 = vmax.f32 %v984, %v985
        %v987 = vmax.f32 %v971, %v975
        %v988 = vmax.f32 %v973, %v977
        %v989 = vmax.f32 %v987, %v988
        %v990 = vrot.slane %v989, 4
        %v991 = vmax.f32 %v989, %v990
        %v992 = vrot.slane %v991, 2
        %v993 = vmax.f32 %v991, %v992
        %v994 = vrot.slane %v993, 1
        %v995 = vmax.f32 %v993, %v994
        %v996 = vadd.f32 %v970, %v972
        %v997 = vadd.f32 %v996, %v974
        %v998 = vadd.f32 %v997, %v976
        %v999 = vrot.slane %v998, 4
        %v1000 = vadd.f32 %v998, %v999
        %v1001 = vrot.slane %v1000, 2
        %v1002 = vadd.f32 %v1000, %v1001
        %v1003 = vrot.slane %v1002, 1
        %v1004 = vadd.f32 %v1002, %v1003
        %v1005 = vadd.f32 %v971, %v973
        %v1006 = vadd.f32 %v1005, %v975
        %v1007 = vadd.f32 %v1006, %v977
        %v1008 = vrot.slane %v1007, 4
        %v1009 = vadd.f32 %v1007, %v1008
        %v1010 = vrot.slane %v1009, 2
        %v1011 = vadd.f32 %v1009, %v1010
        %v1012 = vrot.slane %v1011, 1
        %v1013 = vadd.f32 %v1011, %v1012
        %v1014 = vrcp.pop 32.0
        %v1015 = vmul.f32 32.0, %v1014
        %v1016 = vsub.f32 1.0, %v1015
        %v1017 = vmul.f32 %v1014, %v1016
        %v1018 = vadd.f32 %v1014, %v1017
        %vm1019 = vweird.f32 %v1014
        %v1020 = vsel %vm1019, %v1014, %v1018
        %v1021 = vmul.f32 %v1004, %v1020
        %v1022 = vmul.f32 %v1013, %v1020
        %v1023 = vsel %vm765, %v986, %v1021
        %v1024 = vsel %vm765, %v995, %v1022
        %v1025 = vmul.f32 %v1023, %v377
        %v1026 = vmul.f32 %v1024, %v378
        %v1027 = vpack.c.bf16 %v1025, %v1025
        %v1028 = vpack.c.bf16 %v1026, %v1026
        %v1285 = vunpack.c.l.b16 %v379
        %v1286 = vunpack.c.h.b16 %v379
        %v1287 = vunpack.c.l.b16 %v380
        %v1288 = vunpack.c.h.b16 %v380
        %v1289 = vunpack.c.l.b16 %v381
        %v1290 = vunpack.c.h.b16 %v381
        %v1291 = vunpack.c.l.b16 %v382
        %v1292 = vunpack.c.h.b16 %v382
        %v1293 = vunpack.c.l.b16 %v383
        %v1294 = vunpack.c.h.b16 %v383
        %v1295 = vunpack.c.l.b16 %v384
        %v1296 = vunpack.c.h.b16 %v384
        %v1297 = vunpack.c.l.b16 %v385
        %v1298 = vunpack.c.h.b16 %v385
        %v1299 = vunpack.c.l.b16 %v386
        %v1300 = vunpack.c.l.b16 %v387
        %v1301 = vunpack.c.h.b16 %v387
        %v1302 = vunpack.c.l.b16 %v388
        %v1303 = vunpack.c.h.b16 %v388
        %v1304 = vunpack.c.l.b16 %v389
        %v1305 = vunpack.c.h.b16 %v389
        %v1306 = vunpack.c.l.b16 %v390
        %v1307 = vunpack.c.h.b16 %v390
        %v1308 = vunpack.c.l.b16 %v391
        %v1309 = vunpack.c.h.b16 %v391
        %v1310 = vunpack.c.l.b16 %v392
        %v1311 = vunpack.c.h.b16 %v392
        %v1312 = vunpack.c.l.b16 %v393
        %v1313 = vunpack.c.h.b16 %v393
        %v1314 = vunpack.c.l.b16 %v394
        %v1315 = vunpack.c.l.b16 %v395
        %v1316 = vunpack.c.h.b16 %v395
        %v1317 = vunpack.c.l.b16 %v396
        %v1318 = vunpack.c.h.b16 %v396
        %v1319 = vunpack.c.l.b16 %v397
        %v1320 = vunpack.c.h.b16 %v397
        %v1321 = vunpack.c.l.b16 %v398
        %v1322 = vunpack.c.h.b16 %v398
        %v1323 = vunpack.c.l.b16 %v399
        %v1324 = vunpack.c.h.b16 %v399
        %v1325 = vunpack.c.l.b16 %v400
        %v1326 = vunpack.c.h.b16 %v400
        %v1327 = vunpack.c.l.b16 %v401
        %v1328 = vunpack.c.h.b16 %v401
        %v1329 = vunpack.c.l.b16 %v402
        %v1330 = vunpack.c.l.b16 %v403
        %v1331 = vunpack.c.h.b16 %v403
        %v1332 = vunpack.c.l.b16 %v404
        %v1333 = vunpack.c.h.b16 %v404
        %v1334 = vunpack.c.l.b16 %v405
        %v1335 = vunpack.c.h.b16 %v405
        %v1336 = vunpack.c.l.b16 %v406
        %v1337 = vunpack.c.h.b16 %v406
        %v1338 = vunpack.c.l.b16 %v407
        %v1339 = vunpack.c.h.b16 %v407
        %v1340 = vunpack.c.l.b16 %v408
        %v1341 = vunpack.c.h.b16 %v408
        %v1342 = vunpack.c.l.b16 %v409
        %v1343 = vunpack.c.h.b16 %v409
        %v1344 = vunpack.c.l.b16 %v410
        %v1345 = vunpack.c.l.b16 %v411
        %v1346 = vunpack.c.h.b16 %v411
        %v1347 = vunpack.c.l.b16 %v412
        %v1348 = vunpack.c.h.b16 %v412
        %v1349 = vunpack.c.l.b16 %v413
        %v1350 = vunpack.c.h.b16 %v413
        %v1351 = vunpack.c.l.b16 %v414
        %v1352 = vunpack.c.h.b16 %v414
        %v1353 = vunpack.c.l.b16 %v415
        %v1354 = vunpack.c.h.b16 %v415
        %v1355 = vunpack.c.l.b16 %v416
        %v1356 = vunpack.c.h.b16 %v416
        %v1357 = vunpack.c.l.b16 %v417
        %v1358 = vunpack.c.h.b16 %v417
        %v1359 = vunpack.c.l.b16 %v418
        %v1360 = vunpack.c.l.b16 %v419
        %v1361 = vunpack.c.h.b16 %v419
        %v1362 = vunpack.c.l.b16 %v420
        %v1363 = vunpack.c.h.b16 %v420
        %v1364 = vunpack.c.l.b16 %v421
        %v1365 = vunpack.c.h.b16 %v421
        %v1366 = vunpack.c.l.b16 %v422
        %v1367 = vunpack.c.h.b16 %v422
        %v1368 = vunpack.c.l.b16 %v423
        %v1369 = vunpack.c.h.b16 %v423
        %v1370 = vunpack.c.l.b16 %v424
        %v1371 = vunpack.c.h.b16 %v424
        %v1372 = vunpack.c.l.b16 %v425
        %v1373 = vunpack.c.h.b16 %v425
        %v1374 = vunpack.c.l.b16 %v426
        %v1375 = vunpack.c.l.b16 %v427
        %v1376 = vunpack.c.h.b16 %v427
        %v1377 = vunpack.c.l.b16 %v428
        %v1378 = vunpack.c.h.b16 %v428
        %v1379 = vunpack.c.l.b16 %v429
        %v1380 = vunpack.c.h.b16 %v429
        %v1381 = vunpack.c.l.b16 %v430
        %v1382 = vunpack.c.h.b16 %v430
        %v1383 = vunpack.c.l.b16 %v431
        %v1384 = vunpack.c.h.b16 %v431
        %v1385 = vunpack.c.l.b16 %v432
        %v1386 = vunpack.c.h.b16 %v432
        %v1387 = vunpack.c.l.b16 %v433
        %v1388 = vunpack.c.h.b16 %v433
        %v1389 = vunpack.c.l.b16 %v434
        %v1390 = vunpack.c.l.b16 %v435
        %v1391 = vunpack.c.h.b16 %v435
        %v1392 = vunpack.c.l.b16 %v436
        %v1393 = vunpack.c.h.b16 %v436
        %v1394 = vunpack.c.l.b16 %v437
        %v1395 = vunpack.c.h.b16 %v437
        %v1396 = vunpack.c.l.b16 %v438
        %v1397 = vunpack.c.h.b16 %v438
        %v1398 = vunpack.c.l.b16 %v439
        %v1399 = vunpack.c.h.b16 %v439
        %v1400 = vunpack.c.l.b16 %v440
        %v1401 = vunpack.c.h.b16 %v440
        %v1402 = vunpack.c.l.b16 %v441
        %v1403 = vunpack.c.h.b16 %v441
        %v1404 = vunpack.c.l.b16 %v442
        %v1405 = vunpack.c.l.b16 %v443
        %v1406 = vunpack.c.h.b16 %v443
        %v1407 = vunpack.c.l.b16 %v444
        %v1408 = vunpack.c.h.b16 %v444
        %v1409 = vunpack.c.l.b16 %v445
        %v1410 = vunpack.c.h.b16 %v445
        %v1411 = vunpack.c.l.b16 %v446
        %v1412 = vunpack.c.h.b16 %v446
        %v1413 = vunpack.c.l.b16 %v447
        %v1414 = vunpack.c.h.b16 %v447
        %v1415 = vunpack.c.l.b16 %v448
        %v1416 = vunpack.c.h.b16 %v448
        %v1417 = vunpack.c.l.b16 %v449
        %v1418 = vunpack.c.h.b16 %v449
        %v1419 = vunpack.c.l.b16 %v450
        %v1420 = vunpack.c.l.b16 %v451
        %v1421 = vunpack.c.h.b16 %v451
        %v1422 = vunpack.c.l.b16 %v452
        %v1423 = vunpack.c.h.b16 %v452
        %v1424 = vunpack.c.l.b16 %v453
        %v1425 = vunpack.c.h.b16 %v453
        %v1426 = vunpack.c.l.b16 %v454
        %v1427 = vunpack.c.h.b16 %v454
        %v1428 = vunpack.c.l.b16 %v455
        %v1429 = vunpack.c.h.b16 %v455
        %v1430 = vunpack.c.l.b16 %v456
        %v1431 = vunpack.c.h.b16 %v456
        %v1432 = vunpack.c.l.b16 %v457
        %v1433 = vunpack.c.h.b16 %v457
        %v1434 = vunpack.c.l.b16 %v458
        %v1435 = vunpack.c.l.b16 %v459
        %v1436 = vunpack.c.h.b16 %v459
        %v1437 = vunpack.c.l.b16 %v460
        %v1438 = vunpack.c.h.b16 %v460
        %v1439 = vunpack.c.l.b16 %v461
        %v1440 = vunpack.c.h.b16 %v461
        %v1441 = vunpack.c.l.b16 %v462
        %v1442 = vunpack.c.h.b16 %v462
        %v1443 = vunpack.c.l.b16 %v463
        %v1444 = vunpack.c.h.b16 %v463
        %v1445 = vunpack.c.l.b16 %v464
        %v1446 = vunpack.c.h.b16 %v464
        %v1447 = vunpack.c.l.b16 %v465
        %v1448 = vunpack.c.h.b16 %v465
        %v1449 = vunpack.c.l.b16 %v466
        %v1450 = vunpack.c.l.b16 %v467
        %v1451 = vunpack.c.h.b16 %v467
        %v1452 = vunpack.c.l.b16 %v468
        %v1453 = vunpack.c.h.b16 %v468
        %v1454 = vunpack.c.l.b16 %v469
        %v1455 = vunpack.c.h.b16 %v469
        %v1456 = vunpack.c.l.b16 %v470
        %v1457 = vunpack.c.h.b16 %v470
        %v1458 = vunpack.c.l.b16 %v471
        %v1459 = vunpack.c.h.b16 %v471
        %v1460 = vunpack.c.l.b16 %v472
        %v1461 = vunpack.c.h.b16 %v472
        %v1462 = vunpack.c.l.b16 %v473
        %v1463 = vunpack.c.h.b16 %v473
        %v1464 = vunpack.c.l.b16 %v474
        %v1465 = vunpack.c.l.b16 %v475
        %v1466 = vunpack.c.h.b16 %v475
        %v1467 = vunpack.c.l.b16 %v476
        %v1468 = vunpack.c.h.b16 %v476
        %v1469 = vunpack.c.l.b16 %v477
        %v1470 = vunpack.c.h.b16 %v477
        %v1471 = vunpack.c.l.b16 %v478
        %v1472 = vunpack.c.h.b16 %v478
        %v1473 = vunpack.c.l.b16 %v479
        %v1474 = vunpack.c.h.b16 %v479
        %v1475 = vunpack.c.l.b16 %v480
        %v1476 = vunpack.c.h.b16 %v480
        %v1477 = vunpack.c.l.b16 %v481
        %v1478 = vunpack.c.h.b16 %v481
        %v1479 = vunpack.c.l.b16 %v482
        %v1480 = vunpack.c.l.b16 %v483
        %v1481 = vunpack.c.h.b16 %v483
        %v1482 = vunpack.c.l.b16 %v484
        %v1483 = vunpack.c.h.b16 %v484
        %v1484 = vunpack.c.l.b16 %v485
        %v1485 = vunpack.c.h.b16 %v485
        %v1486 = vunpack.c.l.b16 %v486
        %v1487 = vunpack.c.h.b16 %v486
        %v1488 = vunpack.c.l.b16 %v487
        %v1489 = vunpack.c.h.b16 %v487
        %v1490 = vunpack.c.l.b16 %v488
        %v1491 = vunpack.c.h.b16 %v488
        %v1492 = vunpack.c.l.b16 %v489
        %v1493 = vunpack.c.h.b16 %v489
        %v1494 = vunpack.c.l.b16 %v490
        %v1495 = vunpack.c.l.b16 %v491
        %v1496 = vunpack.c.h.b16 %v491
        %v1497 = vunpack.c.l.b16 %v492
        %v1498 = vunpack.c.h.b16 %v492
        %v1499 = vunpack.c.l.b16 %v493
        %v1500 = vunpack.c.h.b16 %v493
        %v1501 = vunpack.c.l.b16 %v494
        %v1502 = vunpack.c.h.b16 %v494
        %v1503 = vunpack.c.l.b16 %v495
        %v1504 = vunpack.c.h.b16 %v495
        %v1505 = vunpack.c.l.b16 %v496
        %v1506 = vunpack.c.h.b16 %v496
        %v1507 = vunpack.c.l.b16 %v497
        %v1508 = vunpack.c.h.b16 %v497
        %v1509 = vunpack.c.l.b16 %v498
        %v1510 = vunpack.c.l.b16 %v499
        %v1511 = vunpack.c.h.b16 %v499
        %v1512 = vunpack.c.l.b16 %v500
        %v1513 = vunpack.c.h.b16 %v500
        %v1514 = vunpack.c.l.b16 %v501
        %v1515 = vunpack.c.h.b16 %v501
        %v1516 = vunpack.c.l.b16 %v502
        %v1517 = vunpack.c.h.b16 %v502
        %v1518 = vunpack.c.l.b16 %v503
        %v1519 = vunpack.c.h.b16 %v503
        %v1520 = vunpack.c.l.b16 %v504
        %v1521 = vunpack.c.h.b16 %v504
        %v1522 = vunpack.c.l.b16 %v505
        %v1523 = vunpack.c.h.b16 %v505
        %v1524 = vunpack.c.l.b16 %v506
        %v1525 = vunpack.c.l.b16 %v507
        %v1526 = vunpack.c.h.b16 %v507
        %v1527 = vunpack.c.l.b16 %v508
        %v1528 = vunpack.c.h.b16 %v508
        %v1529 = vunpack.c.l.b16 %v509
        %v1530 = vunpack.c.h.b16 %v509
        %v1531 = vunpack.c.l.b16 %v510
        %v1532 = vunpack.c.h.b16 %v510
        %v1533 = vunpack.c.l.b16 %v511
        %v1534 = vunpack.c.h.b16 %v511
        %v1535 = vunpack.c.l.b16 %v512
        %v1536 = vunpack.c.h.b16 %v512
        %v1537 = vunpack.c.l.b16 %v513
        %v1538 = vunpack.c.h.b16 %v513
        %v1539 = vunpack.c.l.b16 %v514
        %v1540 = vunpack.c.l.b16 %v515
        %v1541 = vunpack.c.h.b16 %v515
        %v1542 = vunpack.c.l.b16 %v516
        %v1543 = vunpack.c.h.b16 %v516
        %v1544 = vunpack.c.l.b16 %v517
        %v1545 = vunpack.c.h.b16 %v517
        %v1546 = vunpack.c.l.b16 %v518
        %v1547 = vunpack.c.h.b16 %v518
        %v1548 = vunpack.c.l.b16 %v519
        %v1549 = vunpack.c.h.b16 %v519
        %v1550 = vunpack.c.l.b16 %v520
        %v1551 = vunpack.c.h.b16 %v520
        %v1552 = vunpack.c.l.b16 %v521
        %v1553 = vunpack.c.h.b16 %v521
        %v1554 = vunpack.c.l.b16 %v522
        %v1555 = vunpack.c.l.b16 %v523
        %v1556 = vunpack.c.h.b16 %v523
        %v1557 = vunpack.c.l.b16 %v524
        %v1558 = vunpack.c.h.b16 %v524
        %v1559 = vunpack.c.l.b16 %v525
        %v1560 = vunpack.c.h.b16 %v525
        %v1561 = vunpack.c.l.b16 %v526
        %v1562 = vunpack.c.h.b16 %v526
        %v1563 = vunpack.c.l.b16 %v527
        %v1564 = vunpack.c.h.b16 %v527
        %v1565 = vunpack.c.l.b16 %v528
        %v1566 = vunpack.c.h.b16 %v528
        %v1567 = vunpack.c.l.b16 %v529
        %v1568 = vunpack.c.h.b16 %v529
        %v1569 = vunpack.c.l.b16 %v530
        %v1570 = vunpack.c.l.b16 %v531
        %v1571 = vunpack.c.h.b16 %v531
        %v1572 = vunpack.c.l.b16 %v532
        %v1573 = vunpack.c.h.b16 %v532
        %v1574 = vunpack.c.l.b16 %v533
        %v1575 = vunpack.c.h.b16 %v533
        %v1576 = vunpack.c.l.b16 %v534
        %v1577 = vunpack.c.h.b16 %v534
        %v1578 = vunpack.c.l.b16 %v535
        %v1579 = vunpack.c.h.b16 %v535
        %v1580 = vunpack.c.l.b16 %v536
        %v1581 = vunpack.c.h.b16 %v536
        %v1582 = vunpack.c.l.b16 %v537
        %v1583 = vunpack.c.h.b16 %v537
        %v1584 = vunpack.c.l.b16 %v538
        %v1585 = vunpack.c.l.b16 %v539
        %v1586 = vunpack.c.h.b16 %v539
        %v1587 = vunpack.c.l.b16 %v540
        %v1588 = vunpack.c.h.b16 %v540
        %v1589 = vunpack.c.l.b16 %v541
        %v1590 = vunpack.c.h.b16 %v541
        %v1591 = vunpack.c.l.b16 %v542
        %v1592 = vunpack.c.h.b16 %v542
        %v1593 = vunpack.c.l.b16 %v543
        %v1594 = vunpack.c.h.b16 %v543
        %v1595 = vunpack.c.l.b16 %v544
        %v1596 = vunpack.c.h.b16 %v544
        %v1597 = vunpack.c.l.b16 %v545
        %v1598 = vunpack.c.h.b16 %v545
        %v1599 = vunpack.c.l.b16 %v546
        %v1600 = vunpack.c.l.b16 %v547
        %v1601 = vunpack.c.h.b16 %v547
        %v1602 = vunpack.c.l.b16 %v548
        %v1603 = vunpack.c.h.b16 %v548
        %v1604 = vunpack.c.l.b16 %v549
        %v1605 = vunpack.c.h.b16 %v549
        %v1606 = vunpack.c.l.b16 %v550
        %v1607 = vunpack.c.h.b16 %v550
        %v1608 = vunpack.c.l.b16 %v551
        %v1609 = vunpack.c.h.b16 %v551
        %v1610 = vunpack.c.l.b16 %v552
        %v1611 = vunpack.c.h.b16 %v552
        %v1612 = vunpack.c.l.b16 %v553
        %v1613 = vunpack.c.h.b16 %v553
        %v1614 = vunpack.c.l.b16 %v554
        %v1615 = vunpack.c.l.b16 %v555
        %v1616 = vunpack.c.h.b16 %v555
        %v1617 = vunpack.c.l.b16 %v556
        %v1618 = vunpack.c.h.b16 %v556
        %v1619 = vunpack.c.l.b16 %v557
        %v1620 = vunpack.c.h.b16 %v557
        %v1621 = vunpack.c.l.b16 %v558
        %v1622 = vunpack.c.h.b16 %v558
        %v1623 = vunpack.c.l.b16 %v559
        %v1624 = vunpack.c.h.b16 %v559
        %v1625 = vunpack.c.l.b16 %v560
        %v1626 = vunpack.c.h.b16 %v560
        %v1627 = vunpack.c.l.b16 %v561
        %v1628 = vunpack.c.h.b16 %v561
        %v1629 = vunpack.c.l.b16 %v562
        %v1630 = vunpack.c.l.b16 %v563
        %v1631 = vunpack.c.h.b16 %v563
        %v1632 = vunpack.c.l.b16 %v564
        %v1633 = vunpack.c.h.b16 %v564
        %v1634 = vunpack.c.l.b16 %v565
        %v1635 = vunpack.c.h.b16 %v565
        %v1636 = vunpack.c.l.b16 %v566
        %v1637 = vunpack.c.h.b16 %v566
        %v1638 = vunpack.c.l.b16 %v567
        %v1639 = vunpack.c.h.b16 %v567
        %v1640 = vunpack.c.l.b16 %v568
        %v1641 = vunpack.c.h.b16 %v568
        %v1642 = vunpack.c.l.b16 %v569
        %v1643 = vunpack.c.h.b16 %v569
        %v1644 = vunpack.c.l.b16 %v570
        %v1645 = vunpack.c.l.b16 %v571
        %v1646 = vunpack.c.h.b16 %v571
        %v1647 = vunpack.c.l.b16 %v572
        %v1648 = vunpack.c.h.b16 %v572
        %v1649 = vunpack.c.l.b16 %v573
        %v1650 = vunpack.c.h.b16 %v573
        %v1651 = vunpack.c.l.b16 %v574
        %v1652 = vunpack.c.h.b16 %v574
        %v1653 = vunpack.c.l.b16 %v575
        %v1654 = vunpack.c.h.b16 %v575
        %v1655 = vunpack.c.l.b16 %v576
        %v1656 = vunpack.c.h.b16 %v576
        %v1657 = vunpack.c.l.b16 %v577
        %v1658 = vunpack.c.h.b16 %v577
        %v1659 = vunpack.c.l.b16 %v578
        %v1660 = vunpack.c.l.b16 %v579
        %v1661 = vunpack.c.h.b16 %v579
        %v1662 = vunpack.c.l.b16 %v580
        %v1663 = vunpack.c.h.b16 %v580
        %v1664 = vunpack.c.l.b16 %v581
        %v1665 = vunpack.c.h.b16 %v581
        %v1666 = vunpack.c.l.b16 %v582
        %v1667 = vunpack.c.h.b16 %v582
        %v1668 = vunpack.c.l.b16 %v583
        %v1669 = vunpack.c.h.b16 %v583
        %v1670 = vunpack.c.l.b16 %v584
        %v1671 = vunpack.c.h.b16 %v584
        %v1672 = vunpack.c.l.b16 %v585
        %v1673 = vunpack.c.h.b16 %v585
        %v1674 = vunpack.c.l.b16 %v586
        %v1675 = vunpack.c.l.b16 %v587
        %v1676 = vunpack.c.h.b16 %v587
        %v1677 = vunpack.c.l.b16 %v588
        %v1678 = vunpack.c.h.b16 %v588
        %v1679 = vunpack.c.l.b16 %v589
        %v1680 = vunpack.c.h.b16 %v589
        %v1681 = vunpack.c.l.b16 %v590
        %v1682 = vunpack.c.h.b16 %v590
        %v1683 = vunpack.c.l.b16 %v591
        %v1684 = vunpack.c.h.b16 %v591
        %v1685 = vunpack.c.l.b16 %v592
        %v1686 = vunpack.c.h.b16 %v592
        %v1687 = vunpack.c.l.b16 %v593
        %v1688 = vunpack.c.h.b16 %v593
        %v1689 = vunpack.c.l.b16 %v594
        %v1690 = vunpack.c.l.b16 %v595
        %v1691 = vunpack.c.h.b16 %v595
        %v1692 = vunpack.c.l.b16 %v596
        %v1693 = vunpack.c.h.b16 %v596
        %v1694 = vunpack.c.l.b16 %v597
        %v1695 = vunpack.c.h.b16 %v597
        %v1696 = vunpack.c.l.b16 %v598
        %v1697 = vunpack.c.h.b16 %v598
        %v1698 = vunpack.c.l.b16 %v599
        %v1699 = vunpack.c.h.b16 %v599
        %v1700 = vunpack.c.l.b16 %v600
        %v1701 = vunpack.c.h.b16 %v600
        %v1702 = vunpack.c.l.b16 %v601
        %v1703 = vunpack.c.h.b16 %v601
        %v1704 = vunpack.c.l.b16 %v602
        %v1705 = vunpack.c.l.b16 %v603
        %v1706 = vunpack.c.h.b16 %v603
        %v1707 = vunpack.c.l.b16 %v604
        %v1708 = vunpack.c.h.b16 %v604
        %v1709 = vunpack.c.l.b16 %v605
        %v1710 = vunpack.c.h.b16 %v605
        %v1711 = vunpack.c.l.b16 %v606
        %v1712 = vunpack.c.h.b16 %v606
        %v1713 = vunpack.c.l.b16 %v607
        %v1714 = vunpack.c.h.b16 %v607
        %v1715 = vunpack.c.l.b16 %v608
        %v1716 = vunpack.c.h.b16 %v608
        %v1717 = vunpack.c.l.b16 %v609
        %v1718 = vunpack.c.h.b16 %v609
        %v1719 = vunpack.c.l.b16 %v610
        %v1720 = vunpack.c.l.b16 %v611
        %v1721 = vunpack.c.h.b16 %v611
        %v1722 = vunpack.c.l.b16 %v612
        %v1723 = vunpack.c.h.b16 %v612
        %v1724 = vunpack.c.l.b16 %v613
        %v1725 = vunpack.c.h.b16 %v613
        %v1726 = vunpack.c.l.b16 %v614
        %v1727 = vunpack.c.h.b16 %v614
        %v1728 = vunpack.c.l.b16 %v615
        %v1729 = vunpack.c.h.b16 %v615
        %v1730 = vunpack.c.l.b16 %v616
        %v1731 = vunpack.c.h.b16 %v616
        %v1732 = vunpack.c.l.b16 %v617
        %v1733 = vunpack.c.h.b16 %v617
        %v1734 = vunpack.c.l.b16 %v618
        %v1735 = vunpack.c.l.b16 %v619
        %v1736 = vunpack.c.h.b16 %v619
        %v1737 = vunpack.c.l.b16 %v620
        %v1738 = vunpack.c.h.b16 %v620
        %v1739 = vunpack.c.l.b16 %v621
        %v1740 = vunpack.c.h.b16 %v621
        %v1741 = vunpack.c.l.b16 %v622
        %v1742 = vunpack.c.h.b16 %v622
        %v1743 = vunpack.c.l.b16 %v623
        %v1744 = vunpack.c.h.b16 %v623
        %v1745 = vunpack.c.l.b16 %v624
        %v1746 = vunpack.c.h.b16 %v624
        %v1747 = vunpack.c.l.b16 %v625
        %v1748 = vunpack.c.h.b16 %v625
        %v1749 = vunpack.c.l.b16 %v626
        %v1750 = vunpack.c.l.b16 %v627
        %v1751 = vunpack.c.h.b16 %v627
        %v1752 = vunpack.c.l.b16 %v628
        %v1753 = vunpack.c.h.b16 %v628
        %v1754 = vunpack.c.l.b16 %v629
        %v1755 = vunpack.c.h.b16 %v629
        %v1756 = vunpack.c.l.b16 %v630
        %v1757 = vunpack.c.h.b16 %v630
        %v1758 = vunpack.c.l.b16 %v631
        %v1759 = vunpack.c.h.b16 %v631
        %v1760 = vunpack.c.l.b16 %v632
        %v1761 = vunpack.c.h.b16 %v632
        %v1762 = vunpack.c.l.b16 %v633
        %v1763 = vunpack.c.h.b16 %v633
        %v1764 = vunpack.c.l.b16 %v634
        %v1765 = vpack.c.b16 %v1300, %v1285
        %v1766 = vpack.c.b16 %v1301, %v1286
        %v1767 = vpack.c.b16 %v1302, %v1287
        %v1768 = vpack.c.b16 %v1303, %v1288
        %v1769 = vpack.c.b16 %v1304, %v1289
        %v1770 = vpack.c.b16 %v1305, %v1290
        %v1771 = vpack.c.b16 %v1306, %v1291
        %v1772 = vpack.c.b16 %v1307, %v1292
        %v1773 = vpack.c.b16 %v1308, %v1293
        %v1774 = vpack.c.b16 %v1309, %v1294
        %v1775 = vpack.c.b16 %v1310, %v1295
        %v1776 = vpack.c.b16 %v1311, %v1296
        %v1777 = vpack.c.b16 %v1312, %v1297
        %v1778 = vpack.c.b16 %v1313, %v1298
        %v1779 = vpack.c.b16 %v1314, %v1299
        %v1780 = vpack.c.b16 %v1330, %v1315
        %v1781 = vpack.c.b16 %v1331, %v1316
        %v1782 = vpack.c.b16 %v1332, %v1317
        %v1783 = vpack.c.b16 %v1333, %v1318
        %v1784 = vpack.c.b16 %v1334, %v1319
        %v1785 = vpack.c.b16 %v1335, %v1320
        %v1786 = vpack.c.b16 %v1336, %v1321
        %v1787 = vpack.c.b16 %v1337, %v1322
        %v1788 = vpack.c.b16 %v1338, %v1323
        %v1789 = vpack.c.b16 %v1339, %v1324
        %v1790 = vpack.c.b16 %v1340, %v1325
        %v1791 = vpack.c.b16 %v1341, %v1326
        %v1792 = vpack.c.b16 %v1342, %v1327
        %v1793 = vpack.c.b16 %v1343, %v1328
        %v1794 = vpack.c.b16 %v1344, %v1329
        %v1795 = vpack.c.b16 %v1360, %v1345
        %v1796 = vpack.c.b16 %v1361, %v1346
        %v1797 = vpack.c.b16 %v1362, %v1347
        %v1798 = vpack.c.b16 %v1363, %v1348
        %v1799 = vpack.c.b16 %v1364, %v1349
        %v1800 = vpack.c.b16 %v1365, %v1350
        %v1801 = vpack.c.b16 %v1366, %v1351
        %v1802 = vpack.c.b16 %v1367, %v1352
        %v1803 = vpack.c.b16 %v1368, %v1353
        %v1804 = vpack.c.b16 %v1369, %v1354
        %v1805 = vpack.c.b16 %v1370, %v1355
        %v1806 = vpack.c.b16 %v1371, %v1356
        %v1807 = vpack.c.b16 %v1372, %v1357
        %v1808 = vpack.c.b16 %v1373, %v1358
        %v1809 = vpack.c.b16 %v1374, %v1359
        %v1810 = vpack.c.b16 %v1390, %v1375
        %v1811 = vpack.c.b16 %v1391, %v1376
        %v1812 = vpack.c.b16 %v1392, %v1377
        %v1813 = vpack.c.b16 %v1393, %v1378
        %v1814 = vpack.c.b16 %v1394, %v1379
        %v1815 = vpack.c.b16 %v1395, %v1380
        %v1816 = vpack.c.b16 %v1396, %v1381
        %v1817 = vpack.c.b16 %v1397, %v1382
        %v1818 = vpack.c.b16 %v1398, %v1383
        %v1819 = vpack.c.b16 %v1399, %v1384
        %v1820 = vpack.c.b16 %v1400, %v1385
        %v1821 = vpack.c.b16 %v1401, %v1386
        %v1822 = vpack.c.b16 %v1402, %v1387
        %v1823 = vpack.c.b16 %v1403, %v1388
        %v1824 = vpack.c.b16 %v1404, %v1389
        %v1825 = vpack.c.b16 %v1420, %v1405
        %v1826 = vpack.c.b16 %v1421, %v1406
        %v1827 = vpack.c.b16 %v1422, %v1407
        %v1828 = vpack.c.b16 %v1423, %v1408
        %v1829 = vpack.c.b16 %v1424, %v1409
        %v1830 = vpack.c.b16 %v1425, %v1410
        %v1831 = vpack.c.b16 %v1426, %v1411
        %v1832 = vpack.c.b16 %v1427, %v1412
        %v1833 = vpack.c.b16 %v1428, %v1413
        %v1834 = vpack.c.b16 %v1429, %v1414
        %v1835 = vpack.c.b16 %v1430, %v1415
        %v1836 = vpack.c.b16 %v1431, %v1416
        %v1837 = vpack.c.b16 %v1432, %v1417
        %v1838 = vpack.c.b16 %v1433, %v1418
        %v1839 = vpack.c.b16 %v1434, %v1419
        %v1840 = vpack.c.b16 %v1450, %v1435
        %v1841 = vpack.c.b16 %v1451, %v1436
        %v1842 = vpack.c.b16 %v1452, %v1437
        %v1843 = vpack.c.b16 %v1453, %v1438
        %v1844 = vpack.c.b16 %v1454, %v1439
        %v1845 = vpack.c.b16 %v1455, %v1440
        %v1846 = vpack.c.b16 %v1456, %v1441
        %v1847 = vpack.c.b16 %v1457, %v1442
        %v1848 = vpack.c.b16 %v1458, %v1443
        %v1849 = vpack.c.b16 %v1459, %v1444
        %v1850 = vpack.c.b16 %v1460, %v1445
        %v1851 = vpack.c.b16 %v1461, %v1446
        %v1852 = vpack.c.b16 %v1462, %v1447
        %v1853 = vpack.c.b16 %v1463, %v1448
        %v1854 = vpack.c.b16 %v1464, %v1449
        %v1855 = vpack.c.b16 %v1480, %v1465
        %v1856 = vpack.c.b16 %v1481, %v1466
        %v1857 = vpack.c.b16 %v1482, %v1467
        %v1858 = vpack.c.b16 %v1483, %v1468
        %v1859 = vpack.c.b16 %v1484, %v1469
        %v1860 = vpack.c.b16 %v1485, %v1470
        %v1861 = vpack.c.b16 %v1486, %v1471
        %v1862 = vpack.c.b16 %v1487, %v1472
        %v1863 = vpack.c.b16 %v1488, %v1473
        %v1864 = vpack.c.b16 %v1489, %v1474
        %v1865 = vpack.c.b16 %v1490, %v1475
        %v1866 = vpack.c.b16 %v1491, %v1476
        %v1867 = vpack.c.b16 %v1492, %v1477
        %v1868 = vpack.c.b16 %v1493, %v1478
        %v1869 = vpack.c.b16 %v1494, %v1479
        %v1870 = vpack.c.b16 %v1510, %v1495
        %v1871 = vpack.c.b16 %v1511, %v1496
        %v1872 = vpack.c.b16 %v1512, %v1497
        %v1873 = vpack.c.b16 %v1513, %v1498
        %v1874 = vpack.c.b16 %v1514, %v1499
        %v1875 = vpack.c.b16 %v1515, %v1500
        %v1876 = vpack.c.b16 %v1516, %v1501
        %v1877 = vpack.c.b16 %v1517, %v1502
        %v1878 = vpack.c.b16 %v1518, %v1503
        %v1879 = vpack.c.b16 %v1519, %v1504
        %v1880 = vpack.c.b16 %v1520, %v1505
        %v1881 = vpack.c.b16 %v1521, %v1506
        %v1882 = vpack.c.b16 %v1522, %v1507
        %v1883 = vpack.c.b16 %v1523, %v1508
        %v1884 = vpack.c.b16 %v1524, %v1509
        %v1885 = vpack.c.b16 %v1540, %v1525
        %v1886 = vpack.c.b16 %v1541, %v1526
        %v1887 = vpack.c.b16 %v1542, %v1527
        %v1888 = vpack.c.b16 %v1543, %v1528
        %v1889 = vpack.c.b16 %v1544, %v1529
        %v1890 = vpack.c.b16 %v1545, %v1530
        %v1891 = vpack.c.b16 %v1546, %v1531
        %v1892 = vpack.c.b16 %v1547, %v1532
        %v1893 = vpack.c.b16 %v1548, %v1533
        %v1894 = vpack.c.b16 %v1549, %v1534
        %v1895 = vpack.c.b16 %v1550, %v1535
        %v1896 = vpack.c.b16 %v1551, %v1536
        %v1897 = vpack.c.b16 %v1552, %v1537
        %v1898 = vpack.c.b16 %v1553, %v1538
        %v1899 = vpack.c.b16 %v1554, %v1539
        %v1900 = vpack.c.b16 %v1570, %v1555
        %v1901 = vpack.c.b16 %v1571, %v1556
        %v1902 = vpack.c.b16 %v1572, %v1557
        %v1903 = vpack.c.b16 %v1573, %v1558
        %v1904 = vpack.c.b16 %v1574, %v1559
        %v1905 = vpack.c.b16 %v1575, %v1560
        %v1906 = vpack.c.b16 %v1576, %v1561
        %v1907 = vpack.c.b16 %v1577, %v1562
        %v1908 = vpack.c.b16 %v1578, %v1563
        %v1909 = vpack.c.b16 %v1579, %v1564
        %v1910 = vpack.c.b16 %v1580, %v1565
        %v1911 = vpack.c.b16 %v1581, %v1566
        %v1912 = vpack.c.b16 %v1582, %v1567
        %v1913 = vpack.c.b16 %v1583, %v1568
        %v1914 = vpack.c.b16 %v1584, %v1569
        %v1915 = vpack.c.b16 %v1600, %v1585
        %v1916 = vpack.c.b16 %v1601, %v1586
        %v1917 = vpack.c.b16 %v1602, %v1587
        %v1918 = vpack.c.b16 %v1603, %v1588
        %v1919 = vpack.c.b16 %v1604, %v1589
        %v1920 = vpack.c.b16 %v1605, %v1590
        %v1921 = vpack.c.b16 %v1606, %v1591
        %v1922 = vpack.c.b16 %v1607, %v1592
        %v1923 = vpack.c.b16 %v1608, %v1593
        %v1924 = vpack.c.b16 %v1609, %v1594
        %v1925 = vpack.c.b16 %v1610, %v1595
        %v1926 = vpack.c.b16 %v1611, %v1596
        %v1927 = vpack.c.b16 %v1612, %v1597
        %v1928 = vpack.c.b16 %v1613, %v1598
        %v1929 = vpack.c.b16 %v1614, %v1599
        %v1930 = vpack.c.b16 %v1630, %v1615
        %v1931 = vpack.c.b16 %v1631, %v1616
        %v1932 = vpack.c.b16 %v1632, %v1617
        %v1933 = vpack.c.b16 %v1633, %v1618
        %v1934 = vpack.c.b16 %v1634, %v1619
        %v1935 = vpack.c.b16 %v1635, %v1620
        %v1936 = vpack.c.b16 %v1636, %v1621
        %v1937 = vpack.c.b16 %v1637, %v1622
        %v1938 = vpack.c.b16 %v1638, %v1623
        %v1939 = vpack.c.b16 %v1639, %v1624
        %v1940 = vpack.c.b16 %v1640, %v1625
        %v1941 = vpack.c.b16 %v1641, %v1626
        %v1942 = vpack.c.b16 %v1642, %v1627
        %v1943 = vpack.c.b16 %v1643, %v1628
        %v1944 = vpack.c.b16 %v1644, %v1629
        %v1945 = vpack.c.b16 %v1660, %v1645
        %v1946 = vpack.c.b16 %v1661, %v1646
        %v1947 = vpack.c.b16 %v1662, %v1647
        %v1948 = vpack.c.b16 %v1663, %v1648
        %v1949 = vpack.c.b16 %v1664, %v1649
        %v1950 = vpack.c.b16 %v1665, %v1650
        %v1951 = vpack.c.b16 %v1666, %v1651
        %v1952 = vpack.c.b16 %v1667, %v1652
        %v1953 = vpack.c.b16 %v1668, %v1653
        %v1954 = vpack.c.b16 %v1669, %v1654
        %v1955 = vpack.c.b16 %v1670, %v1655
        %v1956 = vpack.c.b16 %v1671, %v1656
        %v1957 = vpack.c.b16 %v1672, %v1657
        %v1958 = vpack.c.b16 %v1673, %v1658
        %v1959 = vpack.c.b16 %v1674, %v1659
        %v1960 = vpack.c.b16 %v1690, %v1675
        %v1961 = vpack.c.b16 %v1691, %v1676
        %v1962 = vpack.c.b16 %v1692, %v1677
        %v1963 = vpack.c.b16 %v1693, %v1678
        %v1964 = vpack.c.b16 %v1694, %v1679
        %v1965 = vpack.c.b16 %v1695, %v1680
        %v1966 = vpack.c.b16 %v1696, %v1681
        %v1967 = vpack.c.b16 %v1697, %v1682
        %v1968 = vpack.c.b16 %v1698, %v1683
        %v1969 = vpack.c.b16 %v1699, %v1684
        %v1970 = vpack.c.b16 %v1700, %v1685
        %v1971 = vpack.c.b16 %v1701, %v1686
        %v1972 = vpack.c.b16 %v1702, %v1687
        %v1973 = vpack.c.b16 %v1703, %v1688
        %v1974 = vpack.c.b16 %v1704, %v1689
        %v1975 = vpack.c.b16 %v1720, %v1705
        %v1976 = vpack.c.b16 %v1721, %v1706
        %v1977 = vpack.c.b16 %v1722, %v1707
        %v1978 = vpack.c.b16 %v1723, %v1708
        %v1979 = vpack.c.b16 %v1724, %v1709
        %v1980 = vpack.c.b16 %v1725, %v1710
        %v1981 = vpack.c.b16 %v1726, %v1711
        %v1982 = vpack.c.b16 %v1727, %v1712
        %v1983 = vpack.c.b16 %v1728, %v1713
        %v1984 = vpack.c.b16 %v1729, %v1714
        %v1985 = vpack.c.b16 %v1730, %v1715
        %v1986 = vpack.c.b16 %v1731, %v1716
        %v1987 = vpack.c.b16 %v1732, %v1717
        %v1988 = vpack.c.b16 %v1733, %v1718
        %v1989 = vpack.c.b16 %v1734, %v1719
        %v1990 = vpack.c.b16 %v1750, %v1735
        %v1991 = vpack.c.b16 %v1751, %v1736
        %v1992 = vpack.c.b16 %v1752, %v1737
        %v1993 = vpack.c.b16 %v1753, %v1738
        %v1994 = vpack.c.b16 %v1754, %v1739
        %v1995 = vpack.c.b16 %v1755, %v1740
        %v1996 = vpack.c.b16 %v1756, %v1741
        %v1997 = vpack.c.b16 %v1757, %v1742
        %v1998 = vpack.c.b16 %v1758, %v1743
        %v1999 = vpack.c.b16 %v1759, %v1744
        %v2000 = vpack.c.b16 %v1760, %v1745
        %v2001 = vpack.c.b16 %v1761, %v1746
        %v2002 = vpack.c.b16 %v1762, %v1747
        %v2003 = vpack.c.b16 %v1763, %v1748
        %v2004 = vpack.c.b16 %v1764, %v1749
        %2245 = vmatpush.bf16.msra.mxu0 %v1870
        %2246 = vmatpush.bf16.msra.mxu0 %v1855
        %2247 = vmatpush.bf16.msra.mxu0 %v1840
        %2248 = vmatpush.bf16.msra.mxu0 %v1825
        %2249 = vmatpush.bf16.msra.mxu0 %v1810
        %2250 = vmatpush.bf16.msra.mxu0 %v1795
        %2251 = vmatpush.bf16.msra.mxu0 %v1780
        %2252 = vmatpush.bf16.msra.mxu0 %v1765
        %2253 = vmatmul.bf16.gmra.mxu0 %v1027
        %v2254 = vpop.f32.mrf.mxu0
        %v2255 = vadd.f32 0.0, %v2254
        %v2256 = vpop.f32.mrf.mxu0
        %2257 = vdwg.mxu0
        %2258 = vmatpush.bf16.msra.mxu0 %v1990
        %2259 = vmatpush.bf16.msra.mxu0 %v1975
        %2260 = vmatpush.bf16.msra.mxu0 %v1960
        %2261 = vmatpush.bf16.msra.mxu0 %v1945
        %2262 = vmatpush.bf16.msra.mxu0 %v1930
        %2263 = vmatpush.bf16.msra.mxu0 %v1915
        %2264 = vmatpush.bf16.msra.mxu0 %v1900
        %2265 = vmatpush.bf16.msra.mxu0 %v1885
        %2266 = vmatmul.bf16.gmra.mxu0 %v1028
        %v2267 = vpop.f32.mrf.mxu0
        %v2268 = vadd.f32 %v2255, %v2267
        %v2269 = vpop.f32.mrf.mxu0
        %2270 = vdwg.mxu0
        %2271 = vmatpush.bf16.msra.mxu0 %v1871
        %2272 = vmatpush.bf16.msra.mxu0 %v1856
        %2273 = vmatpush.bf16.msra.mxu0 %v1841
        %2274 = vmatpush.bf16.msra.mxu0 %v1826
        %2275 = vmatpush.bf16.msra.mxu0 %v1811
        %2276 = vmatpush.bf16.msra.mxu0 %v1796
        %2277 = vmatpush.bf16.msra.mxu0 %v1781
        %2278 = vmatpush.bf16.msra.mxu0 %v1766
        %2279 = vmatmul.bf16.gmra.mxu0 %v1027
        %v2280 = vpop.f32.mrf.mxu0
        %v2281 = vadd.f32 0.0, %v2280
        %v2282 = vpop.f32.mrf.mxu0
        %2283 = vdwg.mxu0
        %2284 = vmatpush.bf16.msra.mxu0 %v1991
        %2285 = vmatpush.bf16.msra.mxu0 %v1976
        %2286 = vmatpush.bf16.msra.mxu0 %v1961
        %2287 = vmatpush.bf16.msra.mxu0 %v1946
        %2288 = vmatpush.bf16.msra.mxu0 %v1931
        %2289 = vmatpush.bf16.msra.mxu0 %v1916
        %2290 = vmatpush.bf16.msra.mxu0 %v1901
        %2291 = vmatpush.bf16.msra.mxu0 %v1886
        %2292 = vmatmul.bf16.gmra.mxu0 %v1028
        %v2293 = vpop.f32.mrf.mxu0
        %v2294 = vadd.f32 %v2281, %v2293
        %v2295 = vpop.f32.mrf.mxu0
        %2296 = vdwg.mxu0
        %2297 = vmatpush.bf16.msra.mxu0 %v1872
        %2298 = vmatpush.bf16.msra.mxu0 %v1857
        %2299 = vmatpush.bf16.msra.mxu0 %v1842
        %2300 = vmatpush.bf16.msra.mxu0 %v1827
        %2301 = vmatpush.bf16.msra.mxu0 %v1812
        %2302 = vmatpush.bf16.msra.mxu0 %v1797
        %2303 = vmatpush.bf16.msra.mxu0 %v1782
        %2304 = vmatpush.bf16.msra.mxu0 %v1767
        %2305 = vmatmul.bf16.gmra.mxu0 %v1027
        %v2306 = vpop.f32.mrf.mxu0
        %v2307 = vadd.f32 0.0, %v2306
        %v2308 = vpop.f32.mrf.mxu0
        %2309 = vdwg.mxu0
        %2310 = vmatpush.bf16.msra.mxu0 %v1992
        %2311 = vmatpush.bf16.msra.mxu0 %v1977
        %2312 = vmatpush.bf16.msra.mxu0 %v1962
        %2313 = vmatpush.bf16.msra.mxu0 %v1947
        %2314 = vmatpush.bf16.msra.mxu0 %v1932
        %2315 = vmatpush.bf16.msra.mxu0 %v1917
        %2316 = vmatpush.bf16.msra.mxu0 %v1902
        %2317 = vmatpush.bf16.msra.mxu0 %v1887
        %2318 = vmatmul.bf16.gmra.mxu0 %v1028
        %v2319 = vpop.f32.mrf.mxu0
        %v2320 = vadd.f32 %v2307, %v2319
        %v2321 = vpop.f32.mrf.mxu0
        %2322 = vdwg.mxu0
        %2323 = vmatpush.bf16.msra.mxu0 %v1873
        %2324 = vmatpush.bf16.msra.mxu0 %v1858
        %2325 = vmatpush.bf16.msra.mxu0 %v1843
        %2326 = vmatpush.bf16.msra.mxu0 %v1828
        %2327 = vmatpush.bf16.msra.mxu0 %v1813
        %2328 = vmatpush.bf16.msra.mxu0 %v1798
        %2329 = vmatpush.bf16.msra.mxu0 %v1783
        %2330 = vmatpush.bf16.msra.mxu0 %v1768
        %2331 = vmatmul.bf16.gmra.mxu0 %v1027
        %v2332 = vpop.f32.mrf.mxu0
        %v2333 = vadd.f32 0.0, %v2332
        %v2334 = vpop.f32.mrf.mxu0
        %2335 = vdwg.mxu0
        %2336 = vmatpush.bf16.msra.mxu0 %v1993
        %2337 = vmatpush.bf16.msra.mxu0 %v1978
        %2338 = vmatpush.bf16.msra.mxu0 %v1963
        %2339 = vmatpush.bf16.msra.mxu0 %v1948
        %2340 = vmatpush.bf16.msra.mxu0 %v1933
        %2341 = vmatpush.bf16.msra.mxu0 %v1918
        %2342 = vmatpush.bf16.msra.mxu0 %v1903
        %2343 = vmatpush.bf16.msra.mxu0 %v1888
        %2344 = vmatmul.bf16.gmra.mxu0 %v1028
        %v2345 = vpop.f32.mrf.mxu0
        %v2346 = vadd.f32 %v2333, %v2345
        %v2347 = vpop.f32.mrf.mxu0
        %2348 = vdwg.mxu0
        %2349 = vmatpush.bf16.msra.mxu0 %v1874
        %2350 = vmatpush.bf16.msra.mxu0 %v1859
        %2351 = vmatpush.bf16.msra.mxu0 %v1844
        %2352 = vmatpush.bf16.msra.mxu0 %v1829
        %2353 = vmatpush.bf16.msra.mxu0 %v1814
        %2354 = vmatpush.bf16.msra.mxu0 %v1799
        %2355 = vmatpush.bf16.msra.mxu0 %v1784
        %2356 = vmatpush.bf16.msra.mxu0 %v1769
        %2357 = vmatmul.bf16.gmra.mxu0 %v1027
        %v2358 = vpop.f32.mrf.mxu0
        %v2359 = vadd.f32 0.0, %v2358
        %v2360 = vpop.f32.mrf.mxu0
        %2361 = vdwg.mxu0
        %2362 = vmatpush.bf16.msra.mxu0 %v1994
        %2363 = vmatpush.bf16.msra.mxu0 %v1979
        %2364 = vmatpush.bf16.msra.mxu0 %v1964
        %2365 = vmatpush.bf16.msra.mxu0 %v1949
        %2366 = vmatpush.bf16.msra.mxu0 %v1934
        %2367 = vmatpush.bf16.msra.mxu0 %v1919
        %2368 = vmatpush.bf16.msra.mxu0 %v1904
        %2369 = vmatpush.bf16.msra.mxu0 %v1889
        %2370 = vmatmul.bf16.gmra.mxu0 %v1028
        %v2371 = vpop.f32.mrf.mxu0
        %v2372 = vadd.f32 %v2359, %v2371
        %v2373 = vpop.f32.mrf.mxu0
        %2374 = vdwg.mxu0
        %2375 = vmatpush.bf16.msra.mxu0 %v1875
        %2376 = vmatpush.bf16.msra.mxu0 %v1860
        %2377 = vmatpush.bf16.msra.mxu0 %v1845
        %2378 = vmatpush.bf16.msra.mxu0 %v1830
        %2379 = vmatpush.bf16.msra.mxu0 %v1815
        %2380 = vmatpush.bf16.msra.mxu0 %v1800
        %2381 = vmatpush.bf16.msra.mxu0 %v1785
        %2382 = vmatpush.bf16.msra.mxu0 %v1770
        %2383 = vmatmul.bf16.gmra.mxu0 %v1027
        %v2384 = vpop.f32.mrf.mxu0
        %v2385 = vadd.f32 0.0, %v2384
        %v2386 = vpop.f32.mrf.mxu0
        %2387 = vdwg.mxu0
        %2388 = vmatpush.bf16.msra.mxu0 %v1995
        %2389 = vmatpush.bf16.msra.mxu0 %v1980
        %2390 = vmatpush.bf16.msra.mxu0 %v1965
        %2391 = vmatpush.bf16.msra.mxu0 %v1950
        %2392 = vmatpush.bf16.msra.mxu0 %v1935
        %2393 = vmatpush.bf16.msra.mxu0 %v1920
        %2394 = vmatpush.bf16.msra.mxu0 %v1905
        %2395 = vmatpush.bf16.msra.mxu0 %v1890
        %2396 = vmatmul.bf16.gmra.mxu0 %v1028
        %v2397 = vpop.f32.mrf.mxu0
        %v2398 = vadd.f32 %v2385, %v2397
        %v2399 = vpop.f32.mrf.mxu0
        %2400 = vdwg.mxu0
        %2401 = vmatpush.bf16.msra.mxu0 %v1876
        %2402 = vmatpush.bf16.msra.mxu0 %v1861
        %2403 = vmatpush.bf16.msra.mxu0 %v1846
        %2404 = vmatpush.bf16.msra.mxu0 %v1831
        %2405 = vmatpush.bf16.msra.mxu0 %v1816
        %2406 = vmatpush.bf16.msra.mxu0 %v1801
        %2407 = vmatpush.bf16.msra.mxu0 %v1786
        %2408 = vmatpush.bf16.msra.mxu0 %v1771
        %2409 = vmatmul.bf16.gmra.mxu0 %v1027
        %v2410 = vpop.f32.mrf.mxu0
        %v2411 = vadd.f32 0.0, %v2410
        %v2412 = vpop.f32.mrf.mxu0
        %2413 = vdwg.mxu0
        %2414 = vmatpush.bf16.msra.mxu0 %v1996
        %2415 = vmatpush.bf16.msra.mxu0 %v1981
        %2416 = vmatpush.bf16.msra.mxu0 %v1966
        %2417 = vmatpush.bf16.msra.mxu0 %v1951
        %2418 = vmatpush.bf16.msra.mxu0 %v1936
        %2419 = vmatpush.bf16.msra.mxu0 %v1921
        %2420 = vmatpush.bf16.msra.mxu0 %v1906
        %2421 = vmatpush.bf16.msra.mxu0 %v1891
        %2422 = vmatmul.bf16.gmra.mxu0 %v1028
        %v2423 = vpop.f32.mrf.mxu0
        %v2424 = vadd.f32 %v2411, %v2423
        %v2425 = vpop.f32.mrf.mxu0
        %2426 = vdwg.mxu0
        %2427 = vmatpush.bf16.msra.mxu0 %v1877
        %2428 = vmatpush.bf16.msra.mxu0 %v1862
        %2429 = vmatpush.bf16.msra.mxu0 %v1847
        %2430 = vmatpush.bf16.msra.mxu0 %v1832
        %2431 = vmatpush.bf16.msra.mxu0 %v1817
        %2432 = vmatpush.bf16.msra.mxu0 %v1802
        %2433 = vmatpush.bf16.msra.mxu0 %v1787
        %2434 = vmatpush.bf16.msra.mxu0 %v1772
        %2435 = vmatmul.bf16.gmra.mxu0 %v1027
        %v2436 = vpop.f32.mrf.mxu0
        %v2437 = vadd.f32 0.0, %v2436
        %v2438 = vpop.f32.mrf.mxu0
        %2439 = vdwg.mxu0
        %2440 = vmatpush.bf16.msra.mxu0 %v1997
        %2441 = vmatpush.bf16.msra.mxu0 %v1982
        %2442 = vmatpush.bf16.msra.mxu0 %v1967
        %2443 = vmatpush.bf16.msra.mxu0 %v1952
        %2444 = vmatpush.bf16.msra.mxu0 %v1937
        %2445 = vmatpush.bf16.msra.mxu0 %v1922
        %2446 = vmatpush.bf16.msra.mxu0 %v1907
        %2447 = vmatpush.bf16.msra.mxu0 %v1892
        %2448 = vmatmul.bf16.gmra.mxu0 %v1028
        %v2449 = vpop.f32.mrf.mxu0
        %v2450 = vadd.f32 %v2437, %v2449
        %v2451 = vpop.f32.mrf.mxu0
        %2452 = vdwg.mxu0
        %2453 = vmatpush.bf16.msra.mxu0 %v1878
        %2454 = vmatpush.bf16.msra.mxu0 %v1863
        %2455 = vmatpush.bf16.msra.mxu0 %v1848
        %2456 = vmatpush.bf16.msra.mxu0 %v1833
        %2457 = vmatpush.bf16.msra.mxu0 %v1818
        %2458 = vmatpush.bf16.msra.mxu0 %v1803
        %2459 = vmatpush.bf16.msra.mxu0 %v1788
        %2460 = vmatpush.bf16.msra.mxu0 %v1773
        %2461 = vmatmul.bf16.gmra.mxu0 %v1027
        %v2462 = vpop.f32.mrf.mxu0
        %v2463 = vadd.f32 0.0, %v2462
        %v2464 = vpop.f32.mrf.mxu0
        %2465 = vdwg.mxu0
        %2466 = vmatpush.bf16.msra.mxu0 %v1998
        %2467 = vmatpush.bf16.msra.mxu0 %v1983
        %2468 = vmatpush.bf16.msra.mxu0 %v1968
        %2469 = vmatpush.bf16.msra.mxu0 %v1953
        %2470 = vmatpush.bf16.msra.mxu0 %v1938
        %2471 = vmatpush.bf16.msra.mxu0 %v1923
        %2472 = vmatpush.bf16.msra.mxu0 %v1908
        %2473 = vmatpush.bf16.msra.mxu0 %v1893
        %2474 = vmatmul.bf16.gmra.mxu0 %v1028
        %v2475 = vpop.f32.mrf.mxu0
        %v2476 = vadd.f32 %v2463, %v2475
        %v2477 = vpop.f32.mrf.mxu0
        %2478 = vdwg.mxu0
        %2479 = vmatpush.bf16.msra.mxu0 %v1879
        %2480 = vmatpush.bf16.msra.mxu0 %v1864
        %2481 = vmatpush.bf16.msra.mxu0 %v1849
        %2482 = vmatpush.bf16.msra.mxu0 %v1834
        %2483 = vmatpush.bf16.msra.mxu0 %v1819
        %2484 = vmatpush.bf16.msra.mxu0 %v1804
        %2485 = vmatpush.bf16.msra.mxu0 %v1789
        %2486 = vmatpush.bf16.msra.mxu0 %v1774
        %2487 = vmatmul.bf16.gmra.mxu0 %v1027
        %v2488 = vpop.f32.mrf.mxu0
        %v2489 = vadd.f32 0.0, %v2488
        %v2490 = vpop.f32.mrf.mxu0
        %2491 = vdwg.mxu0
        %2492 = vmatpush.bf16.msra.mxu0 %v1999
        %2493 = vmatpush.bf16.msra.mxu0 %v1984
        %2494 = vmatpush.bf16.msra.mxu0 %v1969
        %2495 = vmatpush.bf16.msra.mxu0 %v1954
        %2496 = vmatpush.bf16.msra.mxu0 %v1939
        %2497 = vmatpush.bf16.msra.mxu0 %v1924
        %2498 = vmatpush.bf16.msra.mxu0 %v1909
        %2499 = vmatpush.bf16.msra.mxu0 %v1894
        %2500 = vmatmul.bf16.gmra.mxu0 %v1028
        %v2501 = vpop.f32.mrf.mxu0
        %v2502 = vadd.f32 %v2489, %v2501
        %v2503 = vpop.f32.mrf.mxu0
        %2504 = vdwg.mxu0
        %2505 = vmatpush.bf16.msra.mxu0 %v1880
        %2506 = vmatpush.bf16.msra.mxu0 %v1865
        %2507 = vmatpush.bf16.msra.mxu0 %v1850
        %2508 = vmatpush.bf16.msra.mxu0 %v1835
        %2509 = vmatpush.bf16.msra.mxu0 %v1820
        %2510 = vmatpush.bf16.msra.mxu0 %v1805
        %2511 = vmatpush.bf16.msra.mxu0 %v1790
        %2512 = vmatpush.bf16.msra.mxu0 %v1775
        %2513 = vmatmul.bf16.gmra.mxu0 %v1027
        %v2514 = vpop.f32.mrf.mxu0
        %v2515 = vadd.f32 0.0, %v2514
        %v2516 = vpop.f32.mrf.mxu0
        %2517 = vdwg.mxu0
        %2518 = vmatpush.bf16.msra.mxu0 %v2000
        %2519 = vmatpush.bf16.msra.mxu0 %v1985
        %2520 = vmatpush.bf16.msra.mxu0 %v1970
        %2521 = vmatpush.bf16.msra.mxu0 %v1955
        %2522 = vmatpush.bf16.msra.mxu0 %v1940
        %2523 = vmatpush.bf16.msra.mxu0 %v1925
        %2524 = vmatpush.bf16.msra.mxu0 %v1910
        %2525 = vmatpush.bf16.msra.mxu0 %v1895
        %2526 = vmatmul.bf16.gmra.mxu0 %v1028
        %v2527 = vpop.f32.mrf.mxu0
        %v2528 = vadd.f32 %v2515, %v2527
        %v2529 = vpop.f32.mrf.mxu0
        %2530 = vdwg.mxu0
        %2531 = vmatpush.bf16.msra.mxu0 %v1881
        %2532 = vmatpush.bf16.msra.mxu0 %v1866
        %2533 = vmatpush.bf16.msra.mxu0 %v1851
        %2534 = vmatpush.bf16.msra.mxu0 %v1836
        %2535 = vmatpush.bf16.msra.mxu0 %v1821
        %2536 = vmatpush.bf16.msra.mxu0 %v1806
        %2537 = vmatpush.bf16.msra.mxu0 %v1791
        %2538 = vmatpush.bf16.msra.mxu0 %v1776
        %2539 = vmatmul.bf16.gmra.mxu0 %v1027
        %v2540 = vpop.f32.mrf.mxu0
        %v2541 = vadd.f32 0.0, %v2540
        %v2542 = vpop.f32.mrf.mxu0
        %2543 = vdwg.mxu0
        %2544 = vmatpush.bf16.msra.mxu0 %v2001
        %2545 = vmatpush.bf16.msra.mxu0 %v1986
        %2546 = vmatpush.bf16.msra.mxu0 %v1971
        %2547 = vmatpush.bf16.msra.mxu0 %v1956
        %2548 = vmatpush.bf16.msra.mxu0 %v1941
        %2549 = vmatpush.bf16.msra.mxu0 %v1926
        %2550 = vmatpush.bf16.msra.mxu0 %v1911
        %2551 = vmatpush.bf16.msra.mxu0 %v1896
        %2552 = vmatmul.bf16.gmra.mxu0 %v1028
        %v2553 = vpop.f32.mrf.mxu0
        %v2554 = vadd.f32 %v2541, %v2553
        %v2555 = vpop.f32.mrf.mxu0
        %2556 = vdwg.mxu0
        %2557 = vmatpush.bf16.msra.mxu0 %v1882
        %2558 = vmatpush.bf16.msra.mxu0 %v1867
        %2559 = vmatpush.bf16.msra.mxu0 %v1852
        %2560 = vmatpush.bf16.msra.mxu0 %v1837
        %2561 = vmatpush.bf16.msra.mxu0 %v1822
        %2562 = vmatpush.bf16.msra.mxu0 %v1807
        %2563 = vmatpush.bf16.msra.mxu0 %v1792
        %2564 = vmatpush.bf16.msra.mxu0 %v1777
        %2565 = vmatmul.bf16.gmra.mxu0 %v1027
        %v2566 = vpop.f32.mrf.mxu0
        %v2567 = vadd.f32 0.0, %v2566
        %v2568 = vpop.f32.mrf.mxu0
        %2569 = vdwg.mxu0
        %2570 = vmatpush.bf16.msra.mxu0 %v2002
        %2571 = vmatpush.bf16.msra.mxu0 %v1987
        %2572 = vmatpush.bf16.msra.mxu0 %v1972
        %2573 = vmatpush.bf16.msra.mxu0 %v1957
        %2574 = vmatpush.bf16.msra.mxu0 %v1942
        %2575 = vmatpush.bf16.msra.mxu0 %v1927
        %2576 = vmatpush.bf16.msra.mxu0 %v1912
        %2577 = vmatpush.bf16.msra.mxu0 %v1897
        %2578 = vmatmul.bf16.gmra.mxu0 %v1028
        %v2579 = vpop.f32.mrf.mxu0
        %v2580 = vadd.f32 %v2567, %v2579
        %v2581 = vpop.f32.mrf.mxu0
        %2582 = vdwg.mxu0
        %2583 = vmatpush.bf16.msra.mxu0 %v1883
        %2584 = vmatpush.bf16.msra.mxu0 %v1868
        %2585 = vmatpush.bf16.msra.mxu0 %v1853
        %2586 = vmatpush.bf16.msra.mxu0 %v1838
        %2587 = vmatpush.bf16.msra.mxu0 %v1823
        %2588 = vmatpush.bf16.msra.mxu0 %v1808
        %2589 = vmatpush.bf16.msra.mxu0 %v1793
        %2590 = vmatpush.bf16.msra.mxu0 %v1778
        %2591 = vmatmul.bf16.gmra.mxu0 %v1027
        %v2592 = vpop.f32.mrf.mxu0
        %v2593 = vadd.f32 0.0, %v2592
        %v2594 = vpop.f32.mrf.mxu0
        %2595 = vdwg.mxu0
        %2596 = vmatpush.bf16.msra.mxu0 %v2003
        %2597 = vmatpush.bf16.msra.mxu0 %v1988
        %2598 = vmatpush.bf16.msra.mxu0 %v1973
        %2599 = vmatpush.bf16.msra.mxu0 %v1958
        %2600 = vmatpush.bf16.msra.mxu0 %v1943
        %2601 = vmatpush.bf16.msra.mxu0 %v1928
        %2602 = vmatpush.bf16.msra.mxu0 %v1913
        %2603 = vmatpush.bf16.msra.mxu0 %v1898
        %2604 = vmatmul.bf16.gmra.mxu0 %v1028
        %v2605 = vpop.f32.mrf.mxu0
        %v2606 = vadd.f32 %v2593, %v2605
        %v2607 = vpop.f32.mrf.mxu0
        %2608 = vdwg.mxu0
        %2609 = vmatpush.bf16.msra.mxu0 %v1884
        %2610 = vmatpush.bf16.msra.mxu0 %v1869
        %2611 = vmatpush.bf16.msra.mxu0 %v1854
        %2612 = vmatpush.bf16.msra.mxu0 %v1839
        %2613 = vmatpush.bf16.msra.mxu0 %v1824
        %2614 = vmatpush.bf16.msra.mxu0 %v1809
        %2615 = vmatpush.bf16.msra.mxu0 %v1794
        %2616 = vmatpush.bf16.msra.mxu0 %v1779
        %2617 = vmatmul.bf16.gmra.mxu0 %v1027
        %v2618 = vpop.f32.mrf.mxu0
        %v2619 = vadd.f32 0.0, %v2618
        %v2620 = vpop.f32.mrf.mxu0
        %2621 = vdwg.mxu0
        %2622 = vmatpush.bf16.msra.mxu0 %v2004
        %2623 = vmatpush.bf16.msra.mxu0 %v1989
        %2624 = vmatpush.bf16.msra.mxu0 %v1974
        %2625 = vmatpush.bf16.msra.mxu0 %v1959
        %2626 = vmatpush.bf16.msra.mxu0 %v1944
        %2627 = vmatpush.bf16.msra.mxu0 %v1929
        %2628 = vmatpush.bf16.msra.mxu0 %v1914
        %2629 = vmatpush.bf16.msra.mxu0 %v1899
        %2630 = vmatmul.bf16.gmra.mxu0 %v1028
        %v2631 = vpop.f32.mrf.mxu0
        %v2632 = vadd.f32 %v2619, %v2631
        %v2633 = vpop.f32.mrf.mxu0
        %2634 = vdwg.mxu0
        %v2635 = vld [vmem:[%s8] sm:$0xf]
        %s2636 = scalar_lea.vmem %s8, 4
        %v2637 = vld [vmem:[%s2636] sm:$0xf]
        %2653 = vrot.lane.b32.xlu0 %v2268, 127
        %v2654 = vpop.permute.xlu0 %2653
        %2655 = vrot.lane.b32.xlu0 %v2294, 127
        %v2656 = vpop.permute.xlu0 %2655
        %2657 = vrot.lane.b32.xlu0 %v2320, 127
        %v2658 = vpop.permute.xlu0 %2657
        %2659 = vrot.lane.b32.xlu0 %v2346, 127
        %v2660 = vpop.permute.xlu0 %2659
        %2661 = vrot.lane.b32.xlu0 %v2372, 127
        %v2662 = vpop.permute.xlu0 %2661
        %2663 = vrot.lane.b32.xlu0 %v2398, 127
        %v2664 = vpop.permute.xlu0 %2663
        %2665 = vrot.lane.b32.xlu0 %v2424, 127
        %v2666 = vpop.permute.xlu0 %2665
        %2667 = vrot.lane.b32.xlu0 %v2450, 127
        %v2668 = vpop.permute.xlu0 %2667
        %2669 = vrot.lane.b32.xlu0 %v2476, 127
        %v2670 = vpop.permute.xlu0 %2669
        %2671 = vrot.lane.b32.xlu0 %v2502, 127
        %v2672 = vpop.permute.xlu0 %2671
        %2673 = vrot.lane.b32.xlu0 %v2528, 127
        %v2674 = vpop.permute.xlu0 %2673
        %2675 = vrot.lane.b32.xlu0 %v2554, 127
        %v2676 = vpop.permute.xlu0 %2675
        %2677 = vrot.lane.b32.xlu0 %v2580, 127
        %v2678 = vpop.permute.xlu0 %2677
        %2679 = vrot.lane.b32.xlu0 %v2606, 127
        %v2680 = vpop.permute.xlu0 %2679
        %2681 = vrot.lane.b32.xlu0 %v2632, 127
        %v2682 = vpop.permute.xlu0 %2681
        %vm2683 = vcmask 1039360
        %v2684 = vsel %vm2683, %v2654, %v2656
        %v2685 = vsel %vm2683, %v2656, %v2658
        %v2686 = vsel %vm2683, %v2658, %v2660
        %v2687 = vsel %vm2683, %v2660, %v2662
        %v2688 = vsel %vm2683, %v2662, %v2664
        %v2689 = vsel %vm2683, %v2664, %v2666
        %v2690 = vsel %vm2683, %v2666, %v2668
        %v2691 = vsel %vm2683, %v2668, %v2670
        %v2692 = vsel %vm2683, %v2670, %v2672
        %v2693 = vsel %vm2683, %v2672, %v2674
        %v2694 = vsel %vm2683, %v2674, %v2676
        %v2695 = vsel %vm2683, %v2676, %v2678
        %v2696 = vsel %vm2683, %v2678, %v2680
        %v2697 = vsel %vm2683, %v2680, %v2682
        %vm2712 = vcmask 457728
        %v2714 = vsel %vm2712, %v2637, 0
        %2716 = vmatpush.msra.mxu0 0.0
        %2717 = vmatpush.msra.mxu0 0.0
        %2718 = vmatpush.msra.mxu0 0.0
        %2719 = vmatpush.msra.mxu0 0.0
        %2720 = vmatpush.msra.mxu0 0.0
        %2721 = vmatpush.msra.mxu0 0.0
        %2722 = vmatpush.msra.mxu0 0.0
        %2723 = vmatpush.msra.mxu0 0.0
        %2724 = vmatpush.msra.mxu0 0.0
        %2725 = vmatpush.msra.mxu0 %v2690
        %2726 = vmatpush.msra.mxu0 %v2689
        %2727 = vmatpush.msra.mxu0 %v2688
        %2728 = vmatpush.msra.mxu0 %v2687
        %2729 = vmatpush.msra.mxu0 %v2686
        %2730 = vmatpush.msra.mxu0 %v2685
        %2731 = vmatpush.msra.mxu0 %v2684
        %2732 = vmatmul.f32.gmra.mxu0 %v2714
        %v2733 = vpop.f32.mrf.mxu0
        %v2734 = vadd.f32 0.0, %v2733
        %2735 = vdwg.mxu0
        %2736 = vmatpush.msra.mxu0 0.0
        %2737 = vmatpush.msra.mxu0 0.0
        %2738 = vmatpush.msra.mxu0 0.0
        %2739 = vmatpush.msra.mxu0 0.0
        %2740 = vmatpush.msra.mxu0 0.0
        %2741 = vmatpush.msra.mxu0 0.0
        %2742 = vmatpush.msra.mxu0 0.0
        %2743 = vmatpush.msra.mxu0 0.0
        %2744 = vmatpush.msra.mxu0 0.0
        %2745 = vmatpush.msra.mxu0 %v2691
        %2746 = vmatpush.msra.mxu0 %v2690
        %2747 = vmatpush.msra.mxu0 %v2689
        %2748 = vmatpush.msra.mxu0 %v2688
        %2749 = vmatpush.msra.mxu0 %v2687
        %2750 = vmatpush.msra.mxu0 %v2686
        %2751 = vmatpush.msra.mxu0 %v2685
        %2752 = vmatmul.f32.gmra.mxu0 %v2714
        %v2753 = vpop.f32.mrf.mxu0
        %v2754 = vadd.f32 0.0, %v2753
        %2755 = vdwg.mxu0
        %2756 = vmatpush.msra.mxu0 0.0
        %2757 = vmatpush.msra.mxu0 0.0
        %2758 = vmatpush.msra.mxu0 0.0
        %2759 = vmatpush.msra.mxu0 0.0
        %2760 = vmatpush.msra.mxu0 0.0
        %2761 = vmatpush.msra.mxu0 0.0
        %2762 = vmatpush.msra.mxu0 0.0
        %2763 = vmatpush.msra.mxu0 0.0
        %2764 = vmatpush.msra.mxu0 0.0
        %2765 = vmatpush.msra.mxu0 %v2692
        %2766 = vmatpush.msra.mxu0 %v2691
        %2767 = vmatpush.msra.mxu0 %v2690
        %2768 = vmatpush.msra.mxu0 %v2689
        %2769 = vmatpush.msra.mxu0 %v2688
        %2770 = vmatpush.msra.mxu0 %v2687
        %2771 = vmatpush.msra.mxu0 %v2686
        %2772 = vmatmul.f32.gmra.mxu0 %v2714
        %v2773 = vpop.f32.mrf.mxu0
        %v2774 = vadd.f32 0.0, %v2773
        %2775 = vdwg.mxu0
        %2776 = vmatpush.msra.mxu0 0.0
        %2777 = vmatpush.msra.mxu0 0.0
        %2778 = vmatpush.msra.mxu0 0.0
        %2779 = vmatpush.msra.mxu0 0.0
        %2780 = vmatpush.msra.mxu0 0.0
        %2781 = vmatpush.msra.mxu0 0.0
        %2782 = vmatpush.msra.mxu0 0.0
        %2783 = vmatpush.msra.mxu0 0.0
        %2784 = vmatpush.msra.mxu0 0.0
        %2785 = vmatpush.msra.mxu0 %v2693
        %2786 = vmatpush.msra.mxu0 %v2692
        %2787 = vmatpush.msra.mxu0 %v2691
        %2788 = vmatpush.msra.mxu0 %v2690
        %2789 = vmatpush.msra.mxu0 %v2689
        %2790 = vmatpush.msra.mxu0 %v2688
        %2791 = vmatpush.msra.mxu0 %v2687
        %2792 = vmatmul.f32.gmra.mxu0 %v2714
        %v2793 = vpop.f32.mrf.mxu0
        %v2794 = vadd.f32 0.0, %v2793
        %2795 = vdwg.mxu0
        %2796 = vmatpush.msra.mxu0 0.0
        %2797 = vmatpush.msra.mxu0 0.0
        %2798 = vmatpush.msra.mxu0 0.0
        %2799 = vmatpush.msra.mxu0 0.0
        %2800 = vmatpush.msra.mxu0 0.0
        %2801 = vmatpush.msra.mxu0 0.0
        %2802 = vmatpush.msra.mxu0 0.0
        %2803 = vmatpush.msra.mxu0 0.0
        %2804 = vmatpush.msra.mxu0 0.0
        %2805 = vmatpush.msra.mxu0 %v2694
        %2806 = vmatpush.msra.mxu0 %v2693
        %2807 = vmatpush.msra.mxu0 %v2692
        %2808 = vmatpush.msra.mxu0 %v2691
        %2809 = vmatpush.msra.mxu0 %v2690
        %2810 = vmatpush.msra.mxu0 %v2689
        %2811 = vmatpush.msra.mxu0 %v2688
        %2812 = vmatmul.f32.gmra.mxu0 %v2714
        %v2813 = vpop.f32.mrf.mxu0
        %v2814 = vadd.f32 0.0, %v2813
        %2815 = vdwg.mxu0
        %2816 = vmatpush.msra.mxu0 0.0
        %2817 = vmatpush.msra.mxu0 0.0
        %2818 = vmatpush.msra.mxu0 0.0
        %2819 = vmatpush.msra.mxu0 0.0
        %2820 = vmatpush.msra.mxu0 0.0
        %2821 = vmatpush.msra.mxu0 0.0
        %2822 = vmatpush.msra.mxu0 0.0
        %2823 = vmatpush.msra.mxu0 0.0
        %2824 = vmatpush.msra.mxu0 0.0
        %2825 = vmatpush.msra.mxu0 %v2695
        %2826 = vmatpush.msra.mxu0 %v2694
        %2827 = vmatpush.msra.mxu0 %v2693
        %2828 = vmatpush.msra.mxu0 %v2692
        %2829 = vmatpush.msra.mxu0 %v2691
        %2830 = vmatpush.msra.mxu0 %v2690
        %2831 = vmatpush.msra.mxu0 %v2689
        %2832 = vmatmul.f32.gmra.mxu0 %v2714
        %v2833 = vpop.f32.mrf.mxu0
        %v2834 = vadd.f32 0.0, %v2833
        %2835 = vdwg.mxu0
        %2836 = vmatpush.msra.mxu0 0.0
        %2837 = vmatpush.msra.mxu0 0.0
        %2838 = vmatpush.msra.mxu0 0.0
        %2839 = vmatpush.msra.mxu0 0.0
        %2840 = vmatpush.msra.mxu0 0.0
        %2841 = vmatpush.msra.mxu0 0.0
        %2842 = vmatpush.msra.mxu0 0.0
        %2843 = vmatpush.msra.mxu0 0.0
        %2844 = vmatpush.msra.mxu0 0.0
        %2845 = vmatpush.msra.mxu0 %v2696
        %2846 = vmatpush.msra.mxu0 %v2695
        %2847 = vmatpush.msra.mxu0 %v2694
        %2848 = vmatpush.msra.mxu0 %v2693
        %2849 = vmatpush.msra.mxu0 %v2692
        %2850 = vmatpush.msra.mxu0 %v2691
        %2851 = vmatpush.msra.mxu0 %v2690
        %2852 = vmatmul.f32.gmra.mxu0 %v2714
        %v2853 = vpop.f32.mrf.mxu0
        %v2854 = vadd.f32 0.0, %v2853
        %2855 = vdwg.mxu0
        %2856 = vmatpush.msra.mxu0 0.0
        %2857 = vmatpush.msra.mxu0 0.0
        %2858 = vmatpush.msra.mxu0 0.0
        %2859 = vmatpush.msra.mxu0 0.0
        %2860 = vmatpush.msra.mxu0 0.0
        %2861 = vmatpush.msra.mxu0 0.0
        %2862 = vmatpush.msra.mxu0 0.0
        %2863 = vmatpush.msra.mxu0 0.0
        %2864 = vmatpush.msra.mxu0 0.0
        %2865 = vmatpush.msra.mxu0 %v2697
        %2866 = vmatpush.msra.mxu0 %v2696
        %2867 = vmatpush.msra.mxu0 %v2695
        %2868 = vmatpush.msra.mxu0 %v2694
        %2869 = vmatpush.msra.mxu0 %v2693
        %2870 = vmatpush.msra.mxu0 %v2692
        %2871 = vmatpush.msra.mxu0 %v2691
        %2872 = vmatmul.f32.gmra.mxu0 %v2714
        %v2873 = vpop.f32.mrf.mxu0
        %v2874 = vadd.f32 0.0, %v2873
        %2875 = vdwg.mxu0
        %v2877 = vsel %vm2712, %v2635, 0
        %2879 = vmatpush.msra.mxu0 0.0
        %2880 = vmatpush.msra.mxu0 0.0
        %2881 = vmatpush.msra.mxu0 0.0
        %2882 = vmatpush.msra.mxu0 0.0
        %2883 = vmatpush.msra.mxu0 0.0
        %2884 = vmatpush.msra.mxu0 0.0
        %2885 = vmatpush.msra.mxu0 0.0
        %2886 = vmatpush.msra.mxu0 0.0
        %2887 = vmatpush.msra.mxu0 0.0
        %2888 = vmatpush.msra.mxu0 %v2424
        %2889 = vmatpush.msra.mxu0 %v2398
        %2890 = vmatpush.msra.mxu0 %v2372
        %2891 = vmatpush.msra.mxu0 %v2346
        %2892 = vmatpush.msra.mxu0 %v2320
        %2893 = vmatpush.msra.mxu0 %v2294
        %2894 = vmatpush.msra.mxu0 %v2268
        %2895 = vmatmul.f32.gmra.mxu0 %v2877
        %v2896 = vpop.f32.mrf.mxu0
        %v2897 = vadd.f32 %v2734, %v2896
        %2898 = vdwg.mxu0
        %2899 = vmatpush.msra.mxu0 0.0
        %2900 = vmatpush.msra.mxu0 0.0
        %2901 = vmatpush.msra.mxu0 0.0
        %2902 = vmatpush.msra.mxu0 0.0
        %2903 = vmatpush.msra.mxu0 0.0
        %2904 = vmatpush.msra.mxu0 0.0
        %2905 = vmatpush.msra.mxu0 0.0
        %2906 = vmatpush.msra.mxu0 0.0
        %2907 = vmatpush.msra.mxu0 0.0
        %2908 = vmatpush.msra.mxu0 %v2450
        %2909 = vmatpush.msra.mxu0 %v2424
        %2910 = vmatpush.msra.mxu0 %v2398
        %2911 = vmatpush.msra.mxu0 %v2372
        %2912 = vmatpush.msra.mxu0 %v2346
        %2913 = vmatpush.msra.mxu0 %v2320
        %2914 = vmatpush.msra.mxu0 %v2294
        %2915 = vmatmul.f32.gmra.mxu0 %v2877
        %v2916 = vpop.f32.mrf.mxu0
        %v2917 = vadd.f32 %v2754, %v2916
        %2918 = vdwg.mxu0
        %2919 = vmatpush.msra.mxu0 0.0
        %2920 = vmatpush.msra.mxu0 0.0
        %2921 = vmatpush.msra.mxu0 0.0
        %2922 = vmatpush.msra.mxu0 0.0
        %2923 = vmatpush.msra.mxu0 0.0
        %2924 = vmatpush.msra.mxu0 0.0
        %2925 = vmatpush.msra.mxu0 0.0
        %2926 = vmatpush.msra.mxu0 0.0
        %2927 = vmatpush.msra.mxu0 0.0
        %2928 = vmatpush.msra.mxu0 %v2476
        %2929 = vmatpush.msra.mxu0 %v2450
        %2930 = vmatpush.msra.mxu0 %v2424
        %2931 = vmatpush.msra.mxu0 %v2398
        %2932 = vmatpush.msra.mxu0 %v2372
        %2933 = vmatpush.msra.mxu0 %v2346
        %2934 = vmatpush.msra.mxu0 %v2320
        %2935 = vmatmul.f32.gmra.mxu0 %v2877
        %v2936 = vpop.f32.mrf.mxu0
        %v2937 = vadd.f32 %v2774, %v2936
        %2938 = vdwg.mxu0
        %2939 = vmatpush.msra.mxu0 0.0
        %2940 = vmatpush.msra.mxu0 0.0
        %2941 = vmatpush.msra.mxu0 0.0
        %2942 = vmatpush.msra.mxu0 0.0
        %2943 = vmatpush.msra.mxu0 0.0
        %2944 = vmatpush.msra.mxu0 0.0
        %2945 = vmatpush.msra.mxu0 0.0
        %2946 = vmatpush.msra.mxu0 0.0
        %2947 = vmatpush.msra.mxu0 0.0
        %2948 = vmatpush.msra.mxu0 %v2502
        %2949 = vmatpush.msra.mxu0 %v2476
        %2950 = vmatpush.msra.mxu0 %v2450
        %2951 = vmatpush.msra.mxu0 %v2424
        %2952 = vmatpush.msra.mxu0 %v2398
        %2953 = vmatpush.msra.mxu0 %v2372
        %2954 = vmatpush.msra.mxu0 %v2346
        %2955 = vmatmul.f32.gmra.mxu0 %v2877
        %v2956 = vpop.f32.mrf.mxu0
        %v2957 = vadd.f32 %v2794, %v2956
        %2958 = vdwg.mxu0
        %2959 = vmatpush.msra.mxu0 0.0
        %2960 = vmatpush.msra.mxu0 0.0
        %2961 = vmatpush.msra.mxu0 0.0
        %2962 = vmatpush.msra.mxu0 0.0
        %2963 = vmatpush.msra.mxu0 0.0
        %2964 = vmatpush.msra.mxu0 0.0
        %2965 = vmatpush.msra.mxu0 0.0
        %2966 = vmatpush.msra.mxu0 0.0
        %2967 = vmatpush.msra.mxu0 0.0
        %2968 = vmatpush.msra.mxu0 %v2528
        %2969 = vmatpush.msra.mxu0 %v2502
        %2970 = vmatpush.msra.mxu0 %v2476
        %2971 = vmatpush.msra.mxu0 %v2450
        %2972 = vmatpush.msra.mxu0 %v2424
        %2973 = vmatpush.msra.mxu0 %v2398
        %2974 = vmatpush.msra.mxu0 %v2372
        %2975 = vmatmul.f32.gmra.mxu0 %v2877
        %v2976 = vpop.f32.mrf.mxu0
        %v2977 = vadd.f32 %v2814, %v2976
        %2978 = vdwg.mxu0
        %2979 = vmatpush.msra.mxu0 0.0
        %2980 = vmatpush.msra.mxu0 0.0
        %2981 = vmatpush.msra.mxu0 0.0
        %2982 = vmatpush.msra.mxu0 0.0
        %2983 = vmatpush.msra.mxu0 0.0
        %2984 = vmatpush.msra.mxu0 0.0
        %2985 = vmatpush.msra.mxu0 0.0
        %2986 = vmatpush.msra.mxu0 0.0
        %2987 = vmatpush.msra.mxu0 0.0
        %2988 = vmatpush.msra.mxu0 %v2554
        %2989 = vmatpush.msra.mxu0 %v2528
        %2990 = vmatpush.msra.mxu0 %v2502
        %2991 = vmatpush.msra.mxu0 %v2476
        %2992 = vmatpush.msra.mxu0 %v2450
        %2993 = vmatpush.msra.mxu0 %v2424
        %2994 = vmatpush.msra.mxu0 %v2398
        %2995 = vmatmul.f32.gmra.mxu0 %v2877
        %v2996 = vpop.f32.mrf.mxu0
        %v2997 = vadd.f32 %v2834, %v2996
        %2998 = vdwg.mxu0
        %2999 = vmatpush.msra.mxu0 0.0
        %3000 = vmatpush.msra.mxu0 0.0
        %3001 = vmatpush.msra.mxu0 0.0
        %3002 = vmatpush.msra.mxu0 0.0
        %3003 = vmatpush.msra.mxu0 0.0
        %3004 = vmatpush.msra.mxu0 0.0
        %3005 = vmatpush.msra.mxu0 0.0
        %3006 = vmatpush.msra.mxu0 0.0
        %3007 = vmatpush.msra.mxu0 0.0
        %3008 = vmatpush.msra.mxu0 %v2580
        %3009 = vmatpush.msra.mxu0 %v2554
        %3010 = vmatpush.msra.mxu0 %v2528
        %3011 = vmatpush.msra.mxu0 %v2502
        %3012 = vmatpush.msra.mxu0 %v2476
        %3013 = vmatpush.msra.mxu0 %v2450
        %3014 = vmatpush.msra.mxu0 %v2424
        %3015 = vmatmul.f32.gmra.mxu0 %v2877
        %v3016 = vpop.f32.mrf.mxu0
        %v3017 = vadd.f32 %v2854, %v3016
        %3018 = vdwg.mxu0
        %3019 = vmatpush.msra.mxu0 0.0
        %3020 = vmatpush.msra.mxu0 0.0
        %3021 = vmatpush.msra.mxu0 0.0
        %3022 = vmatpush.msra.mxu0 0.0
        %3023 = vmatpush.msra.mxu0 0.0
        %3024 = vmatpush.msra.mxu0 0.0
        %3025 = vmatpush.msra.mxu0 0.0
        %3026 = vmatpush.msra.mxu0 0.0
        %3027 = vmatpush.msra.mxu0 0.0
        %3028 = vmatpush.msra.mxu0 %v2606
        %3029 = vmatpush.msra.mxu0 %v2580
        %3030 = vmatpush.msra.mxu0 %v2554
        %3031 = vmatpush.msra.mxu0 %v2528
        %3032 = vmatpush.msra.mxu0 %v2502
        %3033 = vmatpush.msra.mxu0 %v2476
        %3034 = vmatpush.msra.mxu0 %v2450
        %3035 = vmatmul.f32.gmra.mxu0 %v2877
        %v3036 = vpop.f32.mrf.mxu0
        %v3037 = vadd.f32 %v2874, %v3036
        %3038 = vdwg.mxu0
        %s3039 = scalar_lea.vmem %s8, 8
        %v3040 = vld [vmem:[%s3039] sm:$0xf]
        %3041 = vrot.lane.b32.xlu0 %v2268, 126
        %v3042 = vpop.permute.xlu0 %3041
        %3043 = vrot.lane.b32.xlu0 %v2294, 126
        %v3044 = vpop.permute.xlu0 %3043
        %3045 = vrot.lane.b32.xlu0 %v2320, 126
        %v3046 = vpop.permute.xlu0 %3045
        %3047 = vrot.lane.b32.xlu0 %v2346, 126
        %v3048 = vpop.permute.xlu0 %3047
        %3049 = vrot.lane.b32.xlu0 %v2372, 126
        %v3050 = vpop.permute.xlu0 %3049
        %3051 = vrot.lane.b32.xlu0 %v2398, 126
        %v3052 = vpop.permute.xlu0 %3051
        %3053 = vrot.lane.b32.xlu0 %v2424, 126
        %v3054 = vpop.permute.xlu0 %3053
        %3055 = vrot.lane.b32.xlu0 %v2450, 126
        %v3056 = vpop.permute.xlu0 %3055
        %3057 = vrot.lane.b32.xlu0 %v2476, 126
        %v3058 = vpop.permute.xlu0 %3057
        %3059 = vrot.lane.b32.xlu0 %v2502, 126
        %v3060 = vpop.permute.xlu0 %3059
        %3061 = vrot.lane.b32.xlu0 %v2528, 126
        %v3062 = vpop.permute.xlu0 %3061
        %3063 = vrot.lane.b32.xlu0 %v2554, 126
        %v3064 = vpop.permute.xlu0 %3063
        %3065 = vrot.lane.b32.xlu0 %v2580, 126
        %v3066 = vpop.permute.xlu0 %3065
        %3067 = vrot.lane.b32.xlu0 %v2606, 126
        %v3068 = vpop.permute.xlu0 %3067
        %3069 = vrot.lane.b32.xlu0 %v2632, 126
        %v3070 = vpop.permute.xlu0 %3069
        %vm3071 = vcmask 1031168
        %v3072 = vsel %vm3071, %v3042, %v3044
        %v3073 = vsel %vm3071, %v3044, %v3046
        %v3074 = vsel %vm3071, %v3046, %v3048
        %v3075 = vsel %vm3071, %v3048, %v3050
        %v3076 = vsel %vm3071, %v3050, %v3052
        %v3077 = vsel %vm3071, %v3052, %v3054
        %v3078 = vsel %vm3071, %v3054, %v3056
        %v3079 = vsel %vm3071, %v3056, %v3058
        %v3080 = vsel %vm3071, %v3058, %v3060
        %v3081 = vsel %vm3071, %v3060, %v3062
        %v3082 = vsel %vm3071, %v3062, %v3064
        %v3083 = vsel %vm3071, %v3064, %v3066
        %v3084 = vsel %vm3071, %v3066, %v3068
        %v3085 = vsel %vm3071, %v3068, %v3070
        %v3101 = vsel %vm2712, %v3040, 0
        %3103 = vmatpush.msra.mxu0 0.0
        %3104 = vmatpush.msra.mxu0 0.0
        %3105 = vmatpush.msra.mxu0 0.0
        %3106 = vmatpush.msra.mxu0 0.0
        %3107 = vmatpush.msra.mxu0 0.0
        %3108 = vmatpush.msra.mxu0 0.0
        %3109 = vmatpush.msra.mxu0 0.0
        %3110 = vmatpush.msra.mxu0 0.0
        %3111 = vmatpush.msra.mxu0 0.0
        %3112 = vmatpush.msra.mxu0 %v3078
        %3113 = vmatpush.msra.mxu0 %v3077
        %3114 = vmatpush.msra.mxu0 %v3076
        %3115 = vmatpush.msra.mxu0 %v3075
        %3116 = vmatpush.msra.mxu0 %v3074
        %3117 = vmatpush.msra.mxu0 %v3073
        %3118 = vmatpush.msra.mxu0 %v3072
        %3119 = vmatmul.f32.gmra.mxu0 %v3101
        %v3120 = vpop.f32.mrf.mxu0
        %v3121 = vadd.f32 0.0, %v3120
        %3122 = vdwg.mxu0
        %3123 = vmatpush.msra.mxu0 0.0
        %3124 = vmatpush.msra.mxu0 0.0
        %3125 = vmatpush.msra.mxu0 0.0
        %3126 = vmatpush.msra.mxu0 0.0
        %3127 = vmatpush.msra.mxu0 0.0
        %3128 = vmatpush.msra.mxu0 0.0
        %3129 = vmatpush.msra.mxu0 0.0
        %3130 = vmatpush.msra.mxu0 0.0
        %3131 = vmatpush.msra.mxu0 0.0
        %3132 = vmatpush.msra.mxu0 %v3079
        %3133 = vmatpush.msra.mxu0 %v3078
        %3134 = vmatpush.msra.mxu0 %v3077
        %3135 = vmatpush.msra.mxu0 %v3076
        %3136 = vmatpush.msra.mxu0 %v3075
        %3137 = vmatpush.msra.mxu0 %v3074
        %3138 = vmatpush.msra.mxu0 %v3073
        %3139 = vmatmul.f32.gmra.mxu0 %v3101
        %v3140 = vpop.f32.mrf.mxu0
        %v3141 = vadd.f32 0.0, %v3140
        %3142 = vdwg.mxu0
        %3143 = vmatpush.msra.mxu0 0.0
        %3144 = vmatpush.msra.mxu0 0.0
        %3145 = vmatpush.msra.mxu0 0.0
        %3146 = vmatpush.msra.mxu0 0.0
        %3147 = vmatpush.msra.mxu0 0.0
        %3148 = vmatpush.msra.mxu0 0.0
        %3149 = vmatpush.msra.mxu0 0.0
        %3150 = vmatpush.msra.mxu0 0.0
        %3151 = vmatpush.msra.mxu0 0.0
        %3152 = vmatpush.msra.mxu0 %v3080
        %3153 = vmatpush.msra.mxu0 %v3079
        %3154 = vmatpush.msra.mxu0 %v3078
        %3155 = vmatpush.msra.mxu0 %v3077
        %3156 = vmatpush.msra.mxu0 %v3076
        %3157 = vmatpush.msra.mxu0 %v3075
        %3158 = vmatpush.msra.mxu0 %v3074
        %3159 = vmatmul.f32.gmra.mxu0 %v3101
        %v3160 = vpop.f32.mrf.mxu0
        %v3161 = vadd.f32 0.0, %v3160
        %3162 = vdwg.mxu0
        %3163 = vmatpush.msra.mxu0 0.0
        %3164 = vmatpush.msra.mxu0 0.0
        %3165 = vmatpush.msra.mxu0 0.0
        %3166 = vmatpush.msra.mxu0 0.0
        %3167 = vmatpush.msra.mxu0 0.0
        %3168 = vmatpush.msra.mxu0 0.0
        %3169 = vmatpush.msra.mxu0 0.0
        %3170 = vmatpush.msra.mxu0 0.0
        %3171 = vmatpush.msra.mxu0 0.0
        %3172 = vmatpush.msra.mxu0 %v3081
        %3173 = vmatpush.msra.mxu0 %v3080
        %3174 = vmatpush.msra.mxu0 %v3079
        %3175 = vmatpush.msra.mxu0 %v3078
        %3176 = vmatpush.msra.mxu0 %v3077
        %3177 = vmatpush.msra.mxu0 %v3076
        %3178 = vmatpush.msra.mxu0 %v3075
        %3179 = vmatmul.f32.gmra.mxu0 %v3101
        %v3180 = vpop.f32.mrf.mxu0
        %v3181 = vadd.f32 0.0, %v3180
        %3182 = vdwg.mxu0
        %3183 = vmatpush.msra.mxu0 0.0
        %3184 = vmatpush.msra.mxu0 0.0
        %3185 = vmatpush.msra.mxu0 0.0
        %3186 = vmatpush.msra.mxu0 0.0
        %3187 = vmatpush.msra.mxu0 0.0
        %3188 = vmatpush.msra.mxu0 0.0
        %3189 = vmatpush.msra.mxu0 0.0
        %3190 = vmatpush.msra.mxu0 0.0
        %3191 = vmatpush.msra.mxu0 0.0
        %3192 = vmatpush.msra.mxu0 %v3082
        %3193 = vmatpush.msra.mxu0 %v3081
        %3194 = vmatpush.msra.mxu0 %v3080
        %3195 = vmatpush.msra.mxu0 %v3079
        %3196 = vmatpush.msra.mxu0 %v3078
        %3197 = vmatpush.msra.mxu0 %v3077
        %3198 = vmatpush.msra.mxu0 %v3076
        %3199 = vmatmul.f32.gmra.mxu0 %v3101
        %v3200 = vpop.f32.mrf.mxu0
        %v3201 = vadd.f32 0.0, %v3200
        %3202 = vdwg.mxu0
        %3203 = vmatpush.msra.mxu0 0.0
        %3204 = vmatpush.msra.mxu0 0.0
        %3205 = vmatpush.msra.mxu0 0.0
        %3206 = vmatpush.msra.mxu0 0.0
        %3207 = vmatpush.msra.mxu0 0.0
        %3208 = vmatpush.msra.mxu0 0.0
        %3209 = vmatpush.msra.mxu0 0.0
        %3210 = vmatpush.msra.mxu0 0.0
        %3211 = vmatpush.msra.mxu0 0.0
        %3212 = vmatpush.msra.mxu0 %v3083
        %3213 = vmatpush.msra.mxu0 %v3082
        %3214 = vmatpush.msra.mxu0 %v3081
        %3215 = vmatpush.msra.mxu0 %v3080
        %3216 = vmatpush.msra.mxu0 %v3079
        %3217 = vmatpush.msra.mxu0 %v3078
        %3218 = vmatpush.msra.mxu0 %v3077
        %3219 = vmatmul.f32.gmra.mxu0 %v3101
        %v3220 = vpop.f32.mrf.mxu0
        %v3221 = vadd.f32 0.0, %v3220
        %3222 = vdwg.mxu0
        %3223 = vmatpush.msra.mxu0 0.0
        %3224 = vmatpush.msra.mxu0 0.0
        %3225 = vmatpush.msra.mxu0 0.0
        %3226 = vmatpush.msra.mxu0 0.0
        %3227 = vmatpush.msra.mxu0 0.0
        %3228 = vmatpush.msra.mxu0 0.0
        %3229 = vmatpush.msra.mxu0 0.0
        %3230 = vmatpush.msra.mxu0 0.0
        %3231 = vmatpush.msra.mxu0 0.0
        %3232 = vmatpush.msra.mxu0 %v3084
        %3233 = vmatpush.msra.mxu0 %v3083
        %3234 = vmatpush.msra.mxu0 %v3082
        %3235 = vmatpush.msra.mxu0 %v3081
        %3236 = vmatpush.msra.mxu0 %v3080
        %3237 = vmatpush.msra.mxu0 %v3079
        %3238 = vmatpush.msra.mxu0 %v3078
        %3239 = vmatmul.f32.gmra.mxu0 %v3101
        %v3240 = vpop.f32.mrf.mxu0
        %v3241 = vadd.f32 0.0, %v3240
        %3242 = vdwg.mxu0
        %3243 = vmatpush.msra.mxu0 0.0
        %3244 = vmatpush.msra.mxu0 0.0
        %3245 = vmatpush.msra.mxu0 0.0
        %3246 = vmatpush.msra.mxu0 0.0
        %3247 = vmatpush.msra.mxu0 0.0
        %3248 = vmatpush.msra.mxu0 0.0
        %3249 = vmatpush.msra.mxu0 0.0
        %3250 = vmatpush.msra.mxu0 0.0
        %3251 = vmatpush.msra.mxu0 0.0
        %3252 = vmatpush.msra.mxu0 %v3085
        %3253 = vmatpush.msra.mxu0 %v3084
        %3254 = vmatpush.msra.mxu0 %v3083
        %3255 = vmatpush.msra.mxu0 %v3082
        %3256 = vmatpush.msra.mxu0 %v3081
        %3257 = vmatpush.msra.mxu0 %v3080
        %3258 = vmatpush.msra.mxu0 %v3079
        %3259 = vmatmul.f32.gmra.mxu0 %v3101
        %v3260 = vpop.f32.mrf.mxu0
        %v3261 = vadd.f32 0.0, %v3260
        %3262 = vdwg.mxu0
        %v3263 = vadd.f32 %v2897, %v3121
        %v3264 = vadd.f32 %v2917, %v3141
        %v3265 = vadd.f32 %v2937, %v3161
        %v3266 = vadd.f32 %v2957, %v3181
        %v3267 = vadd.f32 %v2977, %v3201
        %v3268 = vadd.f32 %v2997, %v3221
        %v3269 = vadd.f32 %v3017, %v3241
        %v3270 = vadd.f32 %v3037, %v3261
        %s3271 = scalar_lea.vmem %s8, 12
        %v3272 = vld [vmem:[%s3271] sm:$0xf]
        %3273 = vrot.lane.b32.xlu0 %v2268, 125
        %v3274 = vpop.permute.xlu0 %3273
        %3275 = vrot.lane.b32.xlu0 %v2294, 125
        %v3276 = vpop.permute.xlu0 %3275
        %3277 = vrot.lane.b32.xlu0 %v2320, 125
        %v3278 = vpop.permute.xlu0 %3277
        %3279 = vrot.lane.b32.xlu0 %v2346, 125
        %v3280 = vpop.permute.xlu0 %3279
        %3281 = vrot.lane.b32.xlu0 %v2372, 125
        %v3282 = vpop.permute.xlu0 %3281
        %3283 = vrot.lane.b32.xlu0 %v2398, 125
        %v3284 = vpop.permute.xlu0 %3283
        %3285 = vrot.lane.b32.xlu0 %v2424, 125
        %v3286 = vpop.permute.xlu0 %3285
        %3287 = vrot.lane.b32.xlu0 %v2450, 125
        %v3288 = vpop.permute.xlu0 %3287
        %3289 = vrot.lane.b32.xlu0 %v2476, 125
        %v3290 = vpop.permute.xlu0 %3289
        %3291 = vrot.lane.b32.xlu0 %v2502, 125
        %v3292 = vpop.permute.xlu0 %3291
        %3293 = vrot.lane.b32.xlu0 %v2528, 125
        %v3294 = vpop.permute.xlu0 %3293
        %3295 = vrot.lane.b32.xlu0 %v2554, 125
        %v3296 = vpop.permute.xlu0 %3295
        %3297 = vrot.lane.b32.xlu0 %v2580, 125
        %v3298 = vpop.permute.xlu0 %3297
        %3299 = vrot.lane.b32.xlu0 %v2606, 125
        %v3300 = vpop.permute.xlu0 %3299
        %3301 = vrot.lane.b32.xlu0 %v2632, 125
        %v3302 = vpop.permute.xlu0 %3301
        %vm3303 = vcmask 1022976
        %v3304 = vsel %vm3303, %v3274, %v3276
        %v3305 = vsel %vm3303, %v3276, %v3278
        %v3306 = vsel %vm3303, %v3278, %v3280
        %v3307 = vsel %vm3303, %v3280, %v3282
        %v3308 = vsel %vm3303, %v3282, %v3284
        %v3309 = vsel %vm3303, %v3284, %v3286
        %v3310 = vsel %vm3303, %v3286, %v3288
        %v3311 = vsel %vm3303, %v3288, %v3290
        %v3312 = vsel %vm3303, %v3290, %v3292
        %v3313 = vsel %vm3303, %v3292, %v3294
        %v3314 = vsel %vm3303, %v3294, %v3296
        %v3315 = vsel %vm3303, %v3296, %v3298
        %v3316 = vsel %vm3303, %v3298, %v3300
        %v3317 = vsel %vm3303, %v3300, %v3302
        %v3333 = vsel %vm2712, %v3272, 0
        %3335 = vmatpush.msra.mxu0 0.0
        %3336 = vmatpush.msra.mxu0 0.0
        %3337 = vmatpush.msra.mxu0 0.0
        %3338 = vmatpush.msra.mxu0 0.0
        %3339 = vmatpush.msra.mxu0 0.0
        %3340 = vmatpush.msra.mxu0 0.0
        %3341 = vmatpush.msra.mxu0 0.0
        %3342 = vmatpush.msra.mxu0 0.0
        %3343 = vmatpush.msra.mxu0 0.0
        %3344 = vmatpush.msra.mxu0 %v3310
        %3345 = vmatpush.msra.mxu0 %v3309
        %3346 = vmatpush.msra.mxu0 %v3308
        %3347 = vmatpush.msra.mxu0 %v3307
        %3348 = vmatpush.msra.mxu0 %v3306
        %3349 = vmatpush.msra.mxu0 %v3305
        %3350 = vmatpush.msra.mxu0 %v3304
        %3351 = vmatmul.f32.gmra.mxu0 %v3333
        %v3352 = vpop.f32.mrf.mxu0
        %v3353 = vadd.f32 0.0, %v3352
        %3354 = vdwg.mxu0
        %3355 = vmatpush.msra.mxu0 0.0
        %3356 = vmatpush.msra.mxu0 0.0
        %3357 = vmatpush.msra.mxu0 0.0
        %3358 = vmatpush.msra.mxu0 0.0
        %3359 = vmatpush.msra.mxu0 0.0
        %3360 = vmatpush.msra.mxu0 0.0
        %3361 = vmatpush.msra.mxu0 0.0
        %3362 = vmatpush.msra.mxu0 0.0
        %3363 = vmatpush.msra.mxu0 0.0
        %3364 = vmatpush.msra.mxu0 %v3311
        %3365 = vmatpush.msra.mxu0 %v3310
        %3366 = vmatpush.msra.mxu0 %v3309
        %3367 = vmatpush.msra.mxu0 %v3308
        %3368 = vmatpush.msra.mxu0 %v3307
        %3369 = vmatpush.msra.mxu0 %v3306
        %3370 = vmatpush.msra.mxu0 %v3305
        %3371 = vmatmul.f32.gmra.mxu0 %v3333
        %v3372 = vpop.f32.mrf.mxu0
        %v3373 = vadd.f32 0.0, %v3372
        %3374 = vdwg.mxu0
        %3375 = vmatpush.msra.mxu0 0.0
        %3376 = vmatpush.msra.mxu0 0.0
        %3377 = vmatpush.msra.mxu0 0.0
        %3378 = vmatpush.msra.mxu0 0.0
        %3379 = vmatpush.msra.mxu0 0.0
        %3380 = vmatpush.msra.mxu0 0.0
        %3381 = vmatpush.msra.mxu0 0.0
        %3382 = vmatpush.msra.mxu0 0.0
        %3383 = vmatpush.msra.mxu0 0.0
        %3384 = vmatpush.msra.mxu0 %v3312
        %3385 = vmatpush.msra.mxu0 %v3311
        %3386 = vmatpush.msra.mxu0 %v3310
        %3387 = vmatpush.msra.mxu0 %v3309
        %3388 = vmatpush.msra.mxu0 %v3308
        %3389 = vmatpush.msra.mxu0 %v3307
        %3390 = vmatpush.msra.mxu0 %v3306
        %3391 = vmatmul.f32.gmra.mxu0 %v3333
        %v3392 = vpop.f32.mrf.mxu0
        %v3393 = vadd.f32 0.0, %v3392
        %3394 = vdwg.mxu0
        %3395 = vmatpush.msra.mxu0 0.0
        %3396 = vmatpush.msra.mxu0 0.0
        %3397 = vmatpush.msra.mxu0 0.0
        %3398 = vmatpush.msra.mxu0 0.0
        %3399 = vmatpush.msra.mxu0 0.0
        %3400 = vmatpush.msra.mxu0 0.0
        %3401 = vmatpush.msra.mxu0 0.0
        %3402 = vmatpush.msra.mxu0 0.0
        %3403 = vmatpush.msra.mxu0 0.0
        %3404 = vmatpush.msra.mxu0 %v3313
        %3405 = vmatpush.msra.mxu0 %v3312
        %3406 = vmatpush.msra.mxu0 %v3311
        %3407 = vmatpush.msra.mxu0 %v3310
        %3408 = vmatpush.msra.mxu0 %v3309
        %3409 = vmatpush.msra.mxu0 %v3308
        %3410 = vmatpush.msra.mxu0 %v3307
        %3411 = vmatmul.f32.gmra.mxu0 %v3333
        %v3412 = vpop.f32.mrf.mxu0
        %v3413 = vadd.f32 0.0, %v3412
        %3414 = vdwg.mxu0
        %3415 = vmatpush.msra.mxu0 0.0
        %3416 = vmatpush.msra.mxu0 0.0
        %3417 = vmatpush.msra.mxu0 0.0
        %3418 = vmatpush.msra.mxu0 0.0
        %3419 = vmatpush.msra.mxu0 0.0
        %3420 = vmatpush.msra.mxu0 0.0
        %3421 = vmatpush.msra.mxu0 0.0
        %3422 = vmatpush.msra.mxu0 0.0
        %3423 = vmatpush.msra.mxu0 0.0
        %3424 = vmatpush.msra.mxu0 %v3314
        %3425 = vmatpush.msra.mxu0 %v3313
        %3426 = vmatpush.msra.mxu0 %v3312
        %3427 = vmatpush.msra.mxu0 %v3311
        %3428 = vmatpush.msra.mxu0 %v3310
        %3429 = vmatpush.msra.mxu0 %v3309
        %3430 = vmatpush.msra.mxu0 %v3308
        %3431 = vmatmul.f32.gmra.mxu0 %v3333
        %v3432 = vpop.f32.mrf.mxu0
        %v3433 = vadd.f32 0.0, %v3432
        %3434 = vdwg.mxu0
        %3435 = vmatpush.msra.mxu0 0.0
        %3436 = vmatpush.msra.mxu0 0.0
        %3437 = vmatpush.msra.mxu0 0.0
        %3438 = vmatpush.msra.mxu0 0.0
        %3439 = vmatpush.msra.mxu0 0.0
        %3440 = vmatpush.msra.mxu0 0.0
        %3441 = vmatpush.msra.mxu0 0.0
        %3442 = vmatpush.msra.mxu0 0.0
        %3443 = vmatpush.msra.mxu0 0.0
        %3444 = vmatpush.msra.mxu0 %v3315
        %3445 = vmatpush.msra.mxu0 %v3314
        %3446 = vmatpush.msra.mxu0 %v3313
        %3447 = vmatpush.msra.mxu0 %v3312
        %3448 = vmatpush.msra.mxu0 %v3311
        %3449 = vmatpush.msra.mxu0 %v3310
        %3450 = vmatpush.msra.mxu0 %v3309
        %3451 = vmatmul.f32.gmra.mxu0 %v3333
        %v3452 = vpop.f32.mrf.mxu0
        %v3453 = vadd.f32 0.0, %v3452
        %3454 = vdwg.mxu0
        %3455 = vmatpush.msra.mxu0 0.0
        %3456 = vmatpush.msra.mxu0 0.0
        %3457 = vmatpush.msra.mxu0 0.0
        %3458 = vmatpush.msra.mxu0 0.0
        %3459 = vmatpush.msra.mxu0 0.0
        %3460 = vmatpush.msra.mxu0 0.0
        %3461 = vmatpush.msra.mxu0 0.0
        %3462 = vmatpush.msra.mxu0 0.0
        %3463 = vmatpush.msra.mxu0 0.0
        %3464 = vmatpush.msra.mxu0 %v3316
        %3465 = vmatpush.msra.mxu0 %v3315
        %3466 = vmatpush.msra.mxu0 %v3314
        %3467 = vmatpush.msra.mxu0 %v3313
        %3468 = vmatpush.msra.mxu0 %v3312
        %3469 = vmatpush.msra.mxu0 %v3311
        %3470 = vmatpush.msra.mxu0 %v3310
        %3471 = vmatmul.f32.gmra.mxu0 %v3333
        %v3472 = vpop.f32.mrf.mxu0
        %v3473 = vadd.f32 0.0, %v3472
        %3474 = vdwg.mxu0
        %3475 = vmatpush.msra.mxu0 0.0
        %3476 = vmatpush.msra.mxu0 0.0
        %3477 = vmatpush.msra.mxu0 0.0
        %3478 = vmatpush.msra.mxu0 0.0
        %3479 = vmatpush.msra.mxu0 0.0
        %3480 = vmatpush.msra.mxu0 0.0
        %3481 = vmatpush.msra.mxu0 0.0
        %3482 = vmatpush.msra.mxu0 0.0
        %3483 = vmatpush.msra.mxu0 0.0
        %3484 = vmatpush.msra.mxu0 %v3317
        %3485 = vmatpush.msra.mxu0 %v3316
        %3486 = vmatpush.msra.mxu0 %v3315
        %3487 = vmatpush.msra.mxu0 %v3314
        %3488 = vmatpush.msra.mxu0 %v3313
        %3489 = vmatpush.msra.mxu0 %v3312
        %3490 = vmatpush.msra.mxu0 %v3311
        %3491 = vmatmul.f32.gmra.mxu0 %v3333
        %v3492 = vpop.f32.mrf.mxu0
        %v3493 = vadd.f32 0.0, %v3492
        %3494 = vdwg.mxu0
        %v3495 = vadd.f32 %v3263, %v3353
        %v3496 = vadd.f32 %v3264, %v3373
        %v3497 = vadd.f32 %v3265, %v3393
        %v3498 = vadd.f32 %v3266, %v3413
        %v3499 = vadd.f32 %v3267, %v3433
        %v3500 = vadd.f32 %v3268, %v3453
        %v3501 = vadd.f32 %v3269, %v3473
        %v3502 = vadd.f32 %v3270, %v3493
        %s3503 = scalar_lea.vmem %s8, 16
        %v3504 = vld [vmem:[%s3503] sm:$0xf]
        %3505 = vrot.lane.b32.xlu0 %v2268, 124
        %v3506 = vpop.permute.xlu0 %3505
        %3507 = vrot.lane.b32.xlu0 %v2294, 124
        %v3508 = vpop.permute.xlu0 %3507
        %3509 = vrot.lane.b32.xlu0 %v2320, 124
        %v3510 = vpop.permute.xlu0 %3509
        %3511 = vrot.lane.b32.xlu0 %v2346, 124
        %v3512 = vpop.permute.xlu0 %3511
        %3513 = vrot.lane.b32.xlu0 %v2372, 124
        %v3514 = vpop.permute.xlu0 %3513
        %3515 = vrot.lane.b32.xlu0 %v2398, 124
        %v3516 = vpop.permute.xlu0 %3515
        %3517 = vrot.lane.b32.xlu0 %v2424, 124
        %v3518 = vpop.permute.xlu0 %3517
        %3519 = vrot.lane.b32.xlu0 %v2450, 124
        %v3520 = vpop.permute.xlu0 %3519
        %3521 = vrot.lane.b32.xlu0 %v2476, 124
        %v3522 = vpop.permute.xlu0 %3521
        %3523 = vrot.lane.b32.xlu0 %v2502, 124
        %v3524 = vpop.permute.xlu0 %3523
        %3525 = vrot.lane.b32.xlu0 %v2528, 124
        %v3526 = vpop.permute.xlu0 %3525
        %3527 = vrot.lane.b32.xlu0 %v2554, 124
        %v3528 = vpop.permute.xlu0 %3527
        %3529 = vrot.lane.b32.xlu0 %v2580, 124
        %v3530 = vpop.permute.xlu0 %3529
        %3531 = vrot.lane.b32.xlu0 %v2606, 124
        %v3532 = vpop.permute.xlu0 %3531
        %3533 = vrot.lane.b32.xlu0 %v2632, 124
        %v3534 = vpop.permute.xlu0 %3533
        %vm3535 = vcmask 1014784
        %v3536 = vsel %vm3535, %v3506, %v3508
        %v3537 = vsel %vm3535, %v3508, %v3510
        %v3538 = vsel %vm3535, %v3510, %v3512
        %v3539 = vsel %vm3535, %v3512, %v3514
        %v3540 = vsel %vm3535, %v3514, %v3516
        %v3541 = vsel %vm3535, %v3516, %v3518
        %v3542 = vsel %vm3535, %v3518, %v3520
        %v3543 = vsel %vm3535, %v3520, %v3522
        %v3544 = vsel %vm3535, %v3522, %v3524
        %v3545 = vsel %vm3535, %v3524, %v3526
        %v3546 = vsel %vm3535, %v3526, %v3528
        %v3547 = vsel %vm3535, %v3528, %v3530
        %v3548 = vsel %vm3535, %v3530, %v3532
        %v3549 = vsel %vm3535, %v3532, %v3534
        %v3565 = vsel %vm2712, %v3504, 0
        %3567 = vmatpush.msra.mxu0 0.0
        %3568 = vmatpush.msra.mxu0 0.0
        %3569 = vmatpush.msra.mxu0 0.0
        %3570 = vmatpush.msra.mxu0 0.0
        %3571 = vmatpush.msra.mxu0 0.0
        %3572 = vmatpush.msra.mxu0 0.0
        %3573 = vmatpush.msra.mxu0 0.0
        %3574 = vmatpush.msra.mxu0 0.0
        %3575 = vmatpush.msra.mxu0 0.0
        %3576 = vmatpush.msra.mxu0 %v3542
        %3577 = vmatpush.msra.mxu0 %v3541
        %3578 = vmatpush.msra.mxu0 %v3540
        %3579 = vmatpush.msra.mxu0 %v3539
        %3580 = vmatpush.msra.mxu0 %v3538
        %3581 = vmatpush.msra.mxu0 %v3537
        %3582 = vmatpush.msra.mxu0 %v3536
        %3583 = vmatmul.f32.gmra.mxu0 %v3565
        %v3584 = vpop.f32.mrf.mxu0
        %v3585 = vadd.f32 0.0, %v3584
        %3586 = vdwg.mxu0
        %3587 = vmatpush.msra.mxu0 0.0
        %3588 = vmatpush.msra.mxu0 0.0
        %3589 = vmatpush.msra.mxu0 0.0
        %3590 = vmatpush.msra.mxu0 0.0
        %3591 = vmatpush.msra.mxu0 0.0
        %3592 = vmatpush.msra.mxu0 0.0
        %3593 = vmatpush.msra.mxu0 0.0
        %3594 = vmatpush.msra.mxu0 0.0
        %3595 = vmatpush.msra.mxu0 0.0
        %3596 = vmatpush.msra.mxu0 %v3543
        %3597 = vmatpush.msra.mxu0 %v3542
        %3598 = vmatpush.msra.mxu0 %v3541
        %3599 = vmatpush.msra.mxu0 %v3540
        %3600 = vmatpush.msra.mxu0 %v3539
        %3601 = vmatpush.msra.mxu0 %v3538
        %3602 = vmatpush.msra.mxu0 %v3537
        %3603 = vmatmul.f32.gmra.mxu0 %v3565
        %v3604 = vpop.f32.mrf.mxu0
        %v3605 = vadd.f32 0.0, %v3604
        %3606 = vdwg.mxu0
        %3607 = vmatpush.msra.mxu0 0.0
        %3608 = vmatpush.msra.mxu0 0.0
        %3609 = vmatpush.msra.mxu0 0.0
        %3610 = vmatpush.msra.mxu0 0.0
        %3611 = vmatpush.msra.mxu0 0.0
        %3612 = vmatpush.msra.mxu0 0.0
        %3613 = vmatpush.msra.mxu0 0.0
        %3614 = vmatpush.msra.mxu0 0.0
        %3615 = vmatpush.msra.mxu0 0.0
        %3616 = vmatpush.msra.mxu0 %v3544
        %3617 = vmatpush.msra.mxu0 %v3543
        %3618 = vmatpush.msra.mxu0 %v3542
        %3619 = vmatpush.msra.mxu0 %v3541
        %3620 = vmatpush.msra.mxu0 %v3540
        %3621 = vmatpush.msra.mxu0 %v3539
        %3622 = vmatpush.msra.mxu0 %v3538
        %3623 = vmatmul.f32.gmra.mxu0 %v3565
        %v3624 = vpop.f32.mrf.mxu0
        %v3625 = vadd.f32 0.0, %v3624
        %3626 = vdwg.mxu0
        %3627 = vmatpush.msra.mxu0 0.0
        %3628 = vmatpush.msra.mxu0 0.0
        %3629 = vmatpush.msra.mxu0 0.0
        %3630 = vmatpush.msra.mxu0 0.0
        %3631 = vmatpush.msra.mxu0 0.0
        %3632 = vmatpush.msra.mxu0 0.0
        %3633 = vmatpush.msra.mxu0 0.0
        %3634 = vmatpush.msra.mxu0 0.0
        %3635 = vmatpush.msra.mxu0 0.0
        %3636 = vmatpush.msra.mxu0 %v3545
        %3637 = vmatpush.msra.mxu0 %v3544
        %3638 = vmatpush.msra.mxu0 %v3543
        %3639 = vmatpush.msra.mxu0 %v3542
        %3640 = vmatpush.msra.mxu0 %v3541
        %3641 = vmatpush.msra.mxu0 %v3540
        %3642 = vmatpush.msra.mxu0 %v3539
        %3643 = vmatmul.f32.gmra.mxu0 %v3565
        %v3644 = vpop.f32.mrf.mxu0
        %v3645 = vadd.f32 0.0, %v3644
        %3646 = vdwg.mxu0
        %3647 = vmatpush.msra.mxu0 0.0
        %3648 = vmatpush.msra.mxu0 0.0
        %3649 = vmatpush.msra.mxu0 0.0
        %3650 = vmatpush.msra.mxu0 0.0
        %3651 = vmatpush.msra.mxu0 0.0
        %3652 = vmatpush.msra.mxu0 0.0
        %3653 = vmatpush.msra.mxu0 0.0
        %3654 = vmatpush.msra.mxu0 0.0
        %3655 = vmatpush.msra.mxu0 0.0
        %3656 = vmatpush.msra.mxu0 %v3546
        %3657 = vmatpush.msra.mxu0 %v3545
        %3658 = vmatpush.msra.mxu0 %v3544
        %3659 = vmatpush.msra.mxu0 %v3543
        %3660 = vmatpush.msra.mxu0 %v3542
        %3661 = vmatpush.msra.mxu0 %v3541
        %3662 = vmatpush.msra.mxu0 %v3540
        %3663 = vmatmul.f32.gmra.mxu0 %v3565
        %v3664 = vpop.f32.mrf.mxu0
        %v3665 = vadd.f32 0.0, %v3664
        %3666 = vdwg.mxu0
        %3667 = vmatpush.msra.mxu0 0.0
        %3668 = vmatpush.msra.mxu0 0.0
        %3669 = vmatpush.msra.mxu0 0.0
        %3670 = vmatpush.msra.mxu0 0.0
        %3671 = vmatpush.msra.mxu0 0.0
        %3672 = vmatpush.msra.mxu0 0.0
        %3673 = vmatpush.msra.mxu0 0.0
        %3674 = vmatpush.msra.mxu0 0.0
        %3675 = vmatpush.msra.mxu0 0.0
        %3676 = vmatpush.msra.mxu0 %v3547
        %3677 = vmatpush.msra.mxu0 %v3546
        %3678 = vmatpush.msra.mxu0 %v3545
        %3679 = vmatpush.msra.mxu0 %v3544
        %3680 = vmatpush.msra.mxu0 %v3543
        %3681 = vmatpush.msra.mxu0 %v3542
        %3682 = vmatpush.msra.mxu0 %v3541
        %3683 = vmatmul.f32.gmra.mxu0 %v3565
        %v3684 = vpop.f32.mrf.mxu0
        %v3685 = vadd.f32 0.0, %v3684
        %3686 = vdwg.mxu0
        %3687 = vmatpush.msra.mxu0 0.0
        %3688 = vmatpush.msra.mxu0 0.0
        %3689 = vmatpush.msra.mxu0 0.0
        %3690 = vmatpush.msra.mxu0 0.0
        %3691 = vmatpush.msra.mxu0 0.0
        %3692 = vmatpush.msra.mxu0 0.0
        %3693 = vmatpush.msra.mxu0 0.0
        %3694 = vmatpush.msra.mxu0 0.0
        %3695 = vmatpush.msra.mxu0 0.0
        %3696 = vmatpush.msra.mxu0 %v3548
        %3697 = vmatpush.msra.mxu0 %v3547
        %3698 = vmatpush.msra.mxu0 %v3546
        %3699 = vmatpush.msra.mxu0 %v3545
        %3700 = vmatpush.msra.mxu0 %v3544
        %3701 = vmatpush.msra.mxu0 %v3543
        %3702 = vmatpush.msra.mxu0 %v3542
        %3703 = vmatmul.f32.gmra.mxu0 %v3565
        %v3704 = vpop.f32.mrf.mxu0
        %v3705 = vadd.f32 0.0, %v3704
        %3706 = vdwg.mxu0
        %3707 = vmatpush.msra.mxu0 0.0
        %3708 = vmatpush.msra.mxu0 0.0
        %3709 = vmatpush.msra.mxu0 0.0
        %3710 = vmatpush.msra.mxu0 0.0
        %3711 = vmatpush.msra.mxu0 0.0
        %3712 = vmatpush.msra.mxu0 0.0
        %3713 = vmatpush.msra.mxu0 0.0
        %3714 = vmatpush.msra.mxu0 0.0
        %3715 = vmatpush.msra.mxu0 0.0
        %3716 = vmatpush.msra.mxu0 %v3549
        %3717 = vmatpush.msra.mxu0 %v3548
        %3718 = vmatpush.msra.mxu0 %v3547
        %3719 = vmatpush.msra.mxu0 %v3546
        %3720 = vmatpush.msra.mxu0 %v3545
        %3721 = vmatpush.msra.mxu0 %v3544
        %3722 = vmatpush.msra.mxu0 %v3543
        %3723 = vmatmul.f32.gmra.mxu0 %v3565
        %v3724 = vpop.f32.mrf.mxu0
        %v3725 = vadd.f32 0.0, %v3724
        %3726 = vdwg.mxu0
        %v3727 = vadd.f32 %v3495, %v3585
        %v3728 = vadd.f32 %v3496, %v3605
        %v3729 = vadd.f32 %v3497, %v3625
        %v3730 = vadd.f32 %v3498, %v3645
        %v3731 = vadd.f32 %v3499, %v3665
        %v3732 = vadd.f32 %v3500, %v3685
        %v3733 = vadd.f32 %v3501, %v3705
        %v3734 = vadd.f32 %v3502, %v3725
        %s3735 = scalar_lea.vmem %s8, 20
        %v3736 = vld [vmem:[%s3735] sm:$0xf]
        %3737 = vrot.lane.b32.xlu0 %v2268, 123
        %v3738 = vpop.permute.xlu0 %3737
        %3739 = vrot.lane.b32.xlu0 %v2294, 123
        %v3740 = vpop.permute.xlu0 %3739
        %3741 = vrot.lane.b32.xlu0 %v2320, 123
        %v3742 = vpop.permute.xlu0 %3741
        %3743 = vrot.lane.b32.xlu0 %v2346, 123
        %v3744 = vpop.permute.xlu0 %3743
        %3745 = vrot.lane.b32.xlu0 %v2372, 123
        %v3746 = vpop.permute.xlu0 %3745
        %3747 = vrot.lane.b32.xlu0 %v2398, 123
        %v3748 = vpop.permute.xlu0 %3747
        %3749 = vrot.lane.b32.xlu0 %v2424, 123
        %v3750 = vpop.permute.xlu0 %3749
        %3751 = vrot.lane.b32.xlu0 %v2450, 123
        %v3752 = vpop.permute.xlu0 %3751
        %3753 = vrot.lane.b32.xlu0 %v2476, 123
        %v3754 = vpop.permute.xlu0 %3753
        %3755 = vrot.lane.b32.xlu0 %v2502, 123
        %v3756 = vpop.permute.xlu0 %3755
        %3757 = vrot.lane.b32.xlu0 %v2528, 123
        %v3758 = vpop.permute.xlu0 %3757
        %3759 = vrot.lane.b32.xlu0 %v2554, 123
        %v3760 = vpop.permute.xlu0 %3759
        %3761 = vrot.lane.b32.xlu0 %v2580, 123
        %v3762 = vpop.permute.xlu0 %3761
        %3763 = vrot.lane.b32.xlu0 %v2606, 123
        %v3764 = vpop.permute.xlu0 %3763
        %3765 = vrot.lane.b32.xlu0 %v2632, 123
        %v3766 = vpop.permute.xlu0 %3765
        %vm3767 = vcmask 1006592
        %v3768 = vsel %vm3767, %v3738, %v3740
        %v3769 = vsel %vm3767, %v3740, %v3742
        %v3770 = vsel %vm3767, %v3742, %v3744
        %v3771 = vsel %vm3767, %v3744, %v3746
        %v3772 = vsel %vm3767, %v3746, %v3748
        %v3773 = vsel %vm3767, %v3748, %v3750
        %v3774 = vsel %vm3767, %v3750, %v3752
        %v3775 = vsel %vm3767, %v3752, %v3754
        %v3776 = vsel %vm3767, %v3754, %v3756
        %v3777 = vsel %vm3767, %v3756, %v3758
        %v3778 = vsel %vm3767, %v3758, %v3760
        %v3779 = vsel %vm3767, %v3760, %v3762
        %v3780 = vsel %vm3767, %v3762, %v3764
        %v3781 = vsel %vm3767, %v3764, %v3766
        %v3797 = vsel %vm2712, %v3736, 0
        %3799 = vmatpush.msra.mxu0 0.0
        %3800 = vmatpush.msra.mxu0 0.0
        %3801 = vmatpush.msra.mxu0 0.0
        %3802 = vmatpush.msra.mxu0 0.0
        %3803 = vmatpush.msra.mxu0 0.0
        %3804 = vmatpush.msra.mxu0 0.0
        %3805 = vmatpush.msra.mxu0 0.0
        %3806 = vmatpush.msra.mxu0 0.0
        %3807 = vmatpush.msra.mxu0 0.0
        %3808 = vmatpush.msra.mxu0 %v3774
        %3809 = vmatpush.msra.mxu0 %v3773
        %3810 = vmatpush.msra.mxu0 %v3772
        %3811 = vmatpush.msra.mxu0 %v3771
        %3812 = vmatpush.msra.mxu0 %v3770
        %3813 = vmatpush.msra.mxu0 %v3769
        %3814 = vmatpush.msra.mxu0 %v3768
        %3815 = vmatmul.f32.gmra.mxu0 %v3797
        %v3816 = vpop.f32.mrf.mxu0
        %v3817 = vadd.f32 0.0, %v3816
        %3818 = vdwg.mxu0
        %3819 = vmatpush.msra.mxu0 0.0
        %3820 = vmatpush.msra.mxu0 0.0
        %3821 = vmatpush.msra.mxu0 0.0
        %3822 = vmatpush.msra.mxu0 0.0
        %3823 = vmatpush.msra.mxu0 0.0
        %3824 = vmatpush.msra.mxu0 0.0
        %3825 = vmatpush.msra.mxu0 0.0
        %3826 = vmatpush.msra.mxu0 0.0
        %3827 = vmatpush.msra.mxu0 0.0
        %3828 = vmatpush.msra.mxu0 %v3775
        %3829 = vmatpush.msra.mxu0 %v3774
        %3830 = vmatpush.msra.mxu0 %v3773
        %3831 = vmatpush.msra.mxu0 %v3772
        %3832 = vmatpush.msra.mxu0 %v3771
        %3833 = vmatpush.msra.mxu0 %v3770
        %3834 = vmatpush.msra.mxu0 %v3769
        %3835 = vmatmul.f32.gmra.mxu0 %v3797
        %v3836 = vpop.f32.mrf.mxu0
        %v3837 = vadd.f32 0.0, %v3836
        %3838 = vdwg.mxu0
        %3839 = vmatpush.msra.mxu0 0.0
        %3840 = vmatpush.msra.mxu0 0.0
        %3841 = vmatpush.msra.mxu0 0.0
        %3842 = vmatpush.msra.mxu0 0.0
        %3843 = vmatpush.msra.mxu0 0.0
        %3844 = vmatpush.msra.mxu0 0.0
        %3845 = vmatpush.msra.mxu0 0.0
        %3846 = vmatpush.msra.mxu0 0.0
        %3847 = vmatpush.msra.mxu0 0.0
        %3848 = vmatpush.msra.mxu0 %v3776
        %3849 = vmatpush.msra.mxu0 %v3775
        %3850 = vmatpush.msra.mxu0 %v3774
        %3851 = vmatpush.msra.mxu0 %v3773
        %3852 = vmatpush.msra.mxu0 %v3772
        %3853 = vmatpush.msra.mxu0 %v3771
        %3854 = vmatpush.msra.mxu0 %v3770
        %3855 = vmatmul.f32.gmra.mxu0 %v3797
        %v3856 = vpop.f32.mrf.mxu0
        %v3857 = vadd.f32 0.0, %v3856
        %3858 = vdwg.mxu0
        %3859 = vmatpush.msra.mxu0 0.0
        %3860 = vmatpush.msra.mxu0 0.0
        %3861 = vmatpush.msra.mxu0 0.0
        %3862 = vmatpush.msra.mxu0 0.0
        %3863 = vmatpush.msra.mxu0 0.0
        %3864 = vmatpush.msra.mxu0 0.0
        %3865 = vmatpush.msra.mxu0 0.0
        %3866 = vmatpush.msra.mxu0 0.0
        %3867 = vmatpush.msra.mxu0 0.0
        %3868 = vmatpush.msra.mxu0 %v3777
        %3869 = vmatpush.msra.mxu0 %v3776
        %3870 = vmatpush.msra.mxu0 %v3775
        %3871 = vmatpush.msra.mxu0 %v3774
        %3872 = vmatpush.msra.mxu0 %v3773
        %3873 = vmatpush.msra.mxu0 %v3772
        %3874 = vmatpush.msra.mxu0 %v3771
        %3875 = vmatmul.f32.gmra.mxu0 %v3797
        %v3876 = vpop.f32.mrf.mxu0
        %v3877 = vadd.f32 0.0, %v3876
        %3878 = vdwg.mxu0
        %3879 = vmatpush.msra.mxu0 0.0
        %3880 = vmatpush.msra.mxu0 0.0
        %3881 = vmatpush.msra.mxu0 0.0
        %3882 = vmatpush.msra.mxu0 0.0
        %3883 = vmatpush.msra.mxu0 0.0
        %3884 = vmatpush.msra.mxu0 0.0
        %3885 = vmatpush.msra.mxu0 0.0
        %3886 = vmatpush.msra.mxu0 0.0
        %3887 = vmatpush.msra.mxu0 0.0
        %3888 = vmatpush.msra.mxu0 %v3778
        %3889 = vmatpush.msra.mxu0 %v3777
        %3890 = vmatpush.msra.mxu0 %v3776
        %3891 = vmatpush.msra.mxu0 %v3775
        %3892 = vmatpush.msra.mxu0 %v3774
        %3893 = vmatpush.msra.mxu0 %v3773
        %3894 = vmatpush.msra.mxu0 %v3772
        %3895 = vmatmul.f32.gmra.mxu0 %v3797
        %v3896 = vpop.f32.mrf.mxu0
        %v3897 = vadd.f32 0.0, %v3896
        %3898 = vdwg.mxu0
        %3899 = vmatpush.msra.mxu0 0.0
        %3900 = vmatpush.msra.mxu0 0.0
        %3901 = vmatpush.msra.mxu0 0.0
        %3902 = vmatpush.msra.mxu0 0.0
        %3903 = vmatpush.msra.mxu0 0.0
        %3904 = vmatpush.msra.mxu0 0.0
        %3905 = vmatpush.msra.mxu0 0.0
        %3906 = vmatpush.msra.mxu0 0.0
        %3907 = vmatpush.msra.mxu0 0.0
        %3908 = vmatpush.msra.mxu0 %v3779
        %3909 = vmatpush.msra.mxu0 %v3778
        %3910 = vmatpush.msra.mxu0 %v3777
        %3911 = vmatpush.msra.mxu0 %v3776
        %3912 = vmatpush.msra.mxu0 %v3775
        %3913 = vmatpush.msra.mxu0 %v3774
        %3914 = vmatpush.msra.mxu0 %v3773
        %3915 = vmatmul.f32.gmra.mxu0 %v3797
        %v3916 = vpop.f32.mrf.mxu0
        %v3917 = vadd.f32 0.0, %v3916
        %3918 = vdwg.mxu0
        %3919 = vmatpush.msra.mxu0 0.0
        %3920 = vmatpush.msra.mxu0 0.0
        %3921 = vmatpush.msra.mxu0 0.0
        %3922 = vmatpush.msra.mxu0 0.0
        %3923 = vmatpush.msra.mxu0 0.0
        %3924 = vmatpush.msra.mxu0 0.0
        %3925 = vmatpush.msra.mxu0 0.0
        %3926 = vmatpush.msra.mxu0 0.0
        %3927 = vmatpush.msra.mxu0 0.0
        %3928 = vmatpush.msra.mxu0 %v3780
        %3929 = vmatpush.msra.mxu0 %v3779
        %3930 = vmatpush.msra.mxu0 %v3778
        %3931 = vmatpush.msra.mxu0 %v3777
        %3932 = vmatpush.msra.mxu0 %v3776
        %3933 = vmatpush.msra.mxu0 %v3775
        %3934 = vmatpush.msra.mxu0 %v3774
        %3935 = vmatmul.f32.gmra.mxu0 %v3797
        %v3936 = vpop.f32.mrf.mxu0
        %v3937 = vadd.f32 0.0, %v3936
        %3938 = vdwg.mxu0
        %3939 = vmatpush.msra.mxu0 0.0
        %3940 = vmatpush.msra.mxu0 0.0
        %3941 = vmatpush.msra.mxu0 0.0
        %3942 = vmatpush.msra.mxu0 0.0
        %3943 = vmatpush.msra.mxu0 0.0
        %3944 = vmatpush.msra.mxu0 0.0
        %3945 = vmatpush.msra.mxu0 0.0
        %3946 = vmatpush.msra.mxu0 0.0
        %3947 = vmatpush.msra.mxu0 0.0
        %3948 = vmatpush.msra.mxu0 %v3781
        %3949 = vmatpush.msra.mxu0 %v3780
        %3950 = vmatpush.msra.mxu0 %v3779
        %3951 = vmatpush.msra.mxu0 %v3778
        %3952 = vmatpush.msra.mxu0 %v3777
        %3953 = vmatpush.msra.mxu0 %v3776
        %3954 = vmatpush.msra.mxu0 %v3775
        %3955 = vmatmul.f32.gmra.mxu0 %v3797
        %v3956 = vpop.f32.mrf.mxu0
        %v3957 = vadd.f32 0.0, %v3956
        %3958 = vdwg.mxu0
        %v3959 = vadd.f32 %v3727, %v3817
        %v3960 = vadd.f32 %v3728, %v3837
        %v3961 = vadd.f32 %v3729, %v3857
        %v3962 = vadd.f32 %v3730, %v3877
        %v3963 = vadd.f32 %v3731, %v3897
        %v3964 = vadd.f32 %v3732, %v3917
        %v3965 = vadd.f32 %v3733, %v3937
        %v3966 = vadd.f32 %v3734, %v3957
        %s3967 = scalar_lea.vmem %s8, 24
        %v3968 = vld [vmem:[%s3967] sm:$0xf]
        %3969 = vrot.lane.b32.xlu0 %v2268, 122
        %v3970 = vpop.permute.xlu0 %3969
        %3971 = vrot.lane.b32.xlu0 %v2294, 122
        %v3972 = vpop.permute.xlu0 %3971
        %3973 = vrot.lane.b32.xlu0 %v2320, 122
        %v3974 = vpop.permute.xlu0 %3973
        %3975 = vrot.lane.b32.xlu0 %v2346, 122
        %v3976 = vpop.permute.xlu0 %3975
        %3977 = vrot.lane.b32.xlu0 %v2372, 122
        %v3978 = vpop.permute.xlu0 %3977
        %3979 = vrot.lane.b32.xlu0 %v2398, 122
        %v3980 = vpop.permute.xlu0 %3979
        %3981 = vrot.lane.b32.xlu0 %v2424, 122
        %v3982 = vpop.permute.xlu0 %3981
        %3983 = vrot.lane.b32.xlu0 %v2450, 122
        %v3984 = vpop.permute.xlu0 %3983
        %3985 = vrot.lane.b32.xlu0 %v2476, 122
        %v3986 = vpop.permute.xlu0 %3985
        %3987 = vrot.lane.b32.xlu0 %v2502, 122
        %v3988 = vpop.permute.xlu0 %3987
        %3989 = vrot.lane.b32.xlu0 %v2528, 122
        %v3990 = vpop.permute.xlu0 %3989
        %3991 = vrot.lane.b32.xlu0 %v2554, 122
        %v3992 = vpop.permute.xlu0 %3991
        %3993 = vrot.lane.b32.xlu0 %v2580, 122
        %v3994 = vpop.permute.xlu0 %3993
        %3995 = vrot.lane.b32.xlu0 %v2606, 122
        %v3996 = vpop.permute.xlu0 %3995
        %3997 = vrot.lane.b32.xlu0 %v2632, 122
        %v3998 = vpop.permute.xlu0 %3997
        %vm3999 = vcmask 998400
        %v4000 = vsel %vm3999, %v3970, %v3972
        %v4001 = vsel %vm3999, %v3972, %v3974
        %v4002 = vsel %vm3999, %v3974, %v3976
        %v4003 = vsel %vm3999, %v3976, %v3978
        %v4004 = vsel %vm3999, %v3978, %v3980
        %v4005 = vsel %vm3999, %v3980, %v3982
        %v4006 = vsel %vm3999, %v3982, %v3984
        %v4007 = vsel %vm3999, %v3984, %v3986
        %v4008 = vsel %vm3999, %v3986, %v3988
        %v4009 = vsel %vm3999, %v3988, %v3990
        %v4010 = vsel %vm3999, %v3990, %v3992
        %v4011 = vsel %vm3999, %v3992, %v3994
        %v4012 = vsel %vm3999, %v3994, %v3996
        %v4013 = vsel %vm3999, %v3996, %v3998
        %v4029 = vsel %vm2712, %v3968, 0
        %4031 = vmatpush.msra.mxu0 0.0
        %4032 = vmatpush.msra.mxu0 0.0
        %4033 = vmatpush.msra.mxu0 0.0
        %4034 = vmatpush.msra.mxu0 0.0
        %4035 = vmatpush.msra.mxu0 0.0
        %4036 = vmatpush.msra.mxu0 0.0
        %4037 = vmatpush.msra.mxu0 0.0
        %4038 = vmatpush.msra.mxu0 0.0
        %4039 = vmatpush.msra.mxu0 0.0
        %4040 = vmatpush.msra.mxu0 %v4006
        %4041 = vmatpush.msra.mxu0 %v4005
        %4042 = vmatpush.msra.mxu0 %v4004
        %4043 = vmatpush.msra.mxu0 %v4003
        %4044 = vmatpush.msra.mxu0 %v4002
        %4045 = vmatpush.msra.mxu0 %v4001
        %4046 = vmatpush.msra.mxu0 %v4000
        %4047 = vmatmul.f32.gmra.mxu0 %v4029
        %v4048 = vpop.f32.mrf.mxu0
        %v4049 = vadd.f32 0.0, %v4048
        %4050 = vdwg.mxu0
        %4051 = vmatpush.msra.mxu0 0.0
        %4052 = vmatpush.msra.mxu0 0.0
        %4053 = vmatpush.msra.mxu0 0.0
        %4054 = vmatpush.msra.mxu0 0.0
        %4055 = vmatpush.msra.mxu0 0.0
        %4056 = vmatpush.msra.mxu0 0.0
        %4057 = vmatpush.msra.mxu0 0.0
        %4058 = vmatpush.msra.mxu0 0.0
        %4059 = vmatpush.msra.mxu0 0.0
        %4060 = vmatpush.msra.mxu0 %v4007
        %4061 = vmatpush.msra.mxu0 %v4006
        %4062 = vmatpush.msra.mxu0 %v4005
        %4063 = vmatpush.msra.mxu0 %v4004
        %4064 = vmatpush.msra.mxu0 %v4003
        %4065 = vmatpush.msra.mxu0 %v4002
        %4066 = vmatpush.msra.mxu0 %v4001
        %4067 = vmatmul.f32.gmra.mxu0 %v4029
        %v4068 = vpop.f32.mrf.mxu0
        %v4069 = vadd.f32 0.0, %v4068
        %4070 = vdwg.mxu0
        %4071 = vmatpush.msra.mxu0 0.0
        %4072 = vmatpush.msra.mxu0 0.0
        %4073 = vmatpush.msra.mxu0 0.0
        %4074 = vmatpush.msra.mxu0 0.0
        %4075 = vmatpush.msra.mxu0 0.0
        %4076 = vmatpush.msra.mxu0 0.0
        %4077 = vmatpush.msra.mxu0 0.0
        %4078 = vmatpush.msra.mxu0 0.0
        %4079 = vmatpush.msra.mxu0 0.0
        %4080 = vmatpush.msra.mxu0 %v4008
        %4081 = vmatpush.msra.mxu0 %v4007
        %4082 = vmatpush.msra.mxu0 %v4006
        %4083 = vmatpush.msra.mxu0 %v4005
        %4084 = vmatpush.msra.mxu0 %v4004
        %4085 = vmatpush.msra.mxu0 %v4003
        %4086 = vmatpush.msra.mxu0 %v4002
        %4087 = vmatmul.f32.gmra.mxu0 %v4029
        %v4088 = vpop.f32.mrf.mxu0
        %v4089 = vadd.f32 0.0, %v4088
        %4090 = vdwg.mxu0
        %4091 = vmatpush.msra.mxu0 0.0
        %4092 = vmatpush.msra.mxu0 0.0
        %4093 = vmatpush.msra.mxu0 0.0
        %4094 = vmatpush.msra.mxu0 0.0
        %4095 = vmatpush.msra.mxu0 0.0
        %4096 = vmatpush.msra.mxu0 0.0
        %4097 = vmatpush.msra.mxu0 0.0
        %4098 = vmatpush.msra.mxu0 0.0
        %4099 = vmatpush.msra.mxu0 0.0
        %4100 = vmatpush.msra.mxu0 %v4009
        %4101 = vmatpush.msra.mxu0 %v4008
        %4102 = vmatpush.msra.mxu0 %v4007
        %4103 = vmatpush.msra.mxu0 %v4006
        %4104 = vmatpush.msra.mxu0 %v4005
        %4105 = vmatpush.msra.mxu0 %v4004
        %4106 = vmatpush.msra.mxu0 %v4003
        %4107 = vmatmul.f32.gmra.mxu0 %v4029
        %v4108 = vpop.f32.mrf.mxu0
        %v4109 = vadd.f32 0.0, %v4108
        %4110 = vdwg.mxu0
        %4111 = vmatpush.msra.mxu0 0.0
        %4112 = vmatpush.msra.mxu0 0.0
        %4113 = vmatpush.msra.mxu0 0.0
        %4114 = vmatpush.msra.mxu0 0.0
        %4115 = vmatpush.msra.mxu0 0.0
        %4116 = vmatpush.msra.mxu0 0.0
        %4117 = vmatpush.msra.mxu0 0.0
        %4118 = vmatpush.msra.mxu0 0.0
        %4119 = vmatpush.msra.mxu0 0.0
        %4120 = vmatpush.msra.mxu0 %v4010
        %4121 = vmatpush.msra.mxu0 %v4009
        %4122 = vmatpush.msra.mxu0 %v4008
        %4123 = vmatpush.msra.mxu0 %v4007
        %4124 = vmatpush.msra.mxu0 %v4006
        %4125 = vmatpush.msra.mxu0 %v4005
        %4126 = vmatpush.msra.mxu0 %v4004
        %4127 = vmatmul.f32.gmra.mxu0 %v4029
        %v4128 = vpop.f32.mrf.mxu0
        %v4129 = vadd.f32 0.0, %v4128
        %4130 = vdwg.mxu0
        %4131 = vmatpush.msra.mxu0 0.0
        %4132 = vmatpush.msra.mxu0 0.0
        %4133 = vmatpush.msra.mxu0 0.0
        %4134 = vmatpush.msra.mxu0 0.0
        %4135 = vmatpush.msra.mxu0 0.0
        %4136 = vmatpush.msra.mxu0 0.0
        %4137 = vmatpush.msra.mxu0 0.0
        %4138 = vmatpush.msra.mxu0 0.0
        %4139 = vmatpush.msra.mxu0 0.0
        %4140 = vmatpush.msra.mxu0 %v4011
        %4141 = vmatpush.msra.mxu0 %v4010
        %4142 = vmatpush.msra.mxu0 %v4009
        %4143 = vmatpush.msra.mxu0 %v4008
        %4144 = vmatpush.msra.mxu0 %v4007
        %4145 = vmatpush.msra.mxu0 %v4006
        %4146 = vmatpush.msra.mxu0 %v4005
        %4147 = vmatmul.f32.gmra.mxu0 %v4029
        %v4148 = vpop.f32.mrf.mxu0
        %v4149 = vadd.f32 0.0, %v4148
        %4150 = vdwg.mxu0
        %4151 = vmatpush.msra.mxu0 0.0
        %4152 = vmatpush.msra.mxu0 0.0
        %4153 = vmatpush.msra.mxu0 0.0
        %4154 = vmatpush.msra.mxu0 0.0
        %4155 = vmatpush.msra.mxu0 0.0
        %4156 = vmatpush.msra.mxu0 0.0
        %4157 = vmatpush.msra.mxu0 0.0
        %4158 = vmatpush.msra.mxu0 0.0
        %4159 = vmatpush.msra.mxu0 0.0
        %4160 = vmatpush.msra.mxu0 %v4012
        %4161 = vmatpush.msra.mxu0 %v4011
        %4162 = vmatpush.msra.mxu0 %v4010
        %4163 = vmatpush.msra.mxu0 %v4009
        %4164 = vmatpush.msra.mxu0 %v4008
        %4165 = vmatpush.msra.mxu0 %v4007
        %4166 = vmatpush.msra.mxu0 %v4006
        %4167 = vmatmul.f32.gmra.mxu0 %v4029
        %v4168 = vpop.f32.mrf.mxu0
        %v4169 = vadd.f32 0.0, %v4168
        %4170 = vdwg.mxu0
        %4171 = vmatpush.msra.mxu0 0.0
        %4172 = vmatpush.msra.mxu0 0.0
        %4173 = vmatpush.msra.mxu0 0.0
        %4174 = vmatpush.msra.mxu0 0.0
        %4175 = vmatpush.msra.mxu0 0.0
        %4176 = vmatpush.msra.mxu0 0.0
        %4177 = vmatpush.msra.mxu0 0.0
        %4178 = vmatpush.msra.mxu0 0.0
        %4179 = vmatpush.msra.mxu0 0.0
        %4180 = vmatpush.msra.mxu0 %v4013
        %4181 = vmatpush.msra.mxu0 %v4012
        %4182 = vmatpush.msra.mxu0 %v4011
        %4183 = vmatpush.msra.mxu0 %v4010
        %4184 = vmatpush.msra.mxu0 %v4009
        %4185 = vmatpush.msra.mxu0 %v4008
        %4186 = vmatpush.msra.mxu0 %v4007
        %4187 = vmatmul.f32.gmra.mxu0 %v4029
        %v4188 = vpop.f32.mrf.mxu0
        %v4189 = vadd.f32 0.0, %v4188
        %4190 = vdwg.mxu0
        %v4191 = vadd.f32 %v3959, %v4049
        %v4192 = vadd.f32 %v3960, %v4069
        %v4193 = vadd.f32 %v3961, %v4089
        %v4194 = vadd.f32 %v3962, %v4109
        %v4195 = vadd.f32 %v3963, %v4129
        %v4196 = vadd.f32 %v3964, %v4149
        %v4197 = vadd.f32 %v3965, %v4169
        %v4198 = vadd.f32 %v3966, %v4189
        %v4199 = vpack.c.bf16 %v4191, %v4191
        %v4200 = vpack.c.bf16 %v4192, %v4192
        %v4201 = vpack.c.bf16 %v4193, %v4193
        %v4202 = vpack.c.bf16 %v4194, %v4194
        %v4203 = vpack.c.bf16 %v4195, %v4195
        %v4204 = vpack.c.bf16 %v4196, %v4196
        %v4205 = vpack.c.bf16 %v4197, %v4197
        %v4206 = vpack.c.bf16 %v4198, %v4198
        %v4335 = vunpack.c.l.b16 %v635
        %v4336 = vunpack.c.h.b16 %v635
        %v4337 = vunpack.c.l.b16 %v636
        %v4338 = vunpack.c.h.b16 %v636
        %v4339 = vunpack.c.l.b16 %v637
        %v4340 = vunpack.c.h.b16 %v637
        %v4341 = vunpack.c.l.b16 %v638
        %v4342 = vunpack.c.h.b16 %v638
        %v4343 = vunpack.c.l.b16 %v639
        %v4344 = vunpack.c.h.b16 %v639
        %v4345 = vunpack.c.l.b16 %v640
        %v4346 = vunpack.c.h.b16 %v640
        %v4347 = vunpack.c.l.b16 %v641
        %v4348 = vunpack.c.h.b16 %v641
        %v4349 = vunpack.c.l.b16 %v642
        %v4350 = vunpack.c.h.b16 %v642
        %v4351 = vunpack.c.l.b16 %v643
        %v4352 = vunpack.c.h.b16 %v643
        %v4353 = vunpack.c.l.b16 %v644
        %v4354 = vunpack.c.h.b16 %v644
        %v4355 = vunpack.c.l.b16 %v645
        %v4356 = vunpack.c.h.b16 %v645
        %v4357 = vunpack.c.l.b16 %v646
        %v4358 = vunpack.c.h.b16 %v646
        %v4359 = vunpack.c.l.b16 %v647
        %v4360 = vunpack.c.h.b16 %v647
        %v4361 = vunpack.c.l.b16 %v648
        %v4362 = vunpack.c.h.b16 %v648
        %v4363 = vunpack.c.l.b16 %v649
        %v4364 = vunpack.c.h.b16 %v649
        %v4365 = vunpack.c.l.b16 %v650
        %v4366 = vunpack.c.h.b16 %v650
        %v4367 = vunpack.c.l.b16 %v651
        %v4368 = vunpack.c.h.b16 %v651
        %v4369 = vunpack.c.l.b16 %v652
        %v4370 = vunpack.c.h.b16 %v652
        %v4371 = vunpack.c.l.b16 %v653
        %v4372 = vunpack.c.h.b16 %v653
        %v4373 = vunpack.c.l.b16 %v654
        %v4374 = vunpack.c.h.b16 %v654
        %v4375 = vunpack.c.l.b16 %v655
        %v4376 = vunpack.c.h.b16 %v655
        %v4377 = vunpack.c.l.b16 %v656
        %v4378 = vunpack.c.h.b16 %v656
        %v4379 = vunpack.c.l.b16 %v657
        %v4380 = vunpack.c.h.b16 %v657
        %v4381 = vunpack.c.l.b16 %v658
        %v4382 = vunpack.c.h.b16 %v658
        %v4383 = vunpack.c.l.b16 %v659
        %v4384 = vunpack.c.h.b16 %v659
        %v4385 = vunpack.c.l.b16 %v660
        %v4386 = vunpack.c.h.b16 %v660
        %v4387 = vunpack.c.l.b16 %v661
        %v4388 = vunpack.c.h.b16 %v661
        %v4389 = vunpack.c.l.b16 %v662
        %v4390 = vunpack.c.h.b16 %v662
        %v4391 = vunpack.c.l.b16 %v663
        %v4392 = vunpack.c.h.b16 %v663
        %v4393 = vunpack.c.l.b16 %v664
        %v4394 = vunpack.c.h.b16 %v664
        %v4395 = vunpack.c.l.b16 %v665
        %v4396 = vunpack.c.h.b16 %v665
        %v4397 = vunpack.c.l.b16 %v666
        %v4398 = vunpack.c.h.b16 %v666
        %v4399 = vunpack.c.l.b16 %v667
        %v4400 = vunpack.c.h.b16 %v667
        %v4401 = vunpack.c.l.b16 %v668
        %v4402 = vunpack.c.h.b16 %v668
        %v4403 = vunpack.c.l.b16 %v669
        %v4404 = vunpack.c.h.b16 %v669
        %v4405 = vunpack.c.l.b16 %v670
        %v4406 = vunpack.c.h.b16 %v670
        %v4407 = vunpack.c.l.b16 %v671
        %v4408 = vunpack.c.h.b16 %v671
        %v4409 = vunpack.c.l.b16 %v672
        %v4410 = vunpack.c.h.b16 %v672
        %v4411 = vunpack.c.l.b16 %v673
        %v4412 = vunpack.c.h.b16 %v673
        %v4413 = vunpack.c.l.b16 %v674
        %v4414 = vunpack.c.h.b16 %v674
        %v4415 = vunpack.c.l.b16 %v675
        %v4416 = vunpack.c.h.b16 %v675
        %v4417 = vunpack.c.l.b16 %v676
        %v4418 = vunpack.c.h.b16 %v676
        %v4419 = vunpack.c.l.b16 %v677
        %v4420 = vunpack.c.h.b16 %v677
        %v4421 = vunpack.c.l.b16 %v678
        %v4422 = vunpack.c.h.b16 %v678
        %v4423 = vunpack.c.l.b16 %v679
        %v4424 = vunpack.c.h.b16 %v679
        %v4425 = vunpack.c.l.b16 %v680
        %v4426 = vunpack.c.h.b16 %v680
        %v4427 = vunpack.c.l.b16 %v681
        %v4428 = vunpack.c.h.b16 %v681
        %v4429 = vunpack.c.l.b16 %v682
        %v4430 = vunpack.c.h.b16 %v682
        %v4431 = vunpack.c.l.b16 %v683
        %v4432 = vunpack.c.h.b16 %v683
        %v4433 = vunpack.c.l.b16 %v684
        %v4434 = vunpack.c.h.b16 %v684
        %v4435 = vunpack.c.l.b16 %v685
        %v4436 = vunpack.c.h.b16 %v685
        %v4437 = vunpack.c.l.b16 %v686
        %v4438 = vunpack.c.h.b16 %v686
        %v4439 = vunpack.c.l.b16 %v687
        %v4440 = vunpack.c.h.b16 %v687
        %v4441 = vunpack.c.l.b16 %v688
        %v4442 = vunpack.c.h.b16 %v688
        %v4443 = vunpack.c.l.b16 %v689
        %v4444 = vunpack.c.h.b16 %v689
        %v4445 = vunpack.c.l.b16 %v690
        %v4446 = vunpack.c.h.b16 %v690
        %v4447 = vunpack.c.l.b16 %v691
        %v4448 = vunpack.c.h.b16 %v691
        %v4449 = vunpack.c.l.b16 %v692
        %v4450 = vunpack.c.h.b16 %v692
        %v4451 = vunpack.c.l.b16 %v693
        %v4452 = vunpack.c.h.b16 %v693
        %v4453 = vunpack.c.l.b16 %v694
        %v4454 = vunpack.c.h.b16 %v694
        %v4455 = vunpack.c.l.b16 %v695
        %v4456 = vunpack.c.h.b16 %v695
        %v4457 = vunpack.c.l.b16 %v696
        %v4458 = vunpack.c.h.b16 %v696
        %v4459 = vunpack.c.l.b16 %v697
        %v4460 = vunpack.c.h.b16 %v697
        %v4461 = vunpack.c.l.b16 %v698
        %v4462 = vunpack.c.h.b16 %v698
        %v4463 = vunpack.c.l.b16 %v699
        %v4464 = vunpack.c.h.b16 %v699
        %v4465 = vunpack.c.l.b16 %v700
        %v4466 = vunpack.c.h.b16 %v700
        %v4467 = vunpack.c.l.b16 %v701
        %v4468 = vunpack.c.h.b16 %v701
        %v4469 = vunpack.c.l.b16 %v702
        %v4470 = vunpack.c.h.b16 %v702
        %v4471 = vunpack.c.l.b16 %v703
        %v4472 = vunpack.c.h.b16 %v703
        %v4473 = vunpack.c.l.b16 %v704
        %v4474 = vunpack.c.h.b16 %v704
        %v4475 = vunpack.c.l.b16 %v705
        %v4476 = vunpack.c.h.b16 %v705
        %v4477 = vunpack.c.l.b16 %v706
        %v4478 = vunpack.c.h.b16 %v706
        %v4479 = vunpack.c.l.b16 %v707
        %v4480 = vunpack.c.h.b16 %v707
        %v4481 = vunpack.c.l.b16 %v708
        %v4482 = vunpack.c.h.b16 %v708
        %v4483 = vunpack.c.l.b16 %v709
        %v4484 = vunpack.c.h.b16 %v709
        %v4485 = vunpack.c.l.b16 %v710
        %v4486 = vunpack.c.h.b16 %v710
        %v4487 = vunpack.c.l.b16 %v711
        %v4488 = vunpack.c.h.b16 %v711
        %v4489 = vunpack.c.l.b16 %v712
        %v4490 = vunpack.c.h.b16 %v712
        %v4491 = vunpack.c.l.b16 %v713
        %v4492 = vunpack.c.h.b16 %v713
        %v4493 = vunpack.c.l.b16 %v714
        %v4494 = vunpack.c.h.b16 %v714
        %v4495 = vunpack.c.l.b16 %v715
        %v4496 = vunpack.c.h.b16 %v715
        %v4497 = vunpack.c.l.b16 %v716
        %v4498 = vunpack.c.h.b16 %v716
        %v4499 = vunpack.c.l.b16 %v717
        %v4500 = vunpack.c.h.b16 %v717
        %v4501 = vunpack.c.l.b16 %v718
        %v4502 = vunpack.c.h.b16 %v718
        %v4503 = vunpack.c.l.b16 %v719
        %v4504 = vunpack.c.h.b16 %v719
        %v4505 = vunpack.c.l.b16 %v720
        %v4506 = vunpack.c.h.b16 %v720
        %v4507 = vunpack.c.l.b16 %v721
        %v4508 = vunpack.c.h.b16 %v721
        %v4509 = vunpack.c.l.b16 %v722
        %v4510 = vunpack.c.h.b16 %v722
        %v4511 = vunpack.c.l.b16 %v723
        %v4512 = vunpack.c.h.b16 %v723
        %v4513 = vunpack.c.l.b16 %v724
        %v4514 = vunpack.c.h.b16 %v724
        %v4515 = vunpack.c.l.b16 %v725
        %v4516 = vunpack.c.h.b16 %v725
        %v4517 = vunpack.c.l.b16 %v726
        %v4518 = vunpack.c.h.b16 %v726
        %v4519 = vunpack.c.l.b16 %v727
        %v4520 = vunpack.c.h.b16 %v727
        %v4521 = vunpack.c.l.b16 %v728
        %v4522 = vunpack.c.h.b16 %v728
        %v4523 = vunpack.c.l.b16 %v729
        %v4524 = vunpack.c.h.b16 %v729
        %v4525 = vunpack.c.l.b16 %v730
        %v4526 = vunpack.c.h.b16 %v730
        %v4527 = vunpack.c.l.b16 %v731
        %v4528 = vunpack.c.h.b16 %v731
        %v4529 = vunpack.c.l.b16 %v732
        %v4530 = vunpack.c.h.b16 %v732
        %v4531 = vunpack.c.l.b16 %v733
        %v4532 = vunpack.c.h.b16 %v733
        %v4533 = vunpack.c.l.b16 %v734
        %v4534 = vunpack.c.h.b16 %v734
        %v4535 = vunpack.c.l.b16 %v735
        %v4536 = vunpack.c.h.b16 %v735
        %v4537 = vunpack.c.l.b16 %v736
        %v4538 = vunpack.c.h.b16 %v736
        %v4539 = vunpack.c.l.b16 %v737
        %v4540 = vunpack.c.h.b16 %v737
        %v4541 = vunpack.c.l.b16 %v738
        %v4542 = vunpack.c.h.b16 %v738
        %v4543 = vunpack.c.l.b16 %v739
        %v4544 = vunpack.c.h.b16 %v739
        %v4545 = vunpack.c.l.b16 %v740
        %v4546 = vunpack.c.h.b16 %v740
        %v4547 = vunpack.c.l.b16 %v741
        %v4548 = vunpack.c.h.b16 %v741
        %v4549 = vunpack.c.l.b16 %v742
        %v4550 = vunpack.c.h.b16 %v742
        %v4551 = vunpack.c.l.b16 %v743
        %v4552 = vunpack.c.h.b16 %v743
        %v4553 = vunpack.c.l.b16 %v744
        %v4554 = vunpack.c.h.b16 %v744
        %v4555 = vunpack.c.l.b16 %v745
        %v4556 = vunpack.c.h.b16 %v745
        %v4557 = vunpack.c.l.b16 %v746
        %v4558 = vunpack.c.h.b16 %v746
        %v4559 = vunpack.c.l.b16 %v747
        %v4560 = vunpack.c.h.b16 %v747
        %v4561 = vunpack.c.l.b16 %v748
        %v4562 = vunpack.c.h.b16 %v748
        %v4563 = vunpack.c.l.b16 %v749
        %v4564 = vunpack.c.h.b16 %v749
        %v4565 = vunpack.c.l.b16 %v750
        %v4566 = vunpack.c.h.b16 %v750
        %v4567 = vunpack.c.l.b16 %v751
        %v4568 = vunpack.c.h.b16 %v751
        %v4569 = vunpack.c.l.b16 %v752
        %v4570 = vunpack.c.h.b16 %v752
        %v4571 = vunpack.c.l.b16 %v753
        %v4572 = vunpack.c.h.b16 %v753
        %v4573 = vunpack.c.l.b16 %v754
        %v4574 = vunpack.c.h.b16 %v754
        %v4575 = vunpack.c.l.b16 %v755
        %v4576 = vunpack.c.h.b16 %v755
        %v4577 = vunpack.c.l.b16 %v756
        %v4578 = vunpack.c.h.b16 %v756
        %v4579 = vunpack.c.l.b16 %v757
        %v4580 = vunpack.c.h.b16 %v757
        %v4581 = vunpack.c.l.b16 %v758
        %v4582 = vunpack.c.h.b16 %v758
        %v4583 = vunpack.c.l.b16 %v759
        %v4584 = vunpack.c.h.b16 %v759
        %v4585 = vunpack.c.l.b16 %v760
        %v4586 = vunpack.c.h.b16 %v760
        %v4587 = vunpack.c.l.b16 %v761
        %v4588 = vunpack.c.h.b16 %v761
        %v4589 = vunpack.c.l.b16 %v762
        %v4590 = vunpack.c.h.b16 %v762
        %v4591 = vpack.c.b16 %v4337, %v4335
        %v4592 = vpack.c.b16 %v4338, %v4336
        %v4593 = vpack.c.b16 %v4341, %v4339
        %v4594 = vpack.c.b16 %v4342, %v4340
        %v4595 = vpack.c.b16 %v4345, %v4343
        %v4596 = vpack.c.b16 %v4346, %v4344
        %v4597 = vpack.c.b16 %v4349, %v4347
        %v4598 = vpack.c.b16 %v4350, %v4348
        %v4599 = vpack.c.b16 %v4353, %v4351
        %v4600 = vpack.c.b16 %v4354, %v4352
        %v4601 = vpack.c.b16 %v4357, %v4355
        %v4602 = vpack.c.b16 %v4358, %v4356
        %v4603 = vpack.c.b16 %v4361, %v4359
        %v4604 = vpack.c.b16 %v4362, %v4360
        %v4605 = vpack.c.b16 %v4365, %v4363
        %v4606 = vpack.c.b16 %v4366, %v4364
        %v4607 = vpack.c.b16 %v4369, %v4367
        %v4608 = vpack.c.b16 %v4370, %v4368
        %v4609 = vpack.c.b16 %v4373, %v4371
        %v4610 = vpack.c.b16 %v4374, %v4372
        %v4611 = vpack.c.b16 %v4377, %v4375
        %v4612 = vpack.c.b16 %v4378, %v4376
        %v4613 = vpack.c.b16 %v4381, %v4379
        %v4614 = vpack.c.b16 %v4382, %v4380
        %v4615 = vpack.c.b16 %v4385, %v4383
        %v4616 = vpack.c.b16 %v4386, %v4384
        %v4617 = vpack.c.b16 %v4389, %v4387
        %v4618 = vpack.c.b16 %v4390, %v4388
        %v4619 = vpack.c.b16 %v4393, %v4391
        %v4620 = vpack.c.b16 %v4394, %v4392
        %v4621 = vpack.c.b16 %v4397, %v4395
        %v4622 = vpack.c.b16 %v4398, %v4396
        %v4623 = vpack.c.b16 %v4401, %v4399
        %v4624 = vpack.c.b16 %v4402, %v4400
        %v4625 = vpack.c.b16 %v4405, %v4403
        %v4626 = vpack.c.b16 %v4406, %v4404
        %v4627 = vpack.c.b16 %v4409, %v4407
        %v4628 = vpack.c.b16 %v4410, %v4408
        %v4629 = vpack.c.b16 %v4413, %v4411
        %v4630 = vpack.c.b16 %v4414, %v4412
        %v4631 = vpack.c.b16 %v4417, %v4415
        %v4632 = vpack.c.b16 %v4418, %v4416
        %v4633 = vpack.c.b16 %v4421, %v4419
        %v4634 = vpack.c.b16 %v4422, %v4420
        %v4635 = vpack.c.b16 %v4425, %v4423
        %v4636 = vpack.c.b16 %v4426, %v4424
        %v4637 = vpack.c.b16 %v4429, %v4427
        %v4638 = vpack.c.b16 %v4430, %v4428
        %v4639 = vpack.c.b16 %v4433, %v4431
        %v4640 = vpack.c.b16 %v4434, %v4432
        %v4641 = vpack.c.b16 %v4437, %v4435
        %v4642 = vpack.c.b16 %v4438, %v4436
        %v4643 = vpack.c.b16 %v4441, %v4439
        %v4644 = vpack.c.b16 %v4442, %v4440
        %v4645 = vpack.c.b16 %v4445, %v4443
        %v4646 = vpack.c.b16 %v4446, %v4444
        %v4647 = vpack.c.b16 %v4449, %v4447
        %v4648 = vpack.c.b16 %v4450, %v4448
        %v4649 = vpack.c.b16 %v4453, %v4451
        %v4650 = vpack.c.b16 %v4454, %v4452
        %v4651 = vpack.c.b16 %v4457, %v4455
        %v4652 = vpack.c.b16 %v4458, %v4456
        %v4653 = vpack.c.b16 %v4461, %v4459
        %v4654 = vpack.c.b16 %v4462, %v4460
        %v4655 = vpack.c.b16 %v4465, %v4463
        %v4656 = vpack.c.b16 %v4466, %v4464
        %v4657 = vpack.c.b16 %v4469, %v4467
        %v4658 = vpack.c.b16 %v4470, %v4468
        %v4659 = vpack.c.b16 %v4473, %v4471
        %v4660 = vpack.c.b16 %v4474, %v4472
        %v4661 = vpack.c.b16 %v4477, %v4475
        %v4662 = vpack.c.b16 %v4478, %v4476
        %v4663 = vpack.c.b16 %v4481, %v4479
        %v4664 = vpack.c.b16 %v4482, %v4480
        %v4665 = vpack.c.b16 %v4485, %v4483
        %v4666 = vpack.c.b16 %v4486, %v4484
        %v4667 = vpack.c.b16 %v4489, %v4487
        %v4668 = vpack.c.b16 %v4490, %v4488
        %v4669 = vpack.c.b16 %v4493, %v4491
        %v4670 = vpack.c.b16 %v4494, %v4492
        %v4671 = vpack.c.b16 %v4497, %v4495
        %v4672 = vpack.c.b16 %v4498, %v4496
        %v4673 = vpack.c.b16 %v4501, %v4499
        %v4674 = vpack.c.b16 %v4502, %v4500
        %v4675 = vpack.c.b16 %v4505, %v4503
        %v4676 = vpack.c.b16 %v4506, %v4504
        %v4677 = vpack.c.b16 %v4509, %v4507
        %v4678 = vpack.c.b16 %v4510, %v4508
        %v4679 = vpack.c.b16 %v4513, %v4511
        %v4680 = vpack.c.b16 %v4514, %v4512
        %v4681 = vpack.c.b16 %v4517, %v4515
        %v4682 = vpack.c.b16 %v4518, %v4516
        %v4683 = vpack.c.b16 %v4521, %v4519
        %v4684 = vpack.c.b16 %v4522, %v4520
        %v4685 = vpack.c.b16 %v4525, %v4523
        %v4686 = vpack.c.b16 %v4526, %v4524
        %v4687 = vpack.c.b16 %v4529, %v4527
        %v4688 = vpack.c.b16 %v4530, %v4528
        %v4689 = vpack.c.b16 %v4533, %v4531
        %v4690 = vpack.c.b16 %v4534, %v4532
        %v4691 = vpack.c.b16 %v4537, %v4535
        %v4692 = vpack.c.b16 %v4538, %v4536
        %v4693 = vpack.c.b16 %v4541, %v4539
        %v4694 = vpack.c.b16 %v4542, %v4540
        %v4695 = vpack.c.b16 %v4545, %v4543
        %v4696 = vpack.c.b16 %v4546, %v4544
        %v4697 = vpack.c.b16 %v4549, %v4547
        %v4698 = vpack.c.b16 %v4550, %v4548
        %v4699 = vpack.c.b16 %v4553, %v4551
        %v4700 = vpack.c.b16 %v4554, %v4552
        %v4701 = vpack.c.b16 %v4557, %v4555
        %v4702 = vpack.c.b16 %v4558, %v4556
        %v4703 = vpack.c.b16 %v4561, %v4559
        %v4704 = vpack.c.b16 %v4562, %v4560
        %v4705 = vpack.c.b16 %v4565, %v4563
        %v4706 = vpack.c.b16 %v4566, %v4564
        %v4707 = vpack.c.b16 %v4569, %v4567
        %v4708 = vpack.c.b16 %v4570, %v4568
        %v4709 = vpack.c.b16 %v4573, %v4571
        %v4710 = vpack.c.b16 %v4574, %v4572
        %v4711 = vpack.c.b16 %v4577, %v4575
        %v4712 = vpack.c.b16 %v4578, %v4576
        %v4713 = vpack.c.b16 %v4581, %v4579
        %v4714 = vpack.c.b16 %v4582, %v4580
        %v4715 = vpack.c.b16 %v4585, %v4583
        %v4716 = vpack.c.b16 %v4586, %v4584
        %v4717 = vpack.c.b16 %v4589, %v4587
        %v4718 = vpack.c.b16 %v4590, %v4588
        %4847 = vmatpush.bf16.msra.mxu0 %v4605
        %4848 = vmatpush.bf16.msra.mxu0 %v4603
        %4849 = vmatpush.bf16.msra.mxu0 %v4601
        %4850 = vmatpush.bf16.msra.mxu0 %v4599
        %4851 = vmatpush.bf16.msra.mxu0 %v4597
        %4852 = vmatpush.bf16.msra.mxu0 %v4595
        %4853 = vmatpush.bf16.msra.mxu0 %v4593
        %4854 = vmatpush.bf16.msra.mxu0 %v4591
        %4855 = vmatmul.bf16.gmra.mxu0 %v4199
        %v4856 = vpop.f32.mrf.mxu0
        %v4857 = vadd.f32 0.0, %v4856
        %v4858 = vpop.f32.mrf.mxu0
        %4859 = vdwg.mxu0
        %4860 = vmatpush.bf16.msra.mxu0 %v4621
        %4861 = vmatpush.bf16.msra.mxu0 %v4619
        %4862 = vmatpush.bf16.msra.mxu0 %v4617
        %4863 = vmatpush.bf16.msra.mxu0 %v4615
        %4864 = vmatpush.bf16.msra.mxu0 %v4613
        %4865 = vmatpush.bf16.msra.mxu0 %v4611
        %4866 = vmatpush.bf16.msra.mxu0 %v4609
        %4867 = vmatpush.bf16.msra.mxu0 %v4607
        %4868 = vmatmul.bf16.gmra.mxu0 %v4200
        %v4869 = vpop.f32.mrf.mxu0
        %v4870 = vadd.f32 %v4857, %v4869
        %v4871 = vpop.f32.mrf.mxu0
        %4872 = vdwg.mxu0
        %4873 = vmatpush.bf16.msra.mxu0 %v4637
        %4874 = vmatpush.bf16.msra.mxu0 %v4635
        %4875 = vmatpush.bf16.msra.mxu0 %v4633
        %4876 = vmatpush.bf16.msra.mxu0 %v4631
        %4877 = vmatpush.bf16.msra.mxu0 %v4629
        %4878 = vmatpush.bf16.msra.mxu0 %v4627
        %4879 = vmatpush.bf16.msra.mxu0 %v4625
        %4880 = vmatpush.bf16.msra.mxu0 %v4623
        %4881 = vmatmul.bf16.gmra.mxu0 %v4201
        %v4882 = vpop.f32.mrf.mxu0
        %v4883 = vadd.f32 %v4870, %v4882
        %v4884 = vpop.f32.mrf.mxu0
        %4885 = vdwg.mxu0
        %4886 = vmatpush.bf16.msra.mxu0 %v4653
        %4887 = vmatpush.bf16.msra.mxu0 %v4651
        %4888 = vmatpush.bf16.msra.mxu0 %v4649
        %4889 = vmatpush.bf16.msra.mxu0 %v4647
        %4890 = vmatpush.bf16.msra.mxu0 %v4645
        %4891 = vmatpush.bf16.msra.mxu0 %v4643
        %4892 = vmatpush.bf16.msra.mxu0 %v4641
        %4893 = vmatpush.bf16.msra.mxu0 %v4639
        %4894 = vmatmul.bf16.gmra.mxu0 %v4202
        %v4895 = vpop.f32.mrf.mxu0
        %v4896 = vadd.f32 %v4883, %v4895
        %v4897 = vpop.f32.mrf.mxu0
        %4898 = vdwg.mxu0
        %4899 = vmatpush.bf16.msra.mxu0 %v4669
        %4900 = vmatpush.bf16.msra.mxu0 %v4667
        %4901 = vmatpush.bf16.msra.mxu0 %v4665
        %4902 = vmatpush.bf16.msra.mxu0 %v4663
        %4903 = vmatpush.bf16.msra.mxu0 %v4661
        %4904 = vmatpush.bf16.msra.mxu0 %v4659
        %4905 = vmatpush.bf16.msra.mxu0 %v4657
        %4906 = vmatpush.bf16.msra.mxu0 %v4655
        %4907 = vmatmul.bf16.gmra.mxu0 %v4203
        %v4908 = vpop.f32.mrf.mxu0
        %v4909 = vadd.f32 %v4896, %v4908
        %v4910 = vpop.f32.mrf.mxu0
        %4911 = vdwg.mxu0
        %4912 = vmatpush.bf16.msra.mxu0 %v4685
        %4913 = vmatpush.bf16.msra.mxu0 %v4683
        %4914 = vmatpush.bf16.msra.mxu0 %v4681
        %4915 = vmatpush.bf16.msra.mxu0 %v4679
        %4916 = vmatpush.bf16.msra.mxu0 %v4677
        %4917 = vmatpush.bf16.msra.mxu0 %v4675
        %4918 = vmatpush.bf16.msra.mxu0 %v4673
        %4919 = vmatpush.bf16.msra.mxu0 %v4671
        %4920 = vmatmul.bf16.gmra.mxu0 %v4204
        %v4921 = vpop.f32.mrf.mxu0
        %v4922 = vadd.f32 %v4909, %v4921
        %v4923 = vpop.f32.mrf.mxu0
        %4924 = vdwg.mxu0
        %4925 = vmatpush.bf16.msra.mxu0 %v4701
        %4926 = vmatpush.bf16.msra.mxu0 %v4699
        %4927 = vmatpush.bf16.msra.mxu0 %v4697
        %4928 = vmatpush.bf16.msra.mxu0 %v4695
        %4929 = vmatpush.bf16.msra.mxu0 %v4693
        %4930 = vmatpush.bf16.msra.mxu0 %v4691
        %4931 = vmatpush.bf16.msra.mxu0 %v4689
        %4932 = vmatpush.bf16.msra.mxu0 %v4687
        %4933 = vmatmul.bf16.gmra.mxu0 %v4205
        %v4934 = vpop.f32.mrf.mxu0
        %v4935 = vadd.f32 %v4922, %v4934
        %v4936 = vpop.f32.mrf.mxu0
        %4937 = vdwg.mxu0
        %4938 = vmatpush.bf16.msra.mxu0 %v4717
        %4939 = vmatpush.bf16.msra.mxu0 %v4715
        %4940 = vmatpush.bf16.msra.mxu0 %v4713
        %4941 = vmatpush.bf16.msra.mxu0 %v4711
        %4942 = vmatpush.bf16.msra.mxu0 %v4709
        %4943 = vmatpush.bf16.msra.mxu0 %v4707
        %4944 = vmatpush.bf16.msra.mxu0 %v4705
        %4945 = vmatpush.bf16.msra.mxu0 %v4703
        %4946 = vmatmul.bf16.gmra.mxu0 %v4206
        %v4947 = vpop.f32.mrf.mxu0
        %v4948 = vadd.f32 %v4935, %v4947
        %v4949 = vpop.f32.mrf.mxu0
        %4950 = vdwg.mxu0
        %4951 = vmatpush.bf16.msra.mxu0 %v4606
        %4952 = vmatpush.bf16.msra.mxu0 %v4604
        %4953 = vmatpush.bf16.msra.mxu0 %v4602
        %4954 = vmatpush.bf16.msra.mxu0 %v4600
        %4955 = vmatpush.bf16.msra.mxu0 %v4598
        %4956 = vmatpush.bf16.msra.mxu0 %v4596
        %4957 = vmatpush.bf16.msra.mxu0 %v4594
        %4958 = vmatpush.bf16.msra.mxu0 %v4592
        %4959 = vmatmul.bf16.gmra.mxu0 %v4199
        %v4960 = vpop.f32.mrf.mxu0
        %v4961 = vadd.f32 0.0, %v4960
        %v4962 = vpop.f32.mrf.mxu0
        %4963 = vdwg.mxu0
        %4964 = vmatpush.bf16.msra.mxu0 %v4622
        %4965 = vmatpush.bf16.msra.mxu0 %v4620
        %4966 = vmatpush.bf16.msra.mxu0 %v4618
        %4967 = vmatpush.bf16.msra.mxu0 %v4616
        %4968 = vmatpush.bf16.msra.mxu0 %v4614
        %4969 = vmatpush.bf16.msra.mxu0 %v4612
        %4970 = vmatpush.bf16.msra.mxu0 %v4610
        %4971 = vmatpush.bf16.msra.mxu0 %v4608
        %4972 = vmatmul.bf16.gmra.mxu0 %v4200
        %v4973 = vpop.f32.mrf.mxu0
        %v4974 = vadd.f32 %v4961, %v4973
        %v4975 = vpop.f32.mrf.mxu0
        %4976 = vdwg.mxu0
        %4977 = vmatpush.bf16.msra.mxu0 %v4638
        %4978 = vmatpush.bf16.msra.mxu0 %v4636
        %4979 = vmatpush.bf16.msra.mxu0 %v4634
        %4980 = vmatpush.bf16.msra.mxu0 %v4632
        %4981 = vmatpush.bf16.msra.mxu0 %v4630
        %4982 = vmatpush.bf16.msra.mxu0 %v4628
        %4983 = vmatpush.bf16.msra.mxu0 %v4626
        %4984 = vmatpush.bf16.msra.mxu0 %v4624
        %4985 = vmatmul.bf16.gmra.mxu0 %v4201
        %v4986 = vpop.f32.mrf.mxu0
        %v4987 = vadd.f32 %v4974, %v4986
        %v4988 = vpop.f32.mrf.mxu0
        %4989 = vdwg.mxu0
        %4990 = vmatpush.bf16.msra.mxu0 %v4654
        %4991 = vmatpush.bf16.msra.mxu0 %v4652
        %4992 = vmatpush.bf16.msra.mxu0 %v4650
        %4993 = vmatpush.bf16.msra.mxu0 %v4648
        %4994 = vmatpush.bf16.msra.mxu0 %v4646
        %4995 = vmatpush.bf16.msra.mxu0 %v4644
        %4996 = vmatpush.bf16.msra.mxu0 %v4642
        %4997 = vmatpush.bf16.msra.mxu0 %v4640
        %4998 = vmatmul.bf16.gmra.mxu0 %v4202
        %v4999 = vpop.f32.mrf.mxu0
        %v5000 = vadd.f32 %v4987, %v4999
        %v5001 = vpop.f32.mrf.mxu0
        %5002 = vdwg.mxu0
        %5003 = vmatpush.bf16.msra.mxu0 %v4670
        %5004 = vmatpush.bf16.msra.mxu0 %v4668
        %5005 = vmatpush.bf16.msra.mxu0 %v4666
        %5006 = vmatpush.bf16.msra.mxu0 %v4664
        %5007 = vmatpush.bf16.msra.mxu0 %v4662
        %5008 = vmatpush.bf16.msra.mxu0 %v4660
        %5009 = vmatpush.bf16.msra.mxu0 %v4658
        %5010 = vmatpush.bf16.msra.mxu0 %v4656
        %5011 = vmatmul.bf16.gmra.mxu0 %v4203
        %v5012 = vpop.f32.mrf.mxu0
        %v5013 = vadd.f32 %v5000, %v5012
        %v5014 = vpop.f32.mrf.mxu0
        %5015 = vdwg.mxu0
        %5016 = vmatpush.bf16.msra.mxu0 %v4686
        %5017 = vmatpush.bf16.msra.mxu0 %v4684
        %5018 = vmatpush.bf16.msra.mxu0 %v4682
        %5019 = vmatpush.bf16.msra.mxu0 %v4680
        %5020 = vmatpush.bf16.msra.mxu0 %v4678
        %5021 = vmatpush.bf16.msra.mxu0 %v4676
        %5022 = vmatpush.bf16.msra.mxu0 %v4674
        %5023 = vmatpush.bf16.msra.mxu0 %v4672
        %5024 = vmatmul.bf16.gmra.mxu0 %v4204
        %v5025 = vpop.f32.mrf.mxu0
        %v5026 = vadd.f32 %v5013, %v5025
        %v5027 = vpop.f32.mrf.mxu0
        %5028 = vdwg.mxu0
        %5029 = vmatpush.bf16.msra.mxu0 %v4702
        %5030 = vmatpush.bf16.msra.mxu0 %v4700
        %5031 = vmatpush.bf16.msra.mxu0 %v4698
        %5032 = vmatpush.bf16.msra.mxu0 %v4696
        %5033 = vmatpush.bf16.msra.mxu0 %v4694
        %5034 = vmatpush.bf16.msra.mxu0 %v4692
        %5035 = vmatpush.bf16.msra.mxu0 %v4690
        %5036 = vmatpush.bf16.msra.mxu0 %v4688
        %5037 = vmatmul.bf16.gmra.mxu0 %v4205
        %v5038 = vpop.f32.mrf.mxu0
        %v5039 = vadd.f32 %v5026, %v5038
        %v5040 = vpop.f32.mrf.mxu0
        %5041 = vdwg.mxu0
        %5042 = vmatpush.bf16.msra.mxu0 %v4718
        %5043 = vmatpush.bf16.msra.mxu0 %v4716
        %5044 = vmatpush.bf16.msra.mxu0 %v4714
        %5045 = vmatpush.bf16.msra.mxu0 %v4712
        %5046 = vmatpush.bf16.msra.mxu0 %v4710
        %5047 = vmatpush.bf16.msra.mxu0 %v4708
        %5048 = vmatpush.bf16.msra.mxu0 %v4706
        %5049 = vmatpush.bf16.msra.mxu0 %v4704
        %5050 = vmatmul.bf16.gmra.mxu0 %v4206
        %v5051 = vpop.f32.mrf.mxu0
        %v5052 = vadd.f32 %v5039, %v5051
        %v5053 = vpop.f32.mrf.mxu0
        %5054 = vdwg.mxu0
        %v5055 = vmul.f32 %v4948, %v377
        %v5056 = vmul.f32 %v5052, %v378
        %vm5057 = vcmask 1043456
        %v5058 = vsel %vm5057, %v5055, 0.0
        %v5059 = vrot.slane %v5058, 4
        %v5060 = vadd.f32 %v5058, %v5059
        %v5061 = vrot.slane %v5060, 2
        %v5062 = vadd.f32 %v5060, %v5061
        %v5063 = vrot.slane %v5062, 1
        %v5064 = vadd.f32 %v5062, %v5063
        %v5065 = vsel %vm5057, %v5056, 0.0
        %v5066 = vrot.slane %v5065, 4
        %v5067 = vadd.f32 %v5065, %v5066
        %v5068 = vrot.slane %v5067, 2
        %v5069 = vadd.f32 %v5067, %v5068
        %v5070 = vrot.slane %v5069, 1
        %v5071 = vadd.f32 %v5069, %v5070
        %v5072 = vadd.f32 %v5064, 0.0
        %v5073 = vadd.f32 %v5071, 0.0
        %v5074 = vsub.f32 0.0, %v5072
        %v5075 = vsub.f32 0.0, %v5073
        %v5076 = vmul.f32 %v5074, 1.442695
        %v5077 = vpow.pop %v5076
        %v5078 = vmul.f32 %v5075, 1.442695
        %v5079 = vpow.pop %v5078
        %v5080 = vadd.f32 %v5077, 1.0
        %v5081 = vadd.f32 %v5079, 1.0
        %v5082 = vrcp.pop %v5080
        %v5083 = vrcp.pop %v5081
        %v5084 = vmul.f32 %v970, %v5082
        %v5085 = vmul.f32 %v971, %v5083
        %v5086 = vmul.f32 %v972, %v5082
        %v5087 = vmul.f32 %v973, %v5083
        %v5088 = vmul.f32 %v974, %v5082
        %v5089 = vmul.f32 %v975, %v5083
        %v5090 = vmul.f32 %v976, %v5082
        %v5091 = vmul.f32 %v977, %v5083
        %5092 = vst [vmem:[%s366] sm:$0xff] %v5084
        %5093 = vst [vmem:[%s366 + $0x8] sm:$0xff] %v5085
        %5094 = vst [vmem:[%s366 + $0x10] sm:$0xff] %v5086
        %5095 = vst [vmem:[%s366 + $0x18] sm:$0xff] %v5087
        %5096 = vst [vmem:[%s366 + $0x20] sm:$0xff] %v5088
        %5097 = vst [vmem:[%s366 + $0x28] sm:$0xff] %v5089
        %5098 = vst [vmem:[%s366 + $0x30] sm:$0xff] %v5090
        %5099 = vst [vmem:[%s366 + $0x38] sm:$0xff] %v5091
        %p5100 = scmp.lt.s32.totalorder %s22, 1
        %s5101 = scalar_select %p5100, %s22, 1
        %s5102 = smul.addr %s5101, 8
        %s5103 = smul.addr %s5102, 8
        %s5104 = scalar_lea.vmem %s9, %s5103
        // Predicated region
        $region65: #{_lambda_.1} parent=55 // pred_check
          %p5105 = pneg %p234
        $region66: #{_lambda_.1} parent=55 // pred_check_branch
          %5107 = sbr.rel (%p5105) target = $region68
        $region67: #{_lambda_.1} parent=55 // pred_region
          _
        $region68: #{_lambda_.1} parent=55 // pred_fallthru
          _
      $region56: #{_lambda_.1} parent=5 // pred_fallthru
        _
      %p5108 = scmp.le.s32.totalorder 2, %s17
      // Predicated region
      $region69: #{_lambda_.1} parent=5 // pred_check
        %p5109 = pneg %p5108
      $region70: #{_lambda_.1} parent=5 // pred_check_branch
        %5111 = sbr.rel (%p5109) target = $region72
      $region71: #{_lambda_.1} parent=5 // pred_region
        %s5112 = ssub.s32 %s17, 2
        // Predicated region
        $region73: #{_lambda_.1} parent=71 // pred_check
          %p5113 = pneg %p240
        $region74: #{_lambda_.1} parent=71 // pred_check_branch
          %5115 = sbr.rel (%p5113) target = $region76
        $region75: #{_lambda_.1} parent=71 // pred_region
          %p5116 = scmp.lt.s32.totalorder %s23, 1
          %s5117 = scalar_select %p5116, %s23, 1
          %s5118 = smul.addr %s5117, 8
          %s5119 = smul.addr %s5118, 8
          %s5120 = scalar_lea.vmem %s9, %s5119
        $region76: #{_lambda_.1} parent=71 // pred_fallthru
          _
      $region72: #{_lambda_.1} parent=5 // pred_fallthru
        _
    $region6: #{_lambda_.1} parent=1 // loop_footer
      %s21 = sadd.s32 1, %s17
    $region7: #{_lambda_.1} parent=1 // loop_footer_branch
      %16 = sbr.rel target = $region3
    $region8: #{_lambda_.1} parent=1 // loop_exit
      _
    %5121 = vsyncpa [#allocation3], 1
    %s5122 = scalar_lea.sflag [#allocation3], 1
    %5123 = vsyncpa %s5122, 1
    %5124 = vsyncpa [#allocation5], 1

</llo_original>
